<compile_context>
chip_gen: v7x
topology: tpu7x:2x2x1
jax: 0.10.0
libtpu: 0.0.40
codegen_flags: <defaults>
</compile_context>

<pallas_src>
import functools

import jax
import jax.numpy as jnp
from jax.experimental import pallas as pl
from jax.experimental.pallas import tpu as pltpu

LRELU_SLOPE = 0.2
D = 512          # latent / hidden width of the per-channel + trunk layers
OUT_DIM = 50     # final output width
PAD = 128        # lane-dense padding of the small tail layers


def _lrelu(x):
    return jnp.where(x >= 0.0, x, LRELU_SLOPE * x)


# ------------------------------------------------------------------ #
# Kernel 1: per-channel MLP stack (fc_{0..3}_channel_{c}) fused with the
# per-channel K-block of trunk fc_0.  grid=(C,), "parallel".
# Per step: (1, L, D, D) bf16 channel slab (~2 MiB) + (1, D, D) fc_0 block.
# ------------------------------------------------------------------ #
def _channel_fc0_kernel(L, x_ref, ch_w_ref, ch_b_ref, w0_ref, part_ref):
    # x_ref:    (B, D)        f32  -- channel c's slice of the flattened input
    # ch_w_ref: (1, L, D, D)  bf16 (In, Out)
    # ch_b_ref: (1, L, 1, D)  f32
    # w0_ref:   (1, D, D)     bf16 -- fc_0's K-block for this channel
    # part_ref: (B, D)        f32  -- this channel's fc_0 partial product
    h = x_ref[...]
    for l in range(L):                                   # statically unrolled
        h = _lrelu(jnp.dot(h.astype(jnp.bfloat16), ch_w_ref[0, l],
                           preferred_element_type=jnp.float32)
                   + ch_b_ref[0, l])
    part_ref[...] = jnp.dot(h.astype(jnp.bfloat16), w0_ref[0],
                            preferred_element_type=jnp.float32)


def channel_fc0(x2d, ch_w, ch_b, w0):
    """x2d: (B, C*D) f32, ch_w: (C, L, D, D) bf16, ch_b: (C, L, 1, D) f32,
    w0: (C, D, D) bf16  ->  (B, C*D) f32 per-channel fc_0 partial products."""
    B = x2d.shape[0]
    C, L, _, _ = ch_w.shape
    kernel = functools.partial(_channel_fc0_kernel, L)
    w_bytes = int(ch_w.size) * 2 + int(w0.size) * 2 + int(ch_b.size) * 4
    ce = pl.CostEstimate(
        flops=int(2 * B * D * D * (L + 1) * C),
        transcendentals=0,
        bytes_accessed=w_bytes + int(x2d.size) * 4 + int(B * C * D) * 4)
    return pl.pallas_call(
        kernel,
        out_shape=jax.ShapeDtypeStruct((B, C * D), jnp.float32),
        grid_spec=pltpu.PrefetchScalarGridSpec(
            num_scalar_prefetch=0,
            grid=(C,),
            in_specs=[
                pl.BlockSpec((B, D), lambda c: (0, c)),
                pl.BlockSpec((1, L, D, D), lambda c: (c, 0, 0, 0)),
                pl.BlockSpec((1, L, 1, D), lambda c: (c, 0, 0, 0)),
                pl.BlockSpec((1, D, D), lambda c: (c, 0, 0)),
            ],
            out_specs=pl.BlockSpec((B, D), lambda c: (0, c)),
        ),
        compiler_params=pltpu.CompilerParams(
            dimension_semantics=("parallel",)),
        cost_estimate=ce,
    )(x2d, ch_w, ch_b, w0)


# ------------------------------------------------------------------ #
# Kernel 2: trunk tail.  Grid-less; all operands (~1.7 MiB) resident in VMEM.
# Sums the fc_0 partials, applies fc_0 bias + lrelu, fc_1..fc_3, then the small
# 512->50 / 50->50 / output layers padded to 128 lanes (lane-dense store).
# ------------------------------------------------------------------ #
def _trunk_tail_kernel(parts_ref, w_mid_ref, b_main_ref,
                       w4_ref, w5_ref, wo_ref, b_tail_ref, o_ref):
    # parts_ref:  (B, C*D)   f32
    # w_mid_ref:  (3, D, D)  bf16   fc_1..fc_3
    # b_main_ref: (4, 1, D)  f32    b0..b3
    # w4_ref:     (D, PAD)   bf16   fc_4 (512->50, zero-padded cols)
    # w5_ref:     (PAD, PAD) bf16   fc_5 (50->50, zero-padded)
    # wo_ref:     (PAD, PAD) bf16   output_fc (50->50, zero-padded)
    # b_tail_ref: (3, 1, PAD) f32   b4, b5, b_out (zero-padded)
    # o_ref:      (B, PAD)   f32
    C = parts_ref.shape[1] // D
    acc = parts_ref[:, 0:D]
    for c in range(1, C):                                 # fc_0 K-accumulation
        acc = acc + parts_ref[:, c * D:(c + 1) * D]
    y = _lrelu(acc + b_main_ref[0])                       # fc_0 bias + act
    for j in range(w_mid_ref.shape[0]):                   # fc_1 .. fc_3
        y = _lrelu(jnp.dot(y.astype(jnp.bfloat16), w_mid_ref[j],
                           preferred_element_type=jnp.float32)
                   + b_main_ref[j + 1])
    y = _lrelu(jnp.dot(y.astype(jnp.bfloat16), w4_ref[...],
                       preferred_element_type=jnp.float32) + b_tail_ref[0])
    y = _lrelu(jnp.dot(y.astype(jnp.bfloat16), w5_ref[...],
                       preferred_element_type=jnp.float32) + b_tail_ref[1])
    o_ref[...] = (jnp.dot(y.astype(jnp.bfloat16), wo_ref[...],
                          preferred_element_type=jnp.float32) + b_tail_ref[2])


def trunk_tail(parts, w_mid, b_main, w4, w5, wout, b_tail):
    B = parts.shape[0]
    nbytes = sum(int(a.size) * a.dtype.itemsize
                 for a in (parts, w_mid, b_main, w4, w5, wout, b_tail))
    ce = pl.CostEstimate(
        flops=int(2 * B * (3 * D * D + D * PAD + 2 * PAD * PAD)),
        transcendentals=0,
        bytes_accessed=nbytes + int(B * PAD) * 4)
    return pl.pallas_call(
        _trunk_tail_kernel,
        out_shape=jax.ShapeDtypeStruct((B, PAD), jnp.float32),
        cost_estimate=ce,
    )(parts, w_mid, b_main, w4, w5, wout, b_tail)


# ------------------------------------------------------------------ #
# Parameters (deterministic init, shapes as in mlp_multichannel.__init__).
# Logical weights are stored (In, Out); torch Linear weights would be W.T here.
# ------------------------------------------------------------------ #
def init_params(key, channel_num):
    channel_fc_dim = [512, 512, 512, 512, 512]
    fc_dim = [channel_num * channel_fc_dim[-1], 512, 512, 512, 512, 50, 50]
    L = len(channel_fc_dim) - 1                       # 4 per-channel layers
    n_keys = 2 * channel_num * L + 2 * (len(fc_dim) - 1) + 2
    keys = iter(jax.random.split(key, n_keys))

    ch_w, ch_b = [], []
    for _ in range(channel_num):
        ws, bs = [], []
        for fi in range(L):
            fan_in, fan_out = channel_fc_dim[fi], channel_fc_dim[fi + 1]
            ws.append(jax.random.normal(next(keys), (fan_in, fan_out), jnp.float32)
                      / jnp.sqrt(fan_in))
            bs.append(0.1 * jax.random.normal(next(keys), (fan_out,), jnp.float32))
        ch_w.append(jnp.stack(ws))
        ch_b.append(jnp.stack(bs))
    ch_w = jnp.stack(ch_w)                            # (C, L, D, D)  (In, Out)
    ch_b = jnp.stack(ch_b)                            # (C, L, D)

    trunk = []
    for fi in range(len(fc_dim) - 1):
        w = (jax.random.normal(next(keys), (fc_dim[fi], fc_dim[fi + 1]), jnp.float32)
             / jnp.sqrt(fc_dim[fi]))
        b = 0.1 * jax.random.normal(next(keys), (fc_dim[fi + 1],), jnp.float32)
        trunk.append((w, b))

    ow = (jax.random.normal(next(keys), (fc_dim[-1], OUT_DIM), jnp.float32)
          / jnp.sqrt(fc_dim[-1]))
    ob = 0.1 * jax.random.normal(next(keys), (OUT_DIM,), jnp.float32)
    return dict(ch_w=ch_w, ch_b=ch_b, trunk=trunk, out=(ow, ob))


def pack_params(params, channel_num):
    """Pack logical f32 params into the bf16 streaming layout used by the kernels."""
    C = channel_num
    ch_w = params["ch_w"].astype(jnp.bfloat16)                # (C, L, D, D)
    L = ch_w.shape[1]
    ch_b = params["ch_b"].reshape(C, L, 1, D).astype(jnp.float32)

    trunk = params["trunk"]
    w0, b0 = trunk[0]                                         # (C*D, 512), (512,)
    w0 = w0.reshape(C, D, D).astype(jnp.bfloat16)             # per-channel K-blocks

    w_mid = jnp.stack([trunk[i][0] for i in (1, 2, 3)]).astype(jnp.bfloat16)  # (3,D,D)
    b_main = jnp.stack([b0, trunk[1][1], trunk[2][1], trunk[3][1]]
                       ).reshape(4, 1, D).astype(jnp.float32)

    # Small tail layers padded to 128 lanes.  Padded weight rows/cols and padded
    # bias entries are EXACTLY zero, so lrelu(0)=0 propagates cleanly through the
    # padded lanes and out[:, :OUT_DIM] equals the unpadded computation.
    w4, b4 = trunk[4]                                         # (512, 50)
    w5, b5 = trunk[5]                                         # (50, 50)
    wo, bo = params["out"]                                    # (50, 50)
    w4p = jnp.pad(w4, ((0, 0), (0, PAD - w4.shape[1]))).astype(jnp.bfloat16)
    w5p = jnp.pad(w5, ((0, PAD - w5.shape[0]), (0, PAD - w5.shape[1]))).astype(jnp.bfloat16)
    wop = jnp.pad(wo, ((0, PAD - wo.shape[0]), (0, PAD - wo.shape[1]))).astype(jnp.bfloat16)
    b_tail = jnp.stack([jnp.pad(b4, (0, PAD - b4.shape[0])),
                        jnp.pad(b5, (0, PAD - b5.shape[0])),
                        jnp.pad(bo, (0, PAD - bo.shape[0]))]
                       ).reshape(3, 1, PAD).astype(jnp.float32)

    return dict(ch_w=ch_w, ch_b=ch_b, w0=w0, w_mid=w_mid, b_main=b_main,
                w4=w4p, w5=w5p, wout=wop, b_tail=b_tail)


# ------------------------------------------------------------------ #
# Full forward (mirrors mlp_multichannel.forward)
# ------------------------------------------------------------------ #
def mlp_multichannel_forward(w, kp):
    B, C, d = w.shape
    x2d = w.reshape(B, C * d)                                 # channel-major columns
    parts = channel_fc0(x2d, kp["ch_w"], kp["ch_b"], kp["w0"])   # (B, C*D)
    y = trunk_tail(parts, kp["w_mid"], kp["b_main"],
                   kp["w4"], kp["w5"], kp["wout"], kp["b_tail"])  # (B, 128)
    return y[:, :OUT_DIM]


# ------------------------------------------------------------------ #
# Pure-JAX reference (same bf16 weight quantization / f32 accumulation)
# ------------------------------------------------------------------ #
def reference_forward(w, params):
    def dot_bf16(x, wt):
        return jnp.dot(x.astype(jnp.bfloat16), wt.astype(jnp.bfloat16),
                       preferred_element_type=jnp.float32)

    B, C, _ = w.shape
    L = params["ch_w"].shape[1]
    outs = []
    for ci in range(C):
        x = w[:, ci]
        for l in range(L):
            x = _lrelu(dot_bf16(x, params["ch_w"][ci, l])
                       + params["ch_b"][ci, l][None, :])
        outs.append(x)
    x = jnp.concatenate(outs, axis=1)
    for wt, bt in params["trunk"]:
        x = _lrelu(dot_bf16(x, wt) + bt[None, :])
    ow, ob = params["out"]
    return dot_bf16(x, ow) + ob[None, :]


if __name__ == "__main__":
    B, C = 2, 4            # small channel_num; feature dims (512 / 50) as in the module
    key = jax.random.PRNGKey(0)
    k_in, k_par = jax.random.split(key)

    w = jax.random.normal(k_in, (B, C, D), jnp.float32)
    params = init_params(k_par, C)
    kparams = pack_params(params, C)

    out = mlp_multichannel_forward(w, kparams)
    out = jax.block_until_ready(out)

    assert out.shape == (B, OUT_DIM), out.shape
    assert bool(jnp.all(jnp.isfinite(out)))

    ref = reference_forward(w, params)
    err = float(jnp.max(jnp.abs(out - ref)))
    assert err < 1e-2, f"max abs error {err}"

    print("KERNEL_OK")
</pallas_src>

<mosaic_0001>
module attributes {stable_mosaic.version = 11 : i64} {
  func.func @_channel_fc0_kernel(%arg0: i32, %arg1: memref<2x512xf32, #tpu.memory_space<vmem>>, %arg2: memref<1x4x512x512xbf16, #tpu.memory_space<vmem>>, %arg3: memref<1x4x1x512xf32, #tpu.memory_space<vmem>>, %arg4: memref<1x512x512xbf16, #tpu.memory_space<vmem>>, %arg5: memref<2x512xf32, #tpu.memory_space<vmem>>) attributes {dimension_semantics = [#tpu.dimension_semantics<parallel>], iteration_bounds = array<i64: 4>, scalar_prefetch = 0 : i64, scratch_operands = 0 : i64, tpu.core_type = #tpu.core_type<tc>, window_params = [{transform_indices = @transform_0, window_bounds = array<i64: 2, 512>}, {transform_indices = @transform_1, window_bounds = array<i64: 1, 4, 512, 512>}, {transform_indices = @transform_2, window_bounds = array<i64: 1, 4, 1, 512>}, {transform_indices = @transform_3, window_bounds = array<i64: 1, 512, 512>}, {transform_indices = @transform_4, window_bounds = array<i64: 2, 512>}]} {
    %c0 = arith.constant 0 : index
    %c0_0 = arith.constant 0 : index
    %0 = vector.load %arg1[%c0, %c0_0] : memref<2x512xf32, #tpu.memory_space<vmem>>, vector<2x512xf32>
    %1 = arith.truncf %0 : vector<2x512xf32> to vector<2x512xbf16>
    %c0_1 = arith.constant 0 : index
    %c0_2 = arith.constant 0 : index
    %c0_3 = arith.constant 0 : index
    %c0_4 = arith.constant 0 : index
    %2 = vector.load %arg2[%c0_1, %c0_2, %c0_3, %c0_4] : memref<1x4x512x512xbf16, #tpu.memory_space<vmem>>, vector<1x1x512x512xbf16>
    %3 = vector.shape_cast %2 : vector<1x1x512x512xbf16> to vector<512x512xbf16>
    %cst = arith.constant dense<0.000000e+00> : vector<2x512xf32>
    %4 = tpu.matmul %1, %3, %cst {dimension_numbers = #tpu.dot_dimension_numbers<[1], [0], [0], [1], [0, 0, 1, 1], [], []>} : vector<2x512xbf16>, vector<512x512xbf16>, vector<2x512xf32> -> vector<2x512xf32>
    %c0_5 = arith.constant 0 : index
    %c0_6 = arith.constant 0 : index
    %c0_7 = arith.constant 0 : index
    %c0_8 = arith.constant 0 : index
    %5 = vector.load %arg3[%c0_5, %c0_6, %c0_7, %c0_8] : memref<1x4x1x512xf32, #tpu.memory_space<vmem>>, vector<1x1x1x512xf32>
    %6 = vector.shape_cast %5 : vector<1x1x1x512xf32> to vector<1x512xf32>
    %7 = vector.broadcast %6 : vector<1x512xf32> to vector<2x512xf32>
    %8 = arith.addf %4, %7 : vector<2x512xf32>
    %cst_9 = arith.constant 0.000000e+00 : f32
    %9 = vector.broadcast %cst_9 : f32 to vector<2x512xf32>
    %10 = arith.cmpf oge, %8, %9 : vector<2x512xf32>
    %cst_10 = arith.constant 2.000000e-01 : f32
    %11 = vector.broadcast %cst_10 : f32 to vector<2x512xf32>
    %12 = arith.mulf %11, %8 : vector<2x512xf32>
    %13 = arith.select %10, %8, %12 : vector<2x512xi1>, vector<2x512xf32>
    %14 = arith.truncf %13 : vector<2x512xf32> to vector<2x512xbf16>
    %c0_11 = arith.constant 0 : index
    %c1 = arith.constant 1 : index
    %c0_12 = arith.constant 0 : index
    %c0_13 = arith.constant 0 : index
    %15 = vector.load %arg2[%c0_11, %c1, %c0_12, %c0_13] : memref<1x4x512x512xbf16, #tpu.memory_space<vmem>>, vector<1x1x512x512xbf16>
    %16 = vector.shape_cast %15 : vector<1x1x512x512xbf16> to vector<512x512xbf16>
    %cst_14 = arith.constant dense<0.000000e+00> : vector<2x512xf32>
    %17 = tpu.matmul %14, %16, %cst_14 {dimension_numbers = #tpu.dot_dimension_numbers<[1], [0], [0], [1], [0, 0, 1, 1], [], []>} : vector<2x512xbf16>, vector<512x512xbf16>, vector<2x512xf32> -> vector<2x512xf32>
    %c0_15 = arith.constant 0 : index
    %c1_16 = arith.constant 1 : index
    %c0_17 = arith.constant 0 : index
    %c0_18 = arith.constant 0 : index
    %18 = vector.load %arg3[%c0_15, %c1_16, %c0_17, %c0_18] : memref<1x4x1x512xf32, #tpu.memory_space<vmem>>, vector<1x1x1x512xf32>
    %19 = vector.shape_cast %18 : vector<1x1x1x512xf32> to vector<1x512xf32>
    %20 = vector.broadcast %19 : vector<1x512xf32> to vector<2x512xf32>
    %21 = arith.addf %17, %20 : vector<2x512xf32>
    %cst_19 = arith.constant 0.000000e+00 : f32
    %22 = vector.broadcast %cst_19 : f32 to vector<2x512xf32>
    %23 = arith.cmpf oge, %21, %22 : vector<2x512xf32>
    %cst_20 = arith.constant 2.000000e-01 : f32
    %24 = vector.broadcast %cst_20 : f32 to vector<2x512xf32>
    %25 = arith.mulf %24, %21 : vector<2x512xf32>
    %26 = arith.select %23, %21, %25 : vector<2x512xi1>, vector<2x512xf32>
    %27 = arith.truncf %26 : vector<2x512xf32> to vector<2x512xbf16>
    %c0_21 = arith.constant 0 : index
    %c2 = arith.constant 2 : index
    %c0_22 = arith.constant 0 : index
    %c0_23 = arith.constant 0 : index
    %28 = vector.load %arg2[%c0_21, %c2, %c0_22, %c0_23] : memref<1x4x512x512xbf16, #tpu.memory_space<vmem>>, vector<1x1x512x512xbf16>
    %29 = vector.shape_cast %28 : vector<1x1x512x512xbf16> to vector<512x512xbf16>
    %cst_24 = arith.constant dense<0.000000e+00> : vector<2x512xf32>
    %30 = tpu.matmul %27, %29, %cst_24 {dimension_numbers = #tpu.dot_dimension_numbers<[1], [0], [0], [1], [0, 0, 1, 1], [], []>} : vector<2x512xbf16>, vector<512x512xbf16>, vector<2x512xf32> -> vector<2x512xf32>
    %c0_25 = arith.constant 0 : index
    %c2_26 = arith.constant 2 : index
    %c0_27 = arith.constant 0 : index
    %c0_28 = arith.constant 0 : index
    %31 = vector.load %arg3[%c0_25, %c2_26, %c0_27, %c0_28] : memref<1x4x1x512xf32, #tpu.memory_space<vmem>>, vector<1x1x1x512xf32>
    %32 = vector.shape_cast %31 : vector<1x1x1x512xf32> to vector<1x512xf32>
    %33 = vector.broadcast %32 : vector<1x512xf32> to vector<2x512xf32>
    %34 = arith.addf %30, %33 : vector<2x512xf32>
    %cst_29 = arith.constant 0.000000e+00 : f32
    %35 = vector.broadcast %cst_29 : f32 to vector<2x512xf32>
    %36 = arith.cmpf oge, %34, %35 : vector<2x512xf32>
    %cst_30 = arith.constant 2.000000e-01 : f32
    %37 = vector.broadcast %cst_30 : f32 to vector<2x512xf32>
    %38 = arith.mulf %37, %34 : vector<2x512xf32>
    %39 = arith.select %36, %34, %38 : vector<2x512xi1>, vector<2x512xf32>
    %40 = arith.truncf %39 : vector<2x512xf32> to vector<2x512xbf16>
    %c0_31 = arith.constant 0 : index
    %c3 = arith.constant 3 : index
    %c0_32 = arith.constant 0 : index
    %c0_33 = arith.constant 0 : index
    %41 = vector.load %arg2[%c0_31, %c3, %c0_32, %c0_33] : memref<1x4x512x512xbf16, #tpu.memory_space<vmem>>, vector<1x1x512x512xbf16>
    %42 = vector.shape_cast %41 : vector<1x1x512x512xbf16> to vector<512x512xbf16>
    %cst_34 = arith.constant dense<0.000000e+00> : vector<2x512xf32>
    %43 = tpu.matmul %40, %42, %cst_34 {dimension_numbers = #tpu.dot_dimension_numbers<[1], [0], [0], [1], [0, 0, 1, 1], [], []>} : vector<2x512xbf16>, vector<512x512xbf16>, vector<2x512xf32> -> vector<2x512xf32>
    %c0_35 = arith.constant 0 : index
    %c3_36 = arith.constant 3 : index
    %c0_37 = arith.constant 0 : index
    %c0_38 = arith.constant 0 : index
    %44 = vector.load %arg3[%c0_35, %c3_36, %c0_37, %c0_38] : memref<1x4x1x512xf32, #tpu.memory_space<vmem>>, vector<1x1x1x512xf32>
    %45 = vector.shape_cast %44 : vector<1x1x1x512xf32> to vector<1x512xf32>
    %46 = vector.broadcast %45 : vector<1x512xf32> to vector<2x512xf32>
    %47 = arith.addf %43, %46 : vector<2x512xf32>
    %cst_39 = arith.constant 0.000000e+00 : f32
    %48 = vector.broadcast %cst_39 : f32 to vector<2x512xf32>
    %49 = arith.cmpf oge, %47, %48 : vector<2x512xf32>
    %cst_40 = arith.constant 2.000000e-01 : f32
    %50 = vector.broadcast %cst_40 : f32 to vector<2x512xf32>
    %51 = arith.mulf %50, %47 : vector<2x512xf32>
    %52 = arith.select %49, %47, %51 : vector<2x512xi1>, vector<2x512xf32>
    %53 = arith.truncf %52 : vector<2x512xf32> to vector<2x512xbf16>
    %c0_41 = arith.constant 0 : index
    %c0_42 = arith.constant 0 : index
    %c0_43 = arith.constant 0 : index
    %54 = vector.load %arg4[%c0_41, %c0_42, %c0_43] : memref<1x512x512xbf16, #tpu.memory_space<vmem>>, vector<1x512x512xbf16>
    %55 = vector.shape_cast %54 : vector<1x512x512xbf16> to vector<512x512xbf16>
    %cst_44 = arith.constant dense<0.000000e+00> : vector<2x512xf32>
    %56 = tpu.matmul %53, %55, %cst_44 {dimension_numbers = #tpu.dot_dimension_numbers<[1], [0], [0], [1], [0, 0, 1, 1], [], []>} : vector<2x512xbf16>, vector<512x512xbf16>, vector<2x512xf32> -> vector<2x512xf32>
    %c0_45 = arith.constant 0 : index
    %c0_46 = arith.constant 0 : index
    %57 = vector.load %arg5[%c0_45, %c0_46] : memref<2x512xf32, #tpu.memory_space<vmem>>, vector<2x512xf32>
    tpu.vector_store %arg5[%c0_45, %c0_46], %56 {strides = array<i32>} : memref<2x512xf32, #tpu.memory_space<vmem>>, vector<2x512xf32>,
    return
  }
  func.func @transform_0(%arg0: i32) -> (i32, i32) {
    %c0_i32 = arith.constant 0 : i32
    %c0_i32_0 = arith.constant 0 : i32
    return %c0_i32, %arg0 : i32, i32
  }
  func.func @transform_1(%arg0: i32) -> (i32, i32, i32, i32) {
    %c0_i32 = arith.constant 0 : i32
    %c0_i32_0 = arith.constant 0 : i32
    %c0_i32_1 = arith.constant 0 : i32
    %c0_i32_2 = arith.constant 0 : i32
    return %arg0, %c0_i32, %c0_i32_0, %c0_i32_1 : i32, i32, i32, i32
  }
  func.func @transform_2(%arg0: i32) -> (i32, i32, i32, i32) {
    %c0_i32 = arith.constant 0 : i32
    %c0_i32_0 = arith.constant 0 : i32
    %c0_i32_1 = arith.constant 0 : i32
    %c0_i32_2 = arith.constant 0 : i32
    return %arg0, %c0_i32, %c0_i32_0, %c0_i32_1 : i32, i32, i32, i32
  }
  func.func @transform_3(%arg0: i32) -> (i32, i32, i32) {
    %c0_i32 = arith.constant 0 : i32
    %c0_i32_0 = arith.constant 0 : i32
    %c0_i32_1 = arith.constant 0 : i32
    return %arg0, %c0_i32, %c0_i32_0 : i32, i32, i32
  }
  func.func @transform_4(%arg0: i32) -> (i32, i32) {
    %c0_i32 = arith.constant 0 : i32
    %c0_i32_0 = arith.constant 0 : i32
    return %c0_i32, %arg0 : i32, i32
  }
}

</mosaic_0001>

<llo_original>
// kernel: tpu_custom_call.1
$region0: #{tpu_custom_call.1}
  #allocation0 [shape = 'u32[]', space=smem, size = 0x4, offset = 0x4, fixed_abs, tag = 'smem constant byte address 0x4 - core index']
  #allocation1 [shape = 'u32[144,128]{1,0:T(1,128)}', space=vmem, size = 0x12000, scoped, tag = 'internal scratch']
  %s0 = inlined_call_operand.hbm [shape: f32[2,2048], index: 0, kind: input, shape index: {}]
  %s1 = inlined_call_operand.hbm [shape: bf16[4,4,512,512], index: 1, kind: input, shape index: {}]
  %s2 = inlined_call_operand.hbm [shape: f32[4,4,1,512], index: 2, kind: input, shape index: {}]
  %s3 = inlined_call_operand.hbm [shape: bf16[4,512,512], index: 3, kind: input, shape index: {}]
  %s4 = inlined_call_operand.hbm [shape: f32[2,2048], index: 4, kind: output, shape index: {}]
  %s5 = sld [smem:[#allocation0]]
  $region65: #{tpu_custom_call.1} parent=0
    _
  %s7 = ssub.s32 1, %s5
  %s8 = scalar_select 0, %s7, %s5
  $region1: #{tpu_custom_call.1} parent=0
    #allocation2 [shape = 'u8[8192]{0}', space=vmem, size = 0x2000, scoped, tag = 'input window, operand 0']
    #allocation3 [shape = 's32[2]{0}', space=sflag, size = 0x8, scoped, tag = 'scoped memory for tpu_custom_call.1']
    #allocation4 [shape = 's32[2]{0}', space=sflag, size = 0x8, scoped, tag = 'scoped memory for tpu_custom_call.1']
    #allocation5 [shape = 'u8[4194304]{0}', space=vmem, size = 0x400000, scoped, tag = 'input window, operand 1']
    #allocation6 [shape = 's32[2]{0}', space=sflag, size = 0x8, scoped, tag = 'scoped memory for tpu_custom_call.1']
    #allocation7 [shape = 'u8[16384]{0}', space=vmem, size = 0x4000, scoped, tag = 'input window, operand 2']
    #allocation8 [shape = 'u8[1048576]{0}', space=vmem, size = 0x100000, scoped, tag = 'input window, operand 3']
    #allocation9 [shape = 's32[2]{0}', space=sflag, size = 0x8, scoped, tag = 'scoped memory for tpu_custom_call.1']
    #allocation10 [shape = 'u8[8192]{0}', space=vmem, size = 0x2000, scoped, tag = 'output window, operand 0']
    %9 = vsyncpa [#allocation3], 0
    %s10 = scalar_lea.sflag [#allocation3], 1
    %11 = vsyncpa %s10, 0
    %12 = vsyncpa [#allocation6], 0
    %s13 = scalar_lea.sflag [#allocation6], 1
    %14 = vsyncpa %s13, 0
    %15 = vsyncpa [#allocation9], 0
    %s16 = scalar_lea.sflag [#allocation9], 1
    %17 = vsyncpa %s16, 0
    %18 = vsyncpa [#allocation4], 0
    %s19 = scalar_lea.sflag [#allocation4], 1
    %20 = vsyncpa %s19, 0
    loop: start=0, step=1, limit=6
    $region2: #{tpu_custom_call.1} parent=1 // loop_pre_header
      _
    $region3: #{tpu_custom_call.1} parent=1 // loop_header
      %s22 = sphi 0, %s26
      %p23 = scmp.ge.s32.totalorder %s22, 6
      %s32 = sphi 0, %s34
      %s35 = sphi 0, %s32
      %s36 = sphi 0, %s35
      %s52 = sphi 0, %s36
      %s58 = sphi 0, %s60
      %s61 = sphi 0, %s58
      %s62 = sphi 0, %s61
      %s78 = sphi 0, %s62
      %s84 = sphi 0, %s86
      %s87 = sphi 0, %s84
      %s88 = sphi 0, %s87
      %s104 = sphi 0, %s88
      %s110 = sphi 0, %s112
      %s113 = sphi 0, %s110
      %s114 = sphi 0, %s113
      %s130 = sphi 0, %s114
      %s136 = sphi 0, %s138
      %s139 = sphi 0, %s136
      %s140 = sphi 0, %s139
      %s156 = sphi 0, %s140
    $region4: #{tpu_custom_call.1} parent=1 // loop_header_branch
      %25 = sbr.rel (%p23) target = $region8
    $region5: #{tpu_custom_call.1} parent=1 // loop_body
      %s27 = ssub.s32 %s22, 1
      %s28 = ssub.s32 %s22, 2
      %s29 = sadd.s32 %s22, 1
      %s30 = ssub.s32 %s22, %s29
      %p31 = scmp.eq.s32.totalorder %s30, 0
      %s33 = sadd.s32 %s32, 1
      %s34 = scalar_select %p31, %s32, %s33
      %p37 = pneg %p31
      %p38 = scmp.eq.s32.totalorder %s22, 3
      %p39 = por %p37, %p38
      %p40 = scmp.ne.s32.totalorder %s32, %s35
      %p41 = scmp.eq.s32.totalorder %s22, 0
      %p42 = por %p40, %p41
      %p43 = scmp.ne.s32.totalorder %s32, %s35
      %p44 = scmp.eq.s32.totalorder %s27, 3
      %p45 = por %p43, %p44
      %p46 = scmp.ne.s32.totalorder %s35, %s36
      %p47 = scmp.eq.s32.totalorder %s27, 0
      %p48 = por %p46, %p47
      %p49 = scmp.ne.s32.totalorder %s35, %s36
      %p50 = scmp.eq.s32.totalorder %s28, 3
      %p51 = por %p49, %p50
      %p53 = scmp.ne.s32.totalorder %s36, %s52
      %p54 = scmp.eq.s32.totalorder %s28, 0
      %p55 = por %p53, %p54
      %s56 = ssub.s32 %s22, %s29
      %p57 = scmp.eq.s32.totalorder %s56, 0
      %s59 = sadd.s32 %s58, 1
      %s60 = scalar_select %p57, %s58, %s59
      %p63 = pneg %p57
      %p64 = scmp.eq.s32.totalorder %s22, 3
      %p65 = por %p63, %p64
      %p66 = scmp.ne.s32.totalorder %s58, %s61
      %p67 = scmp.eq.s32.totalorder %s22, 0
      %p68 = por %p66, %p67
      %p69 = scmp.ne.s32.totalorder %s58, %s61
      %p70 = scmp.eq.s32.totalorder %s27, 3
      %p71 = por %p69, %p70
      %p72 = scmp.ne.s32.totalorder %s61, %s62
      %p73 = scmp.eq.s32.totalorder %s27, 0
      %p74 = por %p72, %p73
      %p75 = scmp.ne.s32.totalorder %s61, %s62
      %p76 = scmp.eq.s32.totalorder %s28, 3
      %p77 = por %p75, %p76
      %p79 = scmp.ne.s32.totalorder %s62, %s78
      %p80 = scmp.eq.s32.totalorder %s28, 0
      %p81 = por %p79, %p80
      %s82 = ssub.s32 %s22, %s29
      %p83 = scmp.eq.s32.totalorder %s82, 0
      %s85 = sadd.s32 %s84, 1
      %s86 = scalar_select %p83, %s84, %s85
      %p89 = pneg %p83
      %p90 = scmp.eq.s32.totalorder %s22, 3
      %p91 = por %p89, %p90
      %p92 = scmp.ne.s32.totalorder %s84, %s87
      %p93 = scmp.eq.s32.totalorder %s22, 0
      %p94 = por %p92, %p93
      %p95 = scmp.ne.s32.totalorder %s84, %s87
      %p96 = scmp.eq.s32.totalorder %s27, 3
      %p97 = por %p95, %p96
      %p98 = scmp.ne.s32.totalorder %s87, %s88
      %p99 = scmp.eq.s32.totalorder %s27, 0
      %p100 = por %p98, %p99
      %p101 = scmp.ne.s32.totalorder %s87, %s88
      %p102 = scmp.eq.s32.totalorder %s28, 3
      %p103 = por %p101, %p102
      %p105 = scmp.ne.s32.totalorder %s88, %s104
      %p106 = scmp.eq.s32.totalorder %s28, 0
      %p107 = por %p105, %p106
      %s108 = ssub.s32 %s22, %s29
      %p109 = scmp.eq.s32.totalorder %s108, 0
      %s111 = sadd.s32 %s110, 1
      %s112 = scalar_select %p109, %s110, %s111
      %p115 = pneg %p109
      %p116 = scmp.eq.s32.totalorder %s22, 3
      %p117 = por %p115, %p116
      %p118 = scmp.ne.s32.totalorder %s110, %s113
      %p119 = scmp.eq.s32.totalorder %s22, 0
      %p120 = por %p118, %p119
      %p121 = scmp.ne.s32.totalorder %s110, %s113
      %p122 = scmp.eq.s32.totalorder %s27, 3
      %p123 = por %p121, %p122
      %p124 = scmp.ne.s32.totalorder %s113, %s114
      %p125 = scmp.eq.s32.totalorder %s27, 0
      %p126 = por %p124, %p125
      %p127 = scmp.ne.s32.totalorder %s113, %s114
      %p128 = scmp.eq.s32.totalorder %s28, 3
      %p129 = por %p127, %p128
      %p131 = scmp.ne.s32.totalorder %s114, %s130
      %p132 = scmp.eq.s32.totalorder %s28, 0
      %p133 = por %p131, %p132
      %s134 = ssub.s32 %s22, %s29
      %p135 = scmp.eq.s32.totalorder %s134, 0
      %s137 = sadd.s32 %s136, 1
      %s138 = scalar_select %p135, %s136, %s137
      %p141 = pneg %p135
      %p142 = scmp.eq.s32.totalorder %s22, 3
      %p143 = por %p141, %p142
      %p144 = scmp.ne.s32.totalorder %s136, %s139
      %p145 = scmp.eq.s32.totalorder %s22, 0
      %p146 = por %p144, %p145
      %p147 = scmp.ne.s32.totalorder %s136, %s139
      %p148 = scmp.eq.s32.totalorder %s27, 3
      %p149 = por %p147, %p148
      %p150 = scmp.ne.s32.totalorder %s139, %s140
      %p151 = scmp.eq.s32.totalorder %s27, 0
      %p152 = por %p150, %p151
      %p153 = scmp.ne.s32.totalorder %s139, %s140
      %p154 = scmp.eq.s32.totalorder %s28, 3
      %p155 = por %p153, %p154
      %p157 = scmp.ne.s32.totalorder %s140, %s156
      %p158 = scmp.eq.s32.totalorder %s28, 0
      %p159 = por %p157, %p158
      %p160 = scmp.le.s32.totalorder 1, %s22
      %p161 = scmp.lt.s32.totalorder %s22, 5
      %p162 = pnand %p160, %p161
      %p163 = pneg %p162
      // Predicated region
      $region9: #{tpu_custom_call.1} parent=5 // pred_check
        _
      $region10: #{tpu_custom_call.1} parent=5 // pred_check_branch
        %165 = sbr.rel (%p162) target = $region12
      $region11: #{tpu_custom_call.1} parent=5 // pred_region
        %s166 = ssub.s32 %s22, 1
      $region12: #{tpu_custom_call.1} parent=5 // pred_fallthru
        _
      %p167 = scmp.lt.s32.totalorder %s22, 4
      // Predicated region
      $region13: #{tpu_custom_call.1} parent=5 // pred_check
        %p168 = pneg %p167
      $region14: #{tpu_custom_call.1} parent=5 // pred_check_branch
        %170 = sbr.rel (%p168) target = $region16
      $region15: #{tpu_custom_call.1} parent=5 // pred_region
        // Predicated region
        $region17: #{tpu_custom_call.1} parent=15 // pred_check
          %p171 = pneg %p42
        $region18: #{tpu_custom_call.1} parent=15 // pred_check_branch
          %173 = sbr.rel (%p171) target = $region20
        $region19: #{tpu_custom_call.1} parent=15 // pred_region
          %s174 = sand.u32 %s32, 1
          %s175 = scalar_lea.sflag [#allocation3], %s174
          %s176 = sand.u32 %s32, 1
          %s177 = smul.addr %s176, 8
          %s178 = scalar_lea.vmem [#allocation2], %s177
          %s179 = smul.u32 4, %s22
          %s181 = ssub.s32 128, 128
          %182 = vsyncadd %s175, %s181
          %s183 = smul.addr %s179, 32
          %s184 = scalar_lea.hbm %s0, %s183
          %s186 = sshll.u32 %s178, 4
          %s187 = int_to_ptr.vmem [resolvable:$true] %s186
          %189 = dma.hbm_to_vmem [thread:$0]  %s184, 128, %s187, %s175
        $region20: #{tpu_custom_call.1} parent=15 // pred_fallthru
          _
        // Predicated region
        $region21: #{tpu_custom_call.1} parent=15 // pred_check
          %p190 = pneg %p68
        $region22: #{tpu_custom_call.1} parent=15 // pred_check_branch
          %192 = sbr.rel (%p190) target = $region24
        $region23: #{tpu_custom_call.1} parent=15 // pred_region
          %s193 = sand.u32 %s22, 1
          %s194 = scalar_lea.sflag [#allocation6], %s193
          %s195 = sand.u32 %s58, 1
          %s196 = smul.addr %s195, 4096
          %s197 = scalar_lea.vmem [#allocation5], %s196
          %s199 = ssub.s32 65536, 65536
          %200 = vsyncadd %s194, %s199
          %s201 = smul.addr %s22, 1024
          %s202 = smul.addr %s201, 64
          %s203 = scalar_lea.hbm %s1, %s202
          %s204 = sshll.u32 %s197, 4
          %s205 = int_to_ptr.vmem [resolvable:$true] %s204
          %210 = dma.hbm_to_vmem [thread:$0]  %s203, 65536, %s205, %s194, 256, 256, 16
        $region24: #{tpu_custom_call.1} parent=15 // pred_fallthru
          _
        // Predicated region
        $region25: #{tpu_custom_call.1} parent=15 // pred_check
          %p211 = pneg %p94
        $region26: #{tpu_custom_call.1} parent=15 // pred_check_branch
          %213 = sbr.rel (%p211) target = $region28
        $region27: #{tpu_custom_call.1} parent=15 // pred_region
          %s214 = sand.u32 %s22, 1
          %s215 = scalar_lea.sflag [#allocation6], %s214
          %s216 = sand.u32 %s84, 1
          %s217 = smul.addr %s216, 16
          %s218 = scalar_lea.vmem [#allocation7], %s217
          %s220 = ssub.s32 256, 256
          %221 = vsyncadd %s215, %s220
          %s222 = smul.addr %s22, 16
          %s223 = smul.addr %s222, 16
          %s224 = scalar_lea.hbm %s2, %s223
          %s225 = sshll.u32 %s218, 4
          %s226 = int_to_ptr.vmem [resolvable:$true] %s225
          %231 = dma.hbm_to_vmem [thread:$0]  %s224, 256, %s226, %s215, 64, 64, 4
        $region28: #{tpu_custom_call.1} parent=15 // pred_fallthru
          _
        // Predicated region
        $region29: #{tpu_custom_call.1} parent=15 // pred_check
          %p232 = pneg %p120
        $region30: #{tpu_custom_call.1} parent=15 // pred_check_branch
          %234 = sbr.rel (%p232) target = $region32
        $region31: #{tpu_custom_call.1} parent=15 // pred_region
          %s235 = sand.u32 %s110, 1
          %s236 = scalar_lea.sflag [#allocation9], %s235
          %s237 = sand.u32 %s110, 1
          %s238 = smul.addr %s237, 1024
          %s239 = scalar_lea.vmem [#allocation8], %s238
          %s241 = ssub.s32 16384, 16384
          %242 = vsyncadd %s236, %s241
          %s243 = smul.addr %s22, 256
          %s244 = smul.addr %s243, 64
          %s245 = scalar_lea.hbm %s3, %s244
          %s246 = sshll.u32 %s239, 4
          %s247 = int_to_ptr.vmem [resolvable:$true] %s246
          %252 = dma.hbm_to_vmem [thread:$0]  %s245, 16384, %s247, %s236, 256, 256, 16
        $region32: #{tpu_custom_call.1} parent=15 // pred_fallthru
          _
      $region16: #{tpu_custom_call.1} parent=5 // pred_fallthru
        _
      %p253 = scmp.le.s32.totalorder 1, %s22
      %p254 = scmp.lt.s32.totalorder %s22, 5
      %p255 = pnand %p253, %p254
      %p256 = pneg %p255
      // Predicated region
      $region33: #{tpu_custom_call.1} parent=5 // pred_check
        _
      $region34: #{tpu_custom_call.1} parent=5 // pred_check_branch
        %258 = sbr.rel (%p255) target = $region36
      $region35: #{tpu_custom_call.1} parent=5 // pred_region
        %s259 = ssub.s32 %s22, 1
        %s260 = sand.u32 %s35, 1
        %s261 = scalar_lea.sflag [#allocation3], %s260
        %s262 = sand.u32 %s35, 1
        %s263 = smul.addr %s262, 8
        %s264 = scalar_lea.vmem [#allocation2], %s263
        // Predicated region
        $region37: #{tpu_custom_call.1} parent=35 // pred_check
          %p265 = pneg %p48
        $region38: #{tpu_custom_call.1} parent=35 // pred_check_branch
          %267 = sbr.rel (%p265) target = $region40
        $region39: #{tpu_custom_call.1} parent=35 // pred_region
          %268 = dma.done %s261, 128
        $region40: #{tpu_custom_call.1} parent=35 // pred_fallthru
          _
        %s269 = sand.u32 %s27, 1
        %s270 = scalar_lea.sflag [#allocation6], %s269
        %s271 = sand.u32 %s61, 1
        %s272 = smul.addr %s271, 4096
        %s273 = scalar_lea.vmem [#allocation5], %s272
        // Predicated region
        $region41: #{tpu_custom_call.1} parent=35 // pred_check
          %p274 = pneg %p74
        $region42: #{tpu_custom_call.1} parent=35 // pred_check_branch
          %276 = sbr.rel (%p274) target = $region44
        $region43: #{tpu_custom_call.1} parent=35 // pred_region
          %277 = dma.done %s270, 65536
        $region44: #{tpu_custom_call.1} parent=35 // pred_fallthru
          _
        %s278 = sand.u32 %s27, 1
        %s279 = scalar_lea.sflag [#allocation6], %s278
        %s280 = sand.u32 %s87, 1
        %s281 = smul.addr %s280, 16
        %s282 = scalar_lea.vmem [#allocation7], %s281
        // Predicated region
        $region45: #{tpu_custom_call.1} parent=35 // pred_check
          %p283 = pneg %p100
        $region46: #{tpu_custom_call.1} parent=35 // pred_check_branch
          %285 = sbr.rel (%p283) target = $region48
        $region47: #{tpu_custom_call.1} parent=35 // pred_region
          %286 = dma.done %s279, 256
        $region48: #{tpu_custom_call.1} parent=35 // pred_fallthru
          _
        %s287 = sand.u32 %s113, 1
        %s288 = scalar_lea.sflag [#allocation9], %s287
        %s289 = sand.u32 %s113, 1
        %s290 = smul.addr %s289, 1024
        %s291 = scalar_lea.vmem [#allocation8], %s290
        // Predicated region
        $region49: #{tpu_custom_call.1} parent=35 // pred_check
          %p292 = pneg %p126
        $region50: #{tpu_custom_call.1} parent=35 // pred_check_branch
          %294 = sbr.rel (%p292) target = $region52
        $region51: #{tpu_custom_call.1} parent=35 // pred_region
          %295 = dma.done %s288, 16384
        $region52: #{tpu_custom_call.1} parent=35 // pred_fallthru
          _
        %s296 = sand.u32 %s35, 1
        %s297 = scalar_lea.sflag [#allocation3], %s296
        %s298 = sand.u32 %s35, 1
        %s299 = smul.addr %s298, 8
        %s300 = scalar_lea.vmem [#allocation2], %s299
        %p301 = pneg %p48
        %p302 = pneg %p45
        %s303 = sand.u32 %s27, 1
        %s304 = scalar_lea.sflag [#allocation6], %s303
        %s305 = sand.u32 %s61, 1
        %s306 = smul.addr %s305, 4096
        %s307 = scalar_lea.vmem [#allocation5], %s306
        %p308 = pneg %p74
        %p309 = pneg %p71
        %s310 = sand.u32 %s27, 1
        %s311 = scalar_lea.sflag [#allocation6], %s310
        %s312 = sand.u32 %s87, 1
        %s313 = smul.addr %s312, 16
        %s314 = scalar_lea.vmem [#allocation7], %s313
        %p315 = pneg %p100
        %p316 = pneg %p97
        %s317 = sand.u32 %s113, 1
        %s318 = scalar_lea.sflag [#allocation9], %s317
        %s319 = sand.u32 %s113, 1
        %s320 = smul.addr %s319, 1024
        %s321 = scalar_lea.vmem [#allocation8], %s320
        %p322 = pneg %p126
        %p323 = pneg %p123
        %p324 = pneg %p152
        %p325 = pneg %p149
        %s326 = sand.u32 %s139, 1
        %s327 = scalar_lea.sflag [#allocation4], %s326
        %s328 = sand.u32 %s139, 1
        %s329 = smul.addr %s328, 8
        %s330 = scalar_lea.vmem [#allocation10], %s329
        %s331 = smul.u32 4, %s27
        %s332 = smul.u32 4, %s27
        %v333 = vld [vmem:[%s264] sm:$0xff]
        %v335 = vcombine.high %v333, %v333
        %v337 = vunpack.c.l.s4 1983009808
        %v338 = vunpack.c.0.s8 %v337
        %v339 = vlaneseq
        %v340 = vshrl.u32 %v339, 7
        %v341 = vsub.s32 %v338, %v340
        %v342 = vrot.slane %v333, %v341
        %v344 = vunpack.c.l.s4 1983009808
        %v345 = vunpack.c.0.s8 %v344
        %v346 = vlaneseq
        %v347 = vshrl.u32 %v346, 7
        %v348 = vsub.s32 %v345, %v347
        %v349 = vrot.slane %v335, %v348
        %v350 = vcombine.high %v342, %v342
        %v351 = vcombine.high %v349, %v349
        %v356 = vpack.c.bf16 %v342, %v342
        %v357 = vpack.c.bf16 %v350, %v350
        %v358 = vpack.c.bf16 %v349, %v349
        %v359 = vpack.c.bf16 %v351, %v351
        %v360 = vld [vmem:[%s273] sm:$0xff]
        %v361 = vld [vmem:[%s273 + $0x8] sm:$0xff]
        %v362 = vld [vmem:[%s273 + $0x10] sm:$0xff]
        %v363 = vld [vmem:[%s273 + $0x18] sm:$0xff]
        %v364 = vld [vmem:[%s273 + $0x20] sm:$0xff]
        %v365 = vld [vmem:[%s273 + $0x28] sm:$0xff]
        %v366 = vld [vmem:[%s273 + $0x30] sm:$0xff]
        %v367 = vld [vmem:[%s273 + $0x38] sm:$0xff]
        %v368 = vld [vmem:[%s273 + $0x40] sm:$0xff]
        %v369 = vld [vmem:[%s273 + $0x48] sm:$0xff]
        %v370 = vld [vmem:[%s273 + $0x50] sm:$0xff]
        %v371 = vld [vmem:[%s273 + $0x58] sm:$0xff]
        %v372 = vld [vmem:[%s273 + $0x60] sm:$0xff]
        %v373 = vld [vmem:[%s273 + $0x68] sm:$0xff]
        %v374 = vld [vmem:[%s273 + $0x70] sm:$0xff]
        %v375 = vld [vmem:[%s273 + $0x78] sm:$0xff]
        %v376 = vld [vmem:[%s273 + $0x80] sm:$0xff]
        %v377 = vld [vmem:[%s273 + $0x88] sm:$0xff]
        %v378 = vld [vmem:[%s273 + $0x90] sm:$0xff]
        %v379 = vld [vmem:[%s273 + $0x98] sm:$0xff]
        %v380 = vld [vmem:[%s273 + $0xa0] sm:$0xff]
        %v381 = vld [vmem:[%s273 + $0xa8] sm:$0xff]
        %v382 = vld [vmem:[%s273 + $0xb0] sm:$0xff]
        %v383 = vld [vmem:[%s273 + $0xb8] sm:$0xff]
        %v384 = vld [vmem:[%s273 + $0xc0] sm:$0xff]
        %v385 = vld [vmem:[%s273 + $0xc8] sm:$0xff]
        %v386 = vld [vmem:[%s273 + $0xd0] sm:$0xff]
        %v387 = vld [vmem:[%s273 + $0xd8] sm:$0xff]
        %v388 = vld [vmem:[%s273 + $0xe0] sm:$0xff]
        %v389 = vld [vmem:[%s273 + $0xe8] sm:$0xff]
        %v390 = vld [vmem:[%s273 + $0xf0] sm:$0xff]
        %v391 = vld [vmem:[%s273 + $0xf8] sm:$0xff]
        %v392 = vld [vmem:[%s273 + $0x100] sm:$0xff]
        %v393 = vld [vmem:[%s273 + $0x108] sm:$0xff]
        %v394 = vld [vmem:[%s273 + $0x110] sm:$0xff]
        %v395 = vld [vmem:[%s273 + $0x118] sm:$0xff]
        %v396 = vld [vmem:[%s273 + $0x120] sm:$0xff]
        %v397 = vld [vmem:[%s273 + $0x128] sm:$0xff]
        %v398 = vld [vmem:[%s273 + $0x130] sm:$0xff]
        %v399 = vld [vmem:[%s273 + $0x138] sm:$0xff]
        %v400 = vld [vmem:[%s273 + $0x140] sm:$0xff]
        %v401 = vld [vmem:[%s273 + $0x148] sm:$0xff]
        %v402 = vld [vmem:[%s273 + $0x150] sm:$0xff]
        %v403 = vld [vmem:[%s273 + $0x158] sm:$0xff]
        %v404 = vld [vmem:[%s273 + $0x160] sm:$0xff]
        %v405 = vld [vmem:[%s273 + $0x168] sm:$0xff]
        %v406 = vld [vmem:[%s273 + $0x170] sm:$0xff]
        %v407 = vld [vmem:[%s273 + $0x178] sm:$0xff]
        %v408 = vld [vmem:[%s273 + $0x180] sm:$0xff]
        %v409 = vld [vmem:[%s273 + $0x188] sm:$0xff]
        %v410 = vld [vmem:[%s273 + $0x190] sm:$0xff]
        %v411 = vld [vmem:[%s273 + $0x198] sm:$0xff]
        %v412 = vld [vmem:[%s273 + $0x1a0] sm:$0xff]
        %v413 = vld [vmem:[%s273 + $0x1a8] sm:$0xff]
        %v414 = vld [vmem:[%s273 + $0x1b0] sm:$0xff]
        %v415 = vld [vmem:[%s273 + $0x1b8] sm:$0xff]
        %v416 = vld [vmem:[%s273 + $0x1c0] sm:$0xff]
        %v417 = vld [vmem:[%s273 + $0x1c8] sm:$0xff]
        %v418 = vld [vmem:[%s273 + $0x1d0] sm:$0xff]
        %v419 = vld [vmem:[%s273 + $0x1d8] sm:$0xff]
        %v420 = vld [vmem:[%s273 + $0x1e0] sm:$0xff]
        %v421 = vld [vmem:[%s273 + $0x1e8] sm:$0xff]
        %v422 = vld [vmem:[%s273 + $0x1f0] sm:$0xff]
        %v423 = vld [vmem:[%s273 + $0x1f8] sm:$0xff]
        %v424 = vld [vmem:[%s273 + $0x200] sm:$0xff]
        %v425 = vld [vmem:[%s273 + $0x208] sm:$0xff]
        %v426 = vld [vmem:[%s273 + $0x210] sm:$0xff]
        %v427 = vld [vmem:[%s273 + $0x218] sm:$0xff]
        %v428 = vld [vmem:[%s273 + $0x220] sm:$0xff]
        %v429 = vld [vmem:[%s273 + $0x228] sm:$0xff]
        %v430 = vld [vmem:[%s273 + $0x230] sm:$0xff]
        %v431 = vld [vmem:[%s273 + $0x238] sm:$0xff]
        %v432 = vld [vmem:[%s273 + $0x240] sm:$0xff]
        %v433 = vld [vmem:[%s273 + $0x248] sm:$0xff]
        %v434 = vld [vmem:[%s273 + $0x250] sm:$0xff]
        %v435 = vld [vmem:[%s273 + $0x258] sm:$0xff]
        %v436 = vld [vmem:[%s273 + $0x260] sm:$0xff]
        %v437 = vld [vmem:[%s273 + $0x268] sm:$0xff]
        %v438 = vld [vmem:[%s273 + $0x270] sm:$0xff]
        %v439 = vld [vmem:[%s273 + $0x278] sm:$0xff]
        %v440 = vld [vmem:[%s273 + $0x280] sm:$0xff]
        %v441 = vld [vmem:[%s273 + $0x288] sm:$0xff]
        %v442 = vld [vmem:[%s273 + $0x290] sm:$0xff]
        %v443 = vld [vmem:[%s273 + $0x298] sm:$0xff]
        %v444 = vld [vmem:[%s273 + $0x2a0] sm:$0xff]
        %v445 = vld [vmem:[%s273 + $0x2a8] sm:$0xff]
        %v446 = vld [vmem:[%s273 + $0x2b0] sm:$0xff]
        %v447 = vld [vmem:[%s273 + $0x2b8] sm:$0xff]
        %v448 = vld [vmem:[%s273 + $0x2c0] sm:$0xff]
        %v449 = vld [vmem:[%s273 + $0x2c8] sm:$0xff]
        %v450 = vld [vmem:[%s273 + $0x2d0] sm:$0xff]
        %v451 = vld [vmem:[%s273 + $0x2d8] sm:$0xff]
        %v452 = vld [vmem:[%s273 + $0x2e0] sm:$0xff]
        %v453 = vld [vmem:[%s273 + $0x2e8] sm:$0xff]
        %v454 = vld [vmem:[%s273 + $0x2f0] sm:$0xff]
        %v455 = vld [vmem:[%s273 + $0x2f8] sm:$0xff]
        %v456 = vld [vmem:[%s273 + $0x300] sm:$0xff]
        %v457 = vld [vmem:[%s273 + $0x308] sm:$0xff]
        %v458 = vld [vmem:[%s273 + $0x310] sm:$0xff]
        %v459 = vld [vmem:[%s273 + $0x318] sm:$0xff]
        %v460 = vld [vmem:[%s273 + $0x320] sm:$0xff]
        %v461 = vld [vmem:[%s273 + $0x328] sm:$0xff]
        %v462 = vld [vmem:[%s273 + $0x330] sm:$0xff]
        %v463 = vld [vmem:[%s273 + $0x338] sm:$0xff]
        %v464 = vld [vmem:[%s273 + $0x340] sm:$0xff]
        %v465 = vld [vmem:[%s273 + $0x348] sm:$0xff]
        %v466 = vld [vmem:[%s273 + $0x350] sm:$0xff]
        %v467 = vld [vmem:[%s273 + $0x358] sm:$0xff]
        %v468 = vld [vmem:[%s273 + $0x360] sm:$0xff]
        %v469 = vld [vmem:[%s273 + $0x368] sm:$0xff]
        %v470 = vld [vmem:[%s273 + $0x370] sm:$0xff]
        %v471 = vld [vmem:[%s273 + $0x378] sm:$0xff]
        %v472 = vld [vmem:[%s273 + $0x380] sm:$0xff]
        %v473 = vld [vmem:[%s273 + $0x388] sm:$0xff]
        %v474 = vld [vmem:[%s273 + $0x390] sm:$0xff]
        %v475 = vld [vmem:[%s273 + $0x398] sm:$0xff]
        %v476 = vld [vmem:[%s273 + $0x3a0] sm:$0xff]
        %v477 = vld [vmem:[%s273 + $0x3a8] sm:$0xff]
        %v478 = vld [vmem:[%s273 + $0x3b0] sm:$0xff]
        %v479 = vld [vmem:[%s273 + $0x3b8] sm:$0xff]
        %v480 = vld [vmem:[%s273 + $0x3c0] sm:$0xff]
        %v481 = vld [vmem:[%s273 + $0x3c8] sm:$0xff]
        %v482 = vld [vmem:[%s273 + $0x3d0] sm:$0xff]
        %v483 = vld [vmem:[%s273 + $0x3d8] sm:$0xff]
        %v484 = vld [vmem:[%s273 + $0x3e0] sm:$0xff]
        %v485 = vld [vmem:[%s273 + $0x3e8] sm:$0xff]
        %v486 = vld [vmem:[%s273 + $0x3f0] sm:$0xff]
        %v487 = vld [vmem:[%s273 + $0x3f8] sm:$0xff]
        %v488 = vld [vmem:[%s282] sm:$0xf]
        %v490 = vlaneseq
        %v491 = vshrl.u32 %v490, 7
        %v492 = vsub.s32 0, %v491
        %v493 = vrot.slane %v488, %v492
        %v494 = vlaneseq
        %v495 = vshrl.u32 %v494, 7
        %v496 = vsub.s32 1, %v495
        %v497 = vrot.slane %v488, %v496
        %v498 = vlaneseq
        %v499 = vshrl.u32 %v498, 7
        %v500 = vsub.s32 2, %v499
        %v501 = vrot.slane %v488, %v500
        %v502 = vlaneseq
        %v503 = vshrl.u32 %v502, 7
        %v504 = vsub.s32 3, %v503
        %v505 = vrot.slane %v488, %v504
        %v638 = vunpack.c.l.b16 %v360
        %v639 = vunpack.c.h.b16 %v360
        %v640 = vunpack.c.l.b16 %v361
        %v641 = vunpack.c.h.b16 %v361
        %v642 = vunpack.c.l.b16 %v362
        %v643 = vunpack.c.h.b16 %v362
        %v644 = vunpack.c.l.b16 %v363
        %v645 = vunpack.c.h.b16 %v363
        %v646 = vunpack.c.l.b16 %v364
        %v647 = vunpack.c.h.b16 %v364
        %v648 = vunpack.c.l.b16 %v365
        %v649 = vunpack.c.h.b16 %v365
        %v650 = vunpack.c.l.b16 %v366
        %v651 = vunpack.c.h.b16 %v366
        %v652 = vunpack.c.l.b16 %v367
        %v653 = vunpack.c.h.b16 %v367
        %v654 = vunpack.c.l.b16 %v368
        %v655 = vunpack.c.h.b16 %v368
        %v656 = vunpack.c.l.b16 %v369
        %v657 = vunpack.c.h.b16 %v369
        %v658 = vunpack.c.l.b16 %v370
        %v659 = vunpack.c.h.b16 %v370
        %v660 = vunpack.c.l.b16 %v371
        %v661 = vunpack.c.h.b16 %v371
        %v662 = vunpack.c.l.b16 %v372
        %v663 = vunpack.c.h.b16 %v372
        %v664 = vunpack.c.l.b16 %v373
        %v665 = vunpack.c.h.b16 %v373
        %v666 = vunpack.c.l.b16 %v374
        %v667 = vunpack.c.h.b16 %v374
        %v668 = vunpack.c.l.b16 %v375
        %v669 = vunpack.c.h.b16 %v375
        %v670 = vunpack.c.l.b16 %v376
        %v671 = vunpack.c.h.b16 %v376
        %v672 = vunpack.c.l.b16 %v377
        %v673 = vunpack.c.h.b16 %v377
        %v674 = vunpack.c.l.b16 %v378
        %v675 = vunpack.c.h.b16 %v378
        %v676 = vunpack.c.l.b16 %v379
        %v677 = vunpack.c.h.b16 %v379
        %v678 = vunpack.c.l.b16 %v380
        %v679 = vunpack.c.h.b16 %v380
        %v680 = vunpack.c.l.b16 %v381
        %v681 = vunpack.c.h.b16 %v381
        %v682 = vunpack.c.l.b16 %v382
        %v683 = vunpack.c.h.b16 %v382
        %v684 = vunpack.c.l.b16 %v383
        %v685 = vunpack.c.h.b16 %v383
        %v686 = vunpack.c.l.b16 %v384
        %v687 = vunpack.c.h.b16 %v384
        %v688 = vunpack.c.l.b16 %v385
        %v689 = vunpack.c.h.b16 %v385
        %v690 = vunpack.c.l.b16 %v386
        %v691 = vunpack.c.h.b16 %v386
        %v692 = vunpack.c.l.b16 %v387
        %v693 = vunpack.c.h.b16 %v387
        %v694 = vunpack.c.l.b16 %v388
        %v695 = vunpack.c.h.b16 %v388
        %v696 = vunpack.c.l.b16 %v389
        %v697 = vunpack.c.h.b16 %v389
        %v698 = vunpack.c.l.b16 %v390
        %v699 = vunpack.c.h.b16 %v390
        %v700 = vunpack.c.l.b16 %v391
        %v701 = vunpack.c.h.b16 %v391
        %v702 = vunpack.c.l.b16 %v392
        %v703 = vunpack.c.h.b16 %v392
        %v704 = vunpack.c.l.b16 %v393
        %v705 = vunpack.c.h.b16 %v393
        %v706 = vunpack.c.l.b16 %v394
        %v707 = vunpack.c.h.b16 %v394
        %v708 = vunpack.c.l.b16 %v395
        %v709 = vunpack.c.h.b16 %v395
        %v710 = vunpack.c.l.b16 %v396
        %v711 = vunpack.c.h.b16 %v396
        %v712 = vunpack.c.l.b16 %v397
        %v713 = vunpack.c.h.b16 %v397
        %v714 = vunpack.c.l.b16 %v398
        %v715 = vunpack.c.h.b16 %v398
        %v716 = vunpack.c.l.b16 %v399
        %v717 = vunpack.c.h.b16 %v399
        %v718 = vunpack.c.l.b16 %v400
        %v719 = vunpack.c.h.b16 %v400
        %v720 = vunpack.c.l.b16 %v401
        %v721 = vunpack.c.h.b16 %v401
        %v722 = vunpack.c.l.b16 %v402
        %v723 = vunpack.c.h.b16 %v402
        %v724 = vunpack.c.l.b16 %v403
        %v725 = vunpack.c.h.b16 %v403
        %v726 = vunpack.c.l.b16 %v404
        %v727 = vunpack.c.h.b16 %v404
        %v728 = vunpack.c.l.b16 %v405
        %v729 = vunpack.c.h.b16 %v405
        %v730 = vunpack.c.l.b16 %v406
        %v731 = vunpack.c.h.b16 %v406
        %v732 = vunpack.c.l.b16 %v407
        %v733 = vunpack.c.h.b16 %v407
        %v734 = vunpack.c.l.b16 %v408
        %v735 = vunpack.c.h.b16 %v408
        %v736 = vunpack.c.l.b16 %v409
        %v737 = vunpack.c.h.b16 %v409
        %v738 = vunpack.c.l.b16 %v410
        %v739 = vunpack.c.h.b16 %v410
        %v740 = vunpack.c.l.b16 %v411
        %v741 = vunpack.c.h.b16 %v411
        %v742 = vunpack.c.l.b16 %v412
        %v743 = vunpack.c.h.b16 %v412
        %v744 = vunpack.c.l.b16 %v413
        %v745 = vunpack.c.h.b16 %v413
        %v746 = vunpack.c.l.b16 %v414
        %v747 = vunpack.c.h.b16 %v414
        %v748 = vunpack.c.l.b16 %v415
        %v749 = vunpack.c.h.b16 %v415
        %v750 = vunpack.c.l.b16 %v416
        %v751 = vunpack.c.h.b16 %v416
        %v752 = vunpack.c.l.b16 %v417
        %v753 = vunpack.c.h.b16 %v417
        %v754 = vunpack.c.l.b16 %v418
        %v755 = vunpack.c.h.b16 %v418
        %v756 = vunpack.c.l.b16 %v419
        %v757 = vunpack.c.h.b16 %v419
        %v758 = vunpack.c.l.b16 %v420
        %v759 = vunpack.c.h.b16 %v420
        %v760 = vunpack.c.l.b16 %v421
        %v761 = vunpack.c.h.b16 %v421
        %v762 = vunpack.c.l.b16 %v422
        %v763 = vunpack.c.h.b16 %v422
        %v764 = vunpack.c.l.b16 %v423
        %v765 = vunpack.c.h.b16 %v423
        %v766 = vunpack.c.l.b16 %v424
        %v767 = vunpack.c.h.b16 %v424
        %v768 = vunpack.c.l.b16 %v425
        %v769 = vunpack.c.h.b16 %v425
        %v770 = vunpack.c.l.b16 %v426
        %v771 = vunpack.c.h.b16 %v426
        %v772 = vunpack.c.l.b16 %v427
        %v773 = vunpack.c.h.b16 %v427
        %v774 = vunpack.c.l.b16 %v428
        %v775 = vunpack.c.h.b16 %v428
        %v776 = vunpack.c.l.b16 %v429
        %v777 = vunpack.c.h.b16 %v429
        %v778 = vunpack.c.l.b16 %v430
        %v779 = vunpack.c.h.b16 %v430
        %v780 = vunpack.c.l.b16 %v431
        %v781 = vunpack.c.h.b16 %v431
        %v782 = vunpack.c.l.b16 %v432
        %v783 = vunpack.c.h.b16 %v432
        %v784 = vunpack.c.l.b16 %v433
        %v785 = vunpack.c.h.b16 %v433
        %v786 = vunpack.c.l.b16 %v434
        %v787 = vunpack.c.h.b16 %v434
        %v788 = vunpack.c.l.b16 %v435
        %v789 = vunpack.c.h.b16 %v435
        %v790 = vunpack.c.l.b16 %v436
        %v791 = vunpack.c.h.b16 %v436
        %v792 = vunpack.c.l.b16 %v437
        %v793 = vunpack.c.h.b16 %v437
        %v794 = vunpack.c.l.b16 %v438
        %v795 = vunpack.c.h.b16 %v438
        %v796 = vunpack.c.l.b16 %v439
        %v797 = vunpack.c.h.b16 %v439
        %v798 = vunpack.c.l.b16 %v440
        %v799 = vunpack.c.h.b16 %v440
        %v800 = vunpack.c.l.b16 %v441
        %v801 = vunpack.c.h.b16 %v441
        %v802 = vunpack.c.l.b16 %v442
        %v803 = vunpack.c.h.b16 %v442
        %v804 = vunpack.c.l.b16 %v443
        %v805 = vunpack.c.h.b16 %v443
        %v806 = vunpack.c.l.b16 %v444
        %v807 = vunpack.c.h.b16 %v444
        %v808 = vunpack.c.l.b16 %v445
        %v809 = vunpack.c.h.b16 %v445
        %v810 = vunpack.c.l.b16 %v446
        %v811 = vunpack.c.h.b16 %v446
        %v812 = vunpack.c.l.b16 %v447
        %v813 = vunpack.c.h.b16 %v447
        %v814 = vunpack.c.l.b16 %v448
        %v815 = vunpack.c.h.b16 %v448
        %v816 = vunpack.c.l.b16 %v449
        %v817 = vunpack.c.h.b16 %v449
        %v818 = vunpack.c.l.b16 %v450
        %v819 = vunpack.c.h.b16 %v450
        %v820 = vunpack.c.l.b16 %v451
        %v821 = vunpack.c.h.b16 %v451
        %v822 = vunpack.c.l.b16 %v452
        %v823 = vunpack.c.h.b16 %v452
        %v824 = vunpack.c.l.b16 %v453
        %v825 = vunpack.c.h.b16 %v453
        %v826 = vunpack.c.l.b16 %v454
        %v827 = vunpack.c.h.b16 %v454
        %v828 = vunpack.c.l.b16 %v455
        %v829 = vunpack.c.h.b16 %v455
        %v830 = vunpack.c.l.b16 %v456
        %v831 = vunpack.c.h.b16 %v456
        %v832 = vunpack.c.l.b16 %v457
        %v833 = vunpack.c.h.b16 %v457
        %v834 = vunpack.c.l.b16 %v458
        %v835 = vunpack.c.h.b16 %v458
        %v836 = vunpack.c.l.b16 %v459
        %v837 = vunpack.c.h.b16 %v459
        %v838 = vunpack.c.l.b16 %v460
        %v839 = vunpack.c.h.b16 %v460
        %v840 = vunpack.c.l.b16 %v461
        %v841 = vunpack.c.h.b16 %v461
        %v842 = vunpack.c.l.b16 %v462
        %v843 = vunpack.c.h.b16 %v462
        %v844 = vunpack.c.l.b16 %v463
        %v845 = vunpack.c.h.b16 %v463
        %v846 = vunpack.c.l.b16 %v464
        %v847 = vunpack.c.h.b16 %v464
        %v848 = vunpack.c.l.b16 %v465
        %v849 = vunpack.c.h.b16 %v465
        %v850 = vunpack.c.l.b16 %v466
        %v851 = vunpack.c.h.b16 %v466
        %v852 = vunpack.c.l.b16 %v467
        %v853 = vunpack.c.h.b16 %v467
        %v854 = vunpack.c.l.b16 %v468
        %v855 = vunpack.c.h.b16 %v468
        %v856 = vunpack.c.l.b16 %v469
        %v857 = vunpack.c.h.b16 %v469
        %v858 = vunpack.c.l.b16 %v470
        %v859 = vunpack.c.h.b16 %v470
        %v860 = vunpack.c.l.b16 %v471
        %v861 = vunpack.c.h.b16 %v471
        %v862 = vunpack.c.l.b16 %v472
        %v863 = vunpack.c.h.b16 %v472
        %v864 = vunpack.c.l.b16 %v473
        %v865 = vunpack.c.h.b16 %v473
        %v866 = vunpack.c.l.b16 %v474
        %v867 = vunpack.c.h.b16 %v474
        %v868 = vunpack.c.l.b16 %v475
        %v869 = vunpack.c.h.b16 %v475
        %v870 = vunpack.c.l.b16 %v476
        %v871 = vunpack.c.h.b16 %v476
        %v872 = vunpack.c.l.b16 %v477
        %v873 = vunpack.c.h.b16 %v477
        %v874 = vunpack.c.l.b16 %v478
        %v875 = vunpack.c.h.b16 %v478
        %v876 = vunpack.c.l.b16 %v479
        %v877 = vunpack.c.h.b16 %v479
        %v878 = vunpack.c.l.b16 %v480
        %v879 = vunpack.c.h.b16 %v480
        %v880 = vunpack.c.l.b16 %v481
        %v881 = vunpack.c.h.b16 %v481
        %v882 = vunpack.c.l.b16 %v482
        %v883 = vunpack.c.h.b16 %v482
        %v884 = vunpack.c.l.b16 %v483
        %v885 = vunpack.c.h.b16 %v483
        %v886 = vunpack.c.l.b16 %v484
        %v887 = vunpack.c.h.b16 %v484
        %v888 = vunpack.c.l.b16 %v485
        %v889 = vunpack.c.h.b16 %v485
        %v890 = vunpack.c.l.b16 %v486
        %v891 = vunpack.c.h.b16 %v486
        %v892 = vunpack.c.l.b16 %v487
        %v893 = vunpack.c.h.b16 %v487
        %v894 = vpack.c.b16 %v642, %v638
        %v895 = vpack.c.b16 %v643, %v639
        %v896 = vpack.c.b16 %v644, %v640
        %v897 = vpack.c.b16 %v645, %v641
        %v898 = vpack.c.b16 %v650, %v646
        %v899 = vpack.c.b16 %v651, %v647
        %v900 = vpack.c.b16 %v652, %v648
        %v901 = vpack.c.b16 %v653, %v649
        %v902 = vpack.c.b16 %v658, %v654
        %v903 = vpack.c.b16 %v659, %v655
        %v904 = vpack.c.b16 %v660, %v656
        %v905 = vpack.c.b16 %v661, %v657
        %v906 = vpack.c.b16 %v666, %v662
        %v907 = vpack.c.b16 %v667, %v663
        %v908 = vpack.c.b16 %v668, %v664
        %v909 = vpack.c.b16 %v669, %v665
        %v910 = vpack.c.b16 %v674, %v670
        %v911 = vpack.c.b16 %v675, %v671
        %v912 = vpack.c.b16 %v676, %v672
        %v913 = vpack.c.b16 %v677, %v673
        %v914 = vpack.c.b16 %v682, %v678
        %v915 = vpack.c.b16 %v683, %v679
        %v916 = vpack.c.b16 %v684, %v680
        %v917 = vpack.c.b16 %v685, %v681
        %v918 = vpack.c.b16 %v690, %v686
        %v919 = vpack.c.b16 %v691, %v687
        %v920 = vpack.c.b16 %v692, %v688
        %v921 = vpack.c.b16 %v693, %v689
        %v922 = vpack.c.b16 %v698, %v694
        %v923 = vpack.c.b16 %v699, %v695
        %v924 = vpack.c.b16 %v700, %v696
        %v925 = vpack.c.b16 %v701, %v697
        %v926 = vpack.c.b16 %v706, %v702
        %v927 = vpack.c.b16 %v707, %v703
        %v928 = vpack.c.b16 %v708, %v704
        %v929 = vpack.c.b16 %v709, %v705
        %v930 = vpack.c.b16 %v714, %v710
        %v931 = vpack.c.b16 %v715, %v711
        %v932 = vpack.c.b16 %v716, %v712
        %v933 = vpack.c.b16 %v717, %v713
        %v934 = vpack.c.b16 %v722, %v718
        %v935 = vpack.c.b16 %v723, %v719
        %v936 = vpack.c.b16 %v724, %v720
        %v937 = vpack.c.b16 %v725, %v721
        %v938 = vpack.c.b16 %v730, %v726
        %v939 = vpack.c.b16 %v731, %v727
        %v940 = vpack.c.b16 %v732, %v728
        %v941 = vpack.c.b16 %v733, %v729
        %v942 = vpack.c.b16 %v738, %v734
        %v943 = vpack.c.b16 %v739, %v735
        %v944 = vpack.c.b16 %v740, %v736
        %v945 = vpack.c.b16 %v741, %v737
        %v946 = vpack.c.b16 %v746, %v742
        %v947 = vpack.c.b16 %v747, %v743
        %v948 = vpack.c.b16 %v748, %v744
        %v949 = vpack.c.b16 %v749, %v745
        %v950 = vpack.c.b16 %v754, %v750
        %v951 = vpack.c.b16 %v755, %v751
        %v952 = vpack.c.b16 %v756, %v752
        %v953 = vpack.c.b16 %v757, %v753
        %v954 = vpack.c.b16 %v762, %v758
        %v955 = vpack.c.b16 %v763, %v759
        %v956 = vpack.c.b16 %v764, %v760
        %v957 = vpack.c.b16 %v765, %v761
        %v958 = vpack.c.b16 %v770, %v766
        %v959 = vpack.c.b16 %v771, %v767
        %v960 = vpack.c.b16 %v772, %v768
        %v961 = vpack.c.b16 %v773, %v769
        %v962 = vpack.c.b16 %v778, %v774
        %v963 = vpack.c.b16 %v779, %v775
        %v964 = vpack.c.b16 %v780, %v776
        %v965 = vpack.c.b16 %v781, %v777
        %v966 = vpack.c.b16 %v786, %v782
        %v967 = vpack.c.b16 %v787, %v783
        %v968 = vpack.c.b16 %v788, %v784
        %v969 = vpack.c.b16 %v789, %v785
        %v970 = vpack.c.b16 %v794, %v790
        %v971 = vpack.c.b16 %v795, %v791
        %v972 = vpack.c.b16 %v796, %v792
        %v973 = vpack.c.b16 %v797, %v793
        %v974 = vpack.c.b16 %v802, %v798
        %v975 = vpack.c.b16 %v803, %v799
        %v976 = vpack.c.b16 %v804, %v800
        %v977 = vpack.c.b16 %v805, %v801
        %v978 = vpack.c.b16 %v810, %v806
        %v979 = vpack.c.b16 %v811, %v807
        %v980 = vpack.c.b16 %v812, %v808
        %v981 = vpack.c.b16 %v813, %v809
        %v982 = vpack.c.b16 %v818, %v814
        %v983 = vpack.c.b16 %v819, %v815
        %v984 = vpack.c.b16 %v820, %v816
        %v985 = vpack.c.b16 %v821, %v817
        %v986 = vpack.c.b16 %v826, %v822
        %v987 = vpack.c.b16 %v827, %v823
        %v988 = vpack.c.b16 %v828, %v824
        %v989 = vpack.c.b16 %v829, %v825
        %v990 = vpack.c.b16 %v834, %v830
        %v991 = vpack.c.b16 %v835, %v831
        %v992 = vpack.c.b16 %v836, %v832
        %v993 = vpack.c.b16 %v837, %v833
        %v994 = vpack.c.b16 %v842, %v838
        %v995 = vpack.c.b16 %v843, %v839
        %v996 = vpack.c.b16 %v844, %v840
        %v997 = vpack.c.b16 %v845, %v841
        %v998 = vpack.c.b16 %v850, %v846
        %v999 = vpack.c.b16 %v851, %v847
        %v1000 = vpack.c.b16 %v852, %v848
        %v1001 = vpack.c.b16 %v853, %v849
        %v1002 = vpack.c.b16 %v858, %v854
        %v1003 = vpack.c.b16 %v859, %v855
        %v1004 = vpack.c.b16 %v860, %v856
        %v1005 = vpack.c.b16 %v861, %v857
        %v1006 = vpack.c.b16 %v866, %v862
        %v1007 = vpack.c.b16 %v867, %v863
        %v1008 = vpack.c.b16 %v868, %v864
        %v1009 = vpack.c.b16 %v869, %v865
        %v1010 = vpack.c.b16 %v874, %v870
        %v1011 = vpack.c.b16 %v875, %v871
        %v1012 = vpack.c.b16 %v876, %v872
        %v1013 = vpack.c.b16 %v877, %v873
        %v1014 = vpack.c.b16 %v882, %v878
        %v1015 = vpack.c.b16 %v883, %v879
        %v1016 = vpack.c.b16 %v884, %v880
        %v1017 = vpack.c.b16 %v885, %v881
        %v1018 = vpack.c.b16 %v890, %v886
        %v1019 = vpack.c.b16 %v891, %v887
        %v1020 = vpack.c.b16 %v892, %v888
        %v1021 = vpack.c.b16 %v893, %v889
        %1150 = vmatprep.subr.bf16.mxu0 %v895
        %1151 = vmatpush1.bf16.msra.mxu0 %v894
        %1152 = vmatprep.subr.bf16.mxu0 %v899
        %1153 = vmatpush1.bf16.msra.mxu0 %v898
        %1154 = vmatprep.subr.bf16.mxu0 %v903
        %1155 = vmatpush1.bf16.msra.mxu0 %v902
        %1156 = vmatprep.subr.bf16.mxu0 %v907
        %1157 = vmatpush1.bf16.msra.mxu0 %v906
        %1158 = vmatprep.subr.bf16.mxu0 %v911
        %1159 = vmatpush1.bf16.msra.mxu0 %v910
        %1160 = vmatprep.subr.bf16.mxu0 %v915
        %1161 = vmatpush1.bf16.msra.mxu0 %v914
        %1162 = vmatprep.subr.bf16.mxu0 %v919
        %1163 = vmatpush1.bf16.msra.mxu0 %v918
        %1164 = vmatprep.subr.bf16.mxu0 %v923
        %1165 = vmatpush1.bf16.msra.mxu0 %v922
        %1166 = vmatprep.subr.bf16.mxu0 %v927
        %1167 = vmatpush1.bf16.msra.mxu0 %v926
        %1168 = vmatprep.subr.bf16.mxu0 %v931
        %1169 = vmatpush1.bf16.msra.mxu0 %v930
        %1170 = vmatprep.subr.bf16.mxu0 %v935
        %1171 = vmatpush1.bf16.msra.mxu0 %v934
        %1172 = vmatprep.subr.bf16.mxu0 %v939
        %1173 = vmatpush1.bf16.msra.mxu0 %v938
        %1174 = vmatprep.subr.bf16.mxu0 %v943
        %1175 = vmatpush1.bf16.msra.mxu0 %v942
        %1176 = vmatprep.subr.bf16.mxu0 %v947
        %1177 = vmatpush1.bf16.msra.mxu0 %v946
        %1178 = vmatprep.subr.bf16.mxu0 %v951
        %1179 = vmatpush1.bf16.msra.mxu0 %v950
        %1180 = vmatprep.subr.bf16.mxu0 %v955
        %1181 = vmatpush1.bf16.msra.mxu0 %v954
        %1182 = vmatprep.mubr.bf16.mxu0 %v357
        %1183 = vmatmul.mubr.bf16.gmra.mrb[0].mxu0 %v356
        %v1184 = vpop.f32.mrb[0].mxu0
        %v1185 = vadd.f32 %v493, %v1184
        %v1186 = vpop.f32.mrb[0].mxu0
        %v1187 = vadd.f32 %v497, %v1186
        %v1188 = vpop.f32.mrb[0].mxu0
        %v1189 = vpop.f32.mrb[0].mxu0
        %1190 = vdwg.mxu0
        %1191 = vmatprep.subr.bf16.mxu0 %v959
        %1192 = vmatpush1.bf16.msra.mxu0 %v958
        %1193 = vmatprep.subr.bf16.mxu0 %v963
        %1194 = vmatpush1.bf16.msra.mxu0 %v962
        %1195 = vmatprep.subr.bf16.mxu0 %v967
        %1196 = vmatpush1.bf16.msra.mxu0 %v966
        %1197 = vmatprep.subr.bf16.mxu0 %v971
        %1198 = vmatpush1.bf16.msra.mxu0 %v970
        %1199 = vmatprep.subr.bf16.mxu0 %v975
        %1200 = vmatpush1.bf16.msra.mxu0 %v974
        %1201 = vmatprep.subr.bf16.mxu0 %v979
        %1202 = vmatpush1.bf16.msra.mxu0 %v978
        %1203 = vmatprep.subr.bf16.mxu0 %v983
        %1204 = vmatpush1.bf16.msra.mxu0 %v982
        %1205 = vmatprep.subr.bf16.mxu0 %v987
        %1206 = vmatpush1.bf16.msra.mxu0 %v986
        %1207 = vmatprep.subr.bf16.mxu0 %v991
        %1208 = vmatpush1.bf16.msra.mxu0 %v990
        %1209 = vmatprep.subr.bf16.mxu0 %v995
        %1210 = vmatpush1.bf16.msra.mxu0 %v994
        %1211 = vmatprep.subr.bf16.mxu0 %v999
        %1212 = vmatpush1.bf16.msra.mxu0 %v998
        %1213 = vmatprep.subr.bf16.mxu0 %v1003
        %1214 = vmatpush1.bf16.msra.mxu0 %v1002
        %1215 = vmatprep.subr.bf16.mxu0 %v1007
        %1216 = vmatpush1.bf16.msra.mxu0 %v1006
        %1217 = vmatprep.subr.bf16.mxu0 %v1011
        %1218 = vmatpush1.bf16.msra.mxu0 %v1010
        %1219 = vmatprep.subr.bf16.mxu0 %v1015
        %1220 = vmatpush1.bf16.msra.mxu0 %v1014
        %1221 = vmatprep.subr.bf16.mxu0 %v1019
        %1222 = vmatpush1.bf16.msra.mxu0 %v1018
        %1223 = vmatprep.mubr.bf16.mxu0 %v359
        %1224 = vmatmul.mubr.bf16.gmra.mrb[0].mxu0 %v358
        %v1225 = vpop.f32.mrb[0].mxu0
        %v1226 = vadd.f32 %v1185, %v1225
        %v1227 = vpop.f32.mrb[0].mxu0
        %v1228 = vadd.f32 %v1187, %v1227
        %v1229 = vpop.f32.mrb[0].mxu0
        %v1230 = vpop.f32.mrb[0].mxu0
        %1231 = vdwg.mxu0
        %1232 = vmatprep.subr.bf16.mxu0 %v897
        %1233 = vmatpush1.bf16.msra.mxu0 %v896
        %1234 = vmatprep.subr.bf16.mxu0 %v901
        %1235 = vmatpush1.bf16.msra.mxu0 %v900
        %1236 = vmatprep.subr.bf16.mxu0 %v905
        %1237 = vmatpush1.bf16.msra.mxu0 %v904
        %1238 = vmatprep.subr.bf16.mxu0 %v909
        %1239 = vmatpush1.bf16.msra.mxu0 %v908
        %1240 = vmatprep.subr.bf16.mxu0 %v913
        %1241 = vmatpush1.bf16.msra.mxu0 %v912
        %1242 = vmatprep.subr.bf16.mxu0 %v917
        %1243 = vmatpush1.bf16.msra.mxu0 %v916
        %1244 = vmatprep.subr.bf16.mxu0 %v921
        %1245 = vmatpush1.bf16.msra.mxu0 %v920
        %1246 = vmatprep.subr.bf16.mxu0 %v925
        %1247 = vmatpush1.bf16.msra.mxu0 %v924
        %1248 = vmatprep.subr.bf16.mxu0 %v929
        %1249 = vmatpush1.bf16.msra.mxu0 %v928
        %1250 = vmatprep.subr.bf16.mxu0 %v933
        %1251 = vmatpush1.bf16.msra.mxu0 %v932
        %1252 = vmatprep.subr.bf16.mxu0 %v937
        %1253 = vmatpush1.bf16.msra.mxu0 %v936
        %1254 = vmatprep.subr.bf16.mxu0 %v941
        %1255 = vmatpush1.bf16.msra.mxu0 %v940
        %1256 = vmatprep.subr.bf16.mxu0 %v945
        %1257 = vmatpush1.bf16.msra.mxu0 %v944
        %1258 = vmatprep.subr.bf16.mxu0 %v949
        %1259 = vmatpush1.bf16.msra.mxu0 %v948
        %1260 = vmatprep.subr.bf16.mxu0 %v953
        %1261 = vmatpush1.bf16.msra.mxu0 %v952
        %1262 = vmatprep.subr.bf16.mxu0 %v957
        %1263 = vmatpush1.bf16.msra.mxu0 %v956
        %1264 = vmatprep.mubr.bf16.mxu0 %v357
        %1265 = vmatmul.mubr.bf16.gmra.mrb[0].mxu0 %v356
        %v1266 = vpop.f32.mrb[0].mxu0
        %v1267 = vadd.f32 %v501, %v1266
        %v1268 = vpop.f32.mrb[0].mxu0
        %v1269 = vadd.f32 %v505, %v1268
        %v1270 = vpop.f32.mrb[0].mxu0
        %v1271 = vpop.f32.mrb[0].mxu0
        %1272 = vdwg.mxu0
        %1273 = vmatprep.subr.bf16.mxu0 %v961
        %1274 = vmatpush1.bf16.msra.mxu0 %v960
        %1275 = vmatprep.subr.bf16.mxu0 %v965
        %1276 = vmatpush1.bf16.msra.mxu0 %v964
        %1277 = vmatprep.subr.bf16.mxu0 %v969
        %1278 = vmatpush1.bf16.msra.mxu0 %v968
        %1279 = vmatprep.subr.bf16.mxu0 %v973
        %1280 = vmatpush1.bf16.msra.mxu0 %v972
        %1281 = vmatprep.subr.bf16.mxu0 %v977
        %1282 = vmatpush1.bf16.msra.mxu0 %v976
        %1283 = vmatprep.subr.bf16.mxu0 %v981
        %1284 = vmatpush1.bf16.msra.mxu0 %v980
        %1285 = vmatprep.subr.bf16.mxu0 %v985
        %1286 = vmatpush1.bf16.msra.mxu0 %v984
        %1287 = vmatprep.subr.bf16.mxu0 %v989
        %1288 = vmatpush1.bf16.msra.mxu0 %v988
        %1289 = vmatprep.subr.bf16.mxu0 %v993
        %1290 = vmatpush1.bf16.msra.mxu0 %v992
        %1291 = vmatprep.subr.bf16.mxu0 %v997
        %1292 = vmatpush1.bf16.msra.mxu0 %v996
        %1293 = vmatprep.subr.bf16.mxu0 %v1001
        %1294 = vmatpush1.bf16.msra.mxu0 %v1000
        %1295 = vmatprep.subr.bf16.mxu0 %v1005
        %1296 = vmatpush1.bf16.msra.mxu0 %v1004
        %1297 = vmatprep.subr.bf16.mxu0 %v1009
        %1298 = vmatpush1.bf16.msra.mxu0 %v1008
        %1299 = vmatprep.subr.bf16.mxu0 %v1013
        %1300 = vmatpush1.bf16.msra.mxu0 %v1012
        %1301 = vmatprep.subr.bf16.mxu0 %v1017
        %1302 = vmatpush1.bf16.msra.mxu0 %v1016
        %1303 = vmatprep.subr.bf16.mxu0 %v1021
        %1304 = vmatpush1.bf16.msra.mxu0 %v1020
        %1305 = vmatprep.mubr.bf16.mxu0 %v359
        %1306 = vmatmul.mubr.bf16.gmra.mrb[0].mxu0 %v358
        %v1307 = vpop.f32.mrb[0].mxu0
        %v1308 = vadd.f32 %v1267, %v1307
        %v1309 = vpop.f32.mrb[0].mxu0
        %v1310 = vadd.f32 %v1269, %v1309
        %v1311 = vpop.f32.mrb[0].mxu0
        %v1312 = vpop.f32.mrb[0].mxu0
        %1313 = vdwg.mxu0
        %vm1314 = vcmp.ge.f32.partialorder %v1226, 0.0
        %vm1315 = vcmp.ge.f32.partialorder %v1228, 0.0
        %vm1316 = vcmp.ge.f32.partialorder %v1308, 0.0
        %vm1317 = vcmp.ge.f32.partialorder %v1310, 0.0
        %v1318 = vmul.f32 %v1226, 0.2
        %v1319 = vmul.f32 %v1228, 0.2
        %v1320 = vmul.f32 %v1308, 0.2
        %v1321 = vmul.f32 %v1310, 0.2
        %v1322 = vsel %vm1314, %v1226, %v1318
        %v1323 = vsel %vm1315, %v1228, %v1319
        %v1324 = vsel %vm1316, %v1308, %v1320
        %v1325 = vsel %vm1317, %v1310, %v1321
        %v1326 = vpack.c.bf16 %v1322, %v1322
        %v1327 = vpack.c.bf16 %v1323, %v1323
        %v1328 = vpack.c.bf16 %v1324, %v1324
        %v1329 = vpack.c.bf16 %v1325, %v1325
        %s1330 = scalar_lea.vmem %s273, 1024 [#allocation5]
        %v1331 = vld [vmem:[%s1330] sm:$0xff]
        %v1332 = vld [vmem:[%s1330 + $0x8] sm:$0xff]
        %v1333 = vld [vmem:[%s1330 + $0x10] sm:$0xff]
        %v1334 = vld [vmem:[%s1330 + $0x18] sm:$0xff]
        %v1335 = vld [vmem:[%s1330 + $0x20] sm:$0xff]
        %v1336 = vld [vmem:[%s1330 + $0x28] sm:$0xff]
        %v1337 = vld [vmem:[%s1330 + $0x30] sm:$0xff]
        %v1338 = vld [vmem:[%s1330 + $0x38] sm:$0xff]
        %v1339 = vld [vmem:[%s1330 + $0x40] sm:$0xff]
        %v1340 = vld [vmem:[%s1330 + $0x48] sm:$0xff]
        %v1341 = vld [vmem:[%s1330 + $0x50] sm:$0xff]
        %v1342 = vld [vmem:[%s1330 + $0x58] sm:$0xff]
        %v1343 = vld [vmem:[%s1330 + $0x60] sm:$0xff]
        %v1344 = vld [vmem:[%s1330 + $0x68] sm:$0xff]
        %v1345 = vld [vmem:[%s1330 + $0x70] sm:$0xff]
        %v1346 = vld [vmem:[%s1330 + $0x78] sm:$0xff]
        %v1347 = vld [vmem:[%s1330 + $0x80] sm:$0xff]
        %v1348 = vld [vmem:[%s1330 + $0x88] sm:$0xff]
        %v1349 = vld [vmem:[%s1330 + $0x90] sm:$0xff]
        %v1350 = vld [vmem:[%s1330 + $0x98] sm:$0xff]
        %v1351 = vld [vmem:[%s1330 + $0xa0] sm:$0xff]
        %v1352 = vld [vmem:[%s1330 + $0xa8] sm:$0xff]
        %v1353 = vld [vmem:[%s1330 + $0xb0] sm:$0xff]
        %v1354 = vld [vmem:[%s1330 + $0xb8] sm:$0xff]
        %v1355 = vld [vmem:[%s1330 + $0xc0] sm:$0xff]
        %v1356 = vld [vmem:[%s1330 + $0xc8] sm:$0xff]
        %v1357 = vld [vmem:[%s1330 + $0xd0] sm:$0xff]
        %v1358 = vld [vmem:[%s1330 + $0xd8] sm:$0xff]
        %v1359 = vld [vmem:[%s1330 + $0xe0] sm:$0xff]
        %v1360 = vld [vmem:[%s1330 + $0xe8] sm:$0xff]
        %v1361 = vld [vmem:[%s1330 + $0xf0] sm:$0xff]
        %v1362 = vld [vmem:[%s1330 + $0xf8] sm:$0xff]
        %v1363 = vld [vmem:[%s1330 + $0x100] sm:$0xff]
        %v1364 = vld [vmem:[%s1330 + $0x108] sm:$0xff]
        %v1365 = vld [vmem:[%s1330 + $0x110] sm:$0xff]
        %v1366 = vld [vmem:[%s1330 + $0x118] sm:$0xff]
        %v1367 = vld [vmem:[%s1330 + $0x120] sm:$0xff]
        %v1368 = vld [vmem:[%s1330 + $0x128] sm:$0xff]
        %v1369 = vld [vmem:[%s1330 + $0x130] sm:$0xff]
        %v1370 = vld [vmem:[%s1330 + $0x138] sm:$0xff]
        %v1371 = vld [vmem:[%s1330 + $0x140] sm:$0xff]
        %v1372 = vld [vmem:[%s1330 + $0x148] sm:$0xff]
        %v1373 = vld [vmem:[%s1330 + $0x150] sm:$0xff]
        %v1374 = vld [vmem:[%s1330 + $0x158] sm:$0xff]
        %v1375 = vld [vmem:[%s1330 + $0x160] sm:$0xff]
        %v1376 = vld [vmem:[%s1330 + $0x168] sm:$0xff]
        %v1377 = vld [vmem:[%s1330 + $0x170] sm:$0xff]
        %v1378 = vld [vmem:[%s1330 + $0x178] sm:$0xff]
        %v1379 = vld [vmem:[%s1330 + $0x180] sm:$0xff]
        %v1380 = vld [vmem:[%s1330 + $0x188] sm:$0xff]
        %v1381 = vld [vmem:[%s1330 + $0x190] sm:$0xff]
        %v1382 = vld [vmem:[%s1330 + $0x198] sm:$0xff]
        %v1383 = vld [vmem:[%s1330 + $0x1a0] sm:$0xff]
        %v1384 = vld [vmem:[%s1330 + $0x1a8] sm:$0xff]
        %v1385 = vld [vmem:[%s1330 + $0x1b0] sm:$0xff]
        %v1386 = vld [vmem:[%s1330 + $0x1b8] sm:$0xff]
        %v1387 = vld [vmem:[%s1330 + $0x1c0] sm:$0xff]
        %v1388 = vld [vmem:[%s1330 + $0x1c8] sm:$0xff]
        %v1389 = vld [vmem:[%s1330 + $0x1d0] sm:$0xff]
        %v1390 = vld [vmem:[%s1330 + $0x1d8] sm:$0xff]
        %v1391 = vld [vmem:[%s1330 + $0x1e0] sm:$0xff]
        %v1392 = vld [vmem:[%s1330 + $0x1e8] sm:$0xff]
        %v1393 = vld [vmem:[%s1330 + $0x1f0] sm:$0xff]
        %v1394 = vld [vmem:[%s1330 + $0x1f8] sm:$0xff]
        %v1395 = vld [vmem:[%s1330 + $0x200] sm:$0xff]
        %v1396 = vld [vmem:[%s1330 + $0x208] sm:$0xff]
        %v1397 = vld [vmem:[%s1330 + $0x210] sm:$0xff]
        %v1398 = vld [vmem:[%s1330 + $0x218] sm:$0xff]
        %v1399 = vld [vmem:[%s1330 + $0x220] sm:$0xff]
        %v1400 = vld [vmem:[%s1330 + $0x228] sm:$0xff]
        %v1401 = vld [vmem:[%s1330 + $0x230] sm:$0xff]
        %v1402 = vld [vmem:[%s1330 + $0x238] sm:$0xff]
        %v1403 = vld [vmem:[%s1330 + $0x240] sm:$0xff]
        %v1404 = vld [vmem:[%s1330 + $0x248] sm:$0xff]
        %v1405 = vld [vmem:[%s1330 + $0x250] sm:$0xff]
        %v1406 = vld [vmem:[%s1330 + $0x258] sm:$0xff]
        %v1407 = vld [vmem:[%s1330 + $0x260] sm:$0xff]
        %v1408 = vld [vmem:[%s1330 + $0x268] sm:$0xff]
        %v1409 = vld [vmem:[%s1330 + $0x270] sm:$0xff]
        %v1410 = vld [vmem:[%s1330 + $0x278] sm:$0xff]
        %v1411 = vld [vmem:[%s1330 + $0x280] sm:$0xff]
        %v1412 = vld [vmem:[%s1330 + $0x288] sm:$0xff]
        %v1413 = vld [vmem:[%s1330 + $0x290] sm:$0xff]
        %v1414 = vld [vmem:[%s1330 + $0x298] sm:$0xff]
        %v1415 = vld [vmem:[%s1330 + $0x2a0] sm:$0xff]
        %v1416 = vld [vmem:[%s1330 + $0x2a8] sm:$0xff]
        %v1417 = vld [vmem:[%s1330 + $0x2b0] sm:$0xff]
        %v1418 = vld [vmem:[%s1330 + $0x2b8] sm:$0xff]
        %v1419 = vld [vmem:[%s1330 + $0x2c0] sm:$0xff]
        %v1420 = vld [vmem:[%s1330 + $0x2c8] sm:$0xff]
        %v1421 = vld [vmem:[%s1330 + $0x2d0] sm:$0xff]
        %v1422 = vld [vmem:[%s1330 + $0x2d8] sm:$0xff]
        %v1423 = vld [vmem:[%s1330 + $0x2e0] sm:$0xff]
        %v1424 = vld [vmem:[%s1330 + $0x2e8] sm:$0xff]
        %v1425 = vld [vmem:[%s1330 + $0x2f0] sm:$0xff]
        %v1426 = vld [vmem:[%s1330 + $0x2f8] sm:$0xff]
        %v1427 = vld [vmem:[%s1330 + $0x300] sm:$0xff]
        %v1428 = vld [vmem:[%s1330 + $0x308] sm:$0xff]
        %v1429 = vld [vmem:[%s1330 + $0x310] sm:$0xff]
        %v1430 = vld [vmem:[%s1330 + $0x318] sm:$0xff]
        %v1431 = vld [vmem:[%s1330 + $0x320] sm:$0xff]
        %v1432 = vld [vmem:[%s1330 + $0x328] sm:$0xff]
        %v1433 = vld [vmem:[%s1330 + $0x330] sm:$0xff]
        %v1434 = vld [vmem:[%s1330 + $0x338] sm:$0xff]
        %v1435 = vld [vmem:[%s1330 + $0x340] sm:$0xff]
        %v1436 = vld [vmem:[%s1330 + $0x348] sm:$0xff]
        %v1437 = vld [vmem:[%s1330 + $0x350] sm:$0xff]
        %v1438 = vld [vmem:[%s1330 + $0x358] sm:$0xff]
        %v1439 = vld [vmem:[%s1330 + $0x360] sm:$0xff]
        %v1440 = vld [vmem:[%s1330 + $0x368] sm:$0xff]
        %v1441 = vld [vmem:[%s1330 + $0x370] sm:$0xff]
        %v1442 = vld [vmem:[%s1330 + $0x378] sm:$0xff]
        %v1443 = vld [vmem:[%s1330 + $0x380] sm:$0xff]
        %v1444 = vld [vmem:[%s1330 + $0x388] sm:$0xff]
        %v1445 = vld [vmem:[%s1330 + $0x390] sm:$0xff]
        %v1446 = vld [vmem:[%s1330 + $0x398] sm:$0xff]
        %v1447 = vld [vmem:[%s1330 + $0x3a0] sm:$0xff]
        %v1448 = vld [vmem:[%s1330 + $0x3a8] sm:$0xff]
        %v1449 = vld [vmem:[%s1330 + $0x3b0] sm:$0xff]
        %v1450 = vld [vmem:[%s1330 + $0x3b8] sm:$0xff]
        %v1451 = vld [vmem:[%s1330 + $0x3c0] sm:$0xff]
        %v1452 = vld [vmem:[%s1330 + $0x3c8] sm:$0xff]
        %v1453 = vld [vmem:[%s1330 + $0x3d0] sm:$0xff]
        %v1454 = vld [vmem:[%s1330 + $0x3d8] sm:$0xff]
        %v1455 = vld [vmem:[%s1330 + $0x3e0] sm:$0xff]
        %v1456 = vld [vmem:[%s1330 + $0x3e8] sm:$0xff]
        %v1457 = vld [vmem:[%s1330 + $0x3f0] sm:$0xff]
        %v1458 = vld [vmem:[%s1330 + $0x3f8] sm:$0xff]
        %s1459 = scalar_lea.vmem %s282, 4 [#allocation7]
        %v1460 = vld [vmem:[%s1459] sm:$0xf]
        %v1462 = vlaneseq
        %v1463 = vshrl.u32 %v1462, 7
        %v1464 = vsub.s32 0, %v1463
        %v1465 = vrot.slane %v1460, %v1464
        %v1466 = vlaneseq
        %v1467 = vshrl.u32 %v1466, 7
        %v1468 = vsub.s32 1, %v1467
        %v1469 = vrot.slane %v1460, %v1468
        %v1470 = vlaneseq
        %v1471 = vshrl.u32 %v1470, 7
        %v1472 = vsub.s32 2, %v1471
        %v1473 = vrot.slane %v1460, %v1472
        %v1474 = vlaneseq
        %v1475 = vshrl.u32 %v1474, 7
        %v1476 = vsub.s32 3, %v1475
        %v1477 = vrot.slane %v1460, %v1476
        %v1610 = vunpack.c.l.b16 %v1331
        %v1611 = vunpack.c.h.b16 %v1331
        %v1612 = vunpack.c.l.b16 %v1332
        %v1613 = vunpack.c.h.b16 %v1332
        %v1614 = vunpack.c.l.b16 %v1333
        %v1615 = vunpack.c.h.b16 %v1333
        %v1616 = vunpack.c.l.b16 %v1334
        %v1617 = vunpack.c.h.b16 %v1334
        %v1618 = vunpack.c.l.b16 %v1335
        %v1619 = vunpack.c.h.b16 %v1335
        %v1620 = vunpack.c.l.b16 %v1336
        %v1621 = vunpack.c.h.b16 %v1336
        %v1622 = vunpack.c.l.b16 %v1337
        %v1623 = vunpack.c.h.b16 %v1337
        %v1624 = vunpack.c.l.b16 %v1338
        %v1625 = vunpack.c.h.b16 %v1338
        %v1626 = vunpack.c.l.b16 %v1339
        %v1627 = vunpack.c.h.b16 %v1339
        %v1628 = vunpack.c.l.b16 %v1340
        %v1629 = vunpack.c.h.b16 %v1340
        %v1630 = vunpack.c.l.b16 %v1341
        %v1631 = vunpack.c.h.b16 %v1341
        %v1632 = vunpack.c.l.b16 %v1342
        %v1633 = vunpack.c.h.b16 %v1342
        %v1634 = vunpack.c.l.b16 %v1343
        %v1635 = vunpack.c.h.b16 %v1343
        %v1636 = vunpack.c.l.b16 %v1344
        %v1637 = vunpack.c.h.b16 %v1344
        %v1638 = vunpack.c.l.b16 %v1345
        %v1639 = vunpack.c.h.b16 %v1345
        %v1640 = vunpack.c.l.b16 %v1346
        %v1641 = vunpack.c.h.b16 %v1346
        %v1642 = vunpack.c.l.b16 %v1347
        %v1643 = vunpack.c.h.b16 %v1347
        %v1644 = vunpack.c.l.b16 %v1348
        %v1645 = vunpack.c.h.b16 %v1348
        %v1646 = vunpack.c.l.b16 %v1349
        %v1647 = vunpack.c.h.b16 %v1349
        %v1648 = vunpack.c.l.b16 %v1350
        %v1649 = vunpack.c.h.b16 %v1350
        %v1650 = vunpack.c.l.b16 %v1351
        %v1651 = vunpack.c.h.b16 %v1351
        %v1652 = vunpack.c.l.b16 %v1352
        %v1653 = vunpack.c.h.b16 %v1352
        %v1654 = vunpack.c.l.b16 %v1353
        %v1655 = vunpack.c.h.b16 %v1353
        %v1656 = vunpack.c.l.b16 %v1354
        %v1657 = vunpack.c.h.b16 %v1354
        %v1658 = vunpack.c.l.b16 %v1355
        %v1659 = vunpack.c.h.b16 %v1355
        %v1660 = vunpack.c.l.b16 %v1356
        %v1661 = vunpack.c.h.b16 %v1356
        %v1662 = vunpack.c.l.b16 %v1357
        %v1663 = vunpack.c.h.b16 %v1357
        %v1664 = vunpack.c.l.b16 %v1358
        %v1665 = vunpack.c.h.b16 %v1358
        %v1666 = vunpack.c.l.b16 %v1359
        %v1667 = vunpack.c.h.b16 %v1359
        %v1668 = vunpack.c.l.b16 %v1360
        %v1669 = vunpack.c.h.b16 %v1360
        %v1670 = vunpack.c.l.b16 %v1361
        %v1671 = vunpack.c.h.b16 %v1361
        %v1672 = vunpack.c.l.b16 %v1362
        %v1673 = vunpack.c.h.b16 %v1362
        %v1674 = vunpack.c.l.b16 %v1363
        %v1675 = vunpack.c.h.b16 %v1363
        %v1676 = vunpack.c.l.b16 %v1364
        %v1677 = vunpack.c.h.b16 %v1364
        %v1678 = vunpack.c.l.b16 %v1365
        %v1679 = vunpack.c.h.b16 %v1365
        %v1680 = vunpack.c.l.b16 %v1366
        %v1681 = vunpack.c.h.b16 %v1366
        %v1682 = vunpack.c.l.b16 %v1367
        %v1683 = vunpack.c.h.b16 %v1367
        %v1684 = vunpack.c.l.b16 %v1368
        %v1685 = vunpack.c.h.b16 %v1368
        %v1686 = vunpack.c.l.b16 %v1369
        %v1687 = vunpack.c.h.b16 %v1369
        %v1688 = vunpack.c.l.b16 %v1370
        %v1689 = vunpack.c.h.b16 %v1370
        %v1690 = vunpack.c.l.b16 %v1371
        %v1691 = vunpack.c.h.b16 %v1371
        %v1692 = vunpack.c.l.b16 %v1372
        %v1693 = vunpack.c.h.b16 %v1372
        %v1694 = vunpack.c.l.b16 %v1373
        %v1695 = vunpack.c.h.b16 %v1373
        %v1696 = vunpack.c.l.b16 %v1374
        %v1697 = vunpack.c.h.b16 %v1374
        %v1698 = vunpack.c.l.b16 %v1375
        %v1699 = vunpack.c.h.b16 %v1375
        %v1700 = vunpack.c.l.b16 %v1376
        %v1701 = vunpack.c.h.b16 %v1376
        %v1702 = vunpack.c.l.b16 %v1377
        %v1703 = vunpack.c.h.b16 %v1377
        %v1704 = vunpack.c.l.b16 %v1378
        %v1705 = vunpack.c.h.b16 %v1378
        %v1706 = vunpack.c.l.b16 %v1379
        %v1707 = vunpack.c.h.b16 %v1379
        %v1708 = vunpack.c.l.b16 %v1380
        %v1709 = vunpack.c.h.b16 %v1380
        %v1710 = vunpack.c.l.b16 %v1381
        %v1711 = vunpack.c.h.b16 %v1381
        %v1712 = vunpack.c.l.b16 %v1382
        %v1713 = vunpack.c.h.b16 %v1382
        %v1714 = vunpack.c.l.b16 %v1383
        %v1715 = vunpack.c.h.b16 %v1383
        %v1716 = vunpack.c.l.b16 %v1384
        %v1717 = vunpack.c.h.b16 %v1384
        %v1718 = vunpack.c.l.b16 %v1385
        %v1719 = vunpack.c.h.b16 %v1385
        %v1720 = vunpack.c.l.b16 %v1386
        %v1721 = vunpack.c.h.b16 %v1386
        %v1722 = vunpack.c.l.b16 %v1387
        %v1723 = vunpack.c.h.b16 %v1387
        %v1724 = vunpack.c.l.b16 %v1388
        %v1725 = vunpack.c.h.b16 %v1388
        %v1726 = vunpack.c.l.b16 %v1389
        %v1727 = vunpack.c.h.b16 %v1389
        %v1728 = vunpack.c.l.b16 %v1390
        %v1729 = vunpack.c.h.b16 %v1390
        %v1730 = vunpack.c.l.b16 %v1391
        %v1731 = vunpack.c.h.b16 %v1391
        %v1732 = vunpack.c.l.b16 %v1392
        %v1733 = vunpack.c.h.b16 %v1392
        %v1734 = vunpack.c.l.b16 %v1393
        %v1735 = vunpack.c.h.b16 %v1393
        %v1736 = vunpack.c.l.b16 %v1394
        %v1737 = vunpack.c.h.b16 %v1394
        %v1738 = vunpack.c.l.b16 %v1395
        %v1739 = vunpack.c.h.b16 %v1395
        %v1740 = vunpack.c.l.b16 %v1396
        %v1741 = vunpack.c.h.b16 %v1396
        %v1742 = vunpack.c.l.b16 %v1397
        %v1743 = vunpack.c.h.b16 %v1397
        %v1744 = vunpack.c.l.b16 %v1398
        %v1745 = vunpack.c.h.b16 %v1398
        %v1746 = vunpack.c.l.b16 %v1399
        %v1747 = vunpack.c.h.b16 %v1399
        %v1748 = vunpack.c.l.b16 %v1400
        %v1749 = vunpack.c.h.b16 %v1400
        %v1750 = vunpack.c.l.b16 %v1401
        %v1751 = vunpack.c.h.b16 %v1401
        %v1752 = vunpack.c.l.b16 %v1402
        %v1753 = vunpack.c.h.b16 %v1402
        %v1754 = vunpack.c.l.b16 %v1403
        %v1755 = vunpack.c.h.b16 %v1403
        %v1756 = vunpack.c.l.b16 %v1404
        %v1757 = vunpack.c.h.b16 %v1404
        %v1758 = vunpack.c.l.b16 %v1405
        %v1759 = vunpack.c.h.b16 %v1405
        %v1760 = vunpack.c.l.b16 %v1406
        %v1761 = vunpack.c.h.b16 %v1406
        %v1762 = vunpack.c.l.b16 %v1407
        %v1763 = vunpack.c.h.b16 %v1407
        %v1764 = vunpack.c.l.b16 %v1408
        %v1765 = vunpack.c.h.b16 %v1408
        %v1766 = vunpack.c.l.b16 %v1409
        %v1767 = vunpack.c.h.b16 %v1409
        %v1768 = vunpack.c.l.b16 %v1410
        %v1769 = vunpack.c.h.b16 %v1410
        %v1770 = vunpack.c.l.b16 %v1411
        %v1771 = vunpack.c.h.b16 %v1411
        %v1772 = vunpack.c.l.b16 %v1412
        %v1773 = vunpack.c.h.b16 %v1412
        %v1774 = vunpack.c.l.b16 %v1413
        %v1775 = vunpack.c.h.b16 %v1413
        %v1776 = vunpack.c.l.b16 %v1414
        %v1777 = vunpack.c.h.b16 %v1414
        %v1778 = vunpack.c.l.b16 %v1415
        %v1779 = vunpack.c.h.b16 %v1415
        %v1780 = vunpack.c.l.b16 %v1416
        %v1781 = vunpack.c.h.b16 %v1416
        %v1782 = vunpack.c.l.b16 %v1417
        %v1783 = vunpack.c.h.b16 %v1417
        %v1784 = vunpack.c.l.b16 %v1418
        %v1785 = vunpack.c.h.b16 %v1418
        %v1786 = vunpack.c.l.b16 %v1419
        %v1787 = vunpack.c.h.b16 %v1419
        %v1788 = vunpack.c.l.b16 %v1420
        %v1789 = vunpack.c.h.b16 %v1420
        %v1790 = vunpack.c.l.b16 %v1421
        %v1791 = vunpack.c.h.b16 %v1421
        %v1792 = vunpack.c.l.b16 %v1422
        %v1793 = vunpack.c.h.b16 %v1422
        %v1794 = vunpack.c.l.b16 %v1423
        %v1795 = vunpack.c.h.b16 %v1423
        %v1796 = vunpack.c.l.b16 %v1424
        %v1797 = vunpack.c.h.b16 %v1424
        %v1798 = vunpack.c.l.b16 %v1425
        %v1799 = vunpack.c.h.b16 %v1425
        %v1800 = vunpack.c.l.b16 %v1426
        %v1801 = vunpack.c.h.b16 %v1426
        %v1802 = vunpack.c.l.b16 %v1427
        %v1803 = vunpack.c.h.b16 %v1427
        %v1804 = vunpack.c.l.b16 %v1428
        %v1805 = vunpack.c.h.b16 %v1428
        %v1806 = vunpack.c.l.b16 %v1429
        %v1807 = vunpack.c.h.b16 %v1429
        %v1808 = vunpack.c.l.b16 %v1430
        %v1809 = vunpack.c.h.b16 %v1430
        %v1810 = vunpack.c.l.b16 %v1431
        %v1811 = vunpack.c.h.b16 %v1431
        %v1812 = vunpack.c.l.b16 %v1432
        %v1813 = vunpack.c.h.b16 %v1432
        %v1814 = vunpack.c.l.b16 %v1433
        %v1815 = vunpack.c.h.b16 %v1433
        %v1816 = vunpack.c.l.b16 %v1434
        %v1817 = vunpack.c.h.b16 %v1434
        %v1818 = vunpack.c.l.b16 %v1435
        %v1819 = vunpack.c.h.b16 %v1435
        %v1820 = vunpack.c.l.b16 %v1436
        %v1821 = vunpack.c.h.b16 %v1436
        %v1822 = vunpack.c.l.b16 %v1437
        %v1823 = vunpack.c.h.b16 %v1437
        %v1824 = vunpack.c.l.b16 %v1438
        %v1825 = vunpack.c.h.b16 %v1438
        %v1826 = vunpack.c.l.b16 %v1439
        %v1827 = vunpack.c.h.b16 %v1439
        %v1828 = vunpack.c.l.b16 %v1440
        %v1829 = vunpack.c.h.b16 %v1440
        %v1830 = vunpack.c.l.b16 %v1441
        %v1831 = vunpack.c.h.b16 %v1441
        %v1832 = vunpack.c.l.b16 %v1442
        %v1833 = vunpack.c.h.b16 %v1442
        %v1834 = vunpack.c.l.b16 %v1443
        %v1835 = vunpack.c.h.b16 %v1443
        %v1836 = vunpack.c.l.b16 %v1444
        %v1837 = vunpack.c.h.b16 %v1444
        %v1838 = vunpack.c.l.b16 %v1445
        %v1839 = vunpack.c.h.b16 %v1445
        %v1840 = vunpack.c.l.b16 %v1446
        %v1841 = vunpack.c.h.b16 %v1446
        %v1842 = vunpack.c.l.b16 %v1447
        %v1843 = vunpack.c.h.b16 %v1447
        %v1844 = vunpack.c.l.b16 %v1448
        %v1845 = vunpack.c.h.b16 %v1448
        %v1846 = vunpack.c.l.b16 %v1449
        %v1847 = vunpack.c.h.b16 %v1449
        %v1848 = vunpack.c.l.b16 %v1450
        %v1849 = vunpack.c.h.b16 %v1450
        %v1850 = vunpack.c.l.b16 %v1451
        %v1851 = vunpack.c.h.b16 %v1451
        %v1852 = vunpack.c.l.b16 %v1452
        %v1853 = vunpack.c.h.b16 %v1452
        %v1854 = vunpack.c.l.b16 %v1453
        %v1855 = vunpack.c.h.b16 %v1453
        %v1856 = vunpack.c.l.b16 %v1454
        %v1857 = vunpack.c.h.b16 %v1454
        %v1858 = vunpack.c.l.b16 %v1455
        %v1859 = vunpack.c.h.b16 %v1455
        %v1860 = vunpack.c.l.b16 %v1456
        %v1861 = vunpack.c.h.b16 %v1456
        %v1862 = vunpack.c.l.b16 %v1457
        %v1863 = vunpack.c.h.b16 %v1457
        %v1864 = vunpack.c.l.b16 %v1458
        %v1865 = vunpack.c.h.b16 %v1458
        %v1866 = vpack.c.b16 %v1614, %v1610
        %v1867 = vpack.c.b16 %v1615, %v1611
        %v1868 = vpack.c.b16 %v1616, %v1612
        %v1869 = vpack.c.b16 %v1617, %v1613
        %v1870 = vpack.c.b16 %v1622, %v1618
        %v1871 = vpack.c.b16 %v1623, %v1619
        %v1872 = vpack.c.b16 %v1624, %v1620
        %v1873 = vpack.c.b16 %v1625, %v1621
        %v1874 = vpack.c.b16 %v1630, %v1626
        %v1875 = vpack.c.b16 %v1631, %v1627
        %v1876 = vpack.c.b16 %v1632, %v1628
        %v1877 = vpack.c.b16 %v1633, %v1629
        %v1878 = vpack.c.b16 %v1638, %v1634
        %v1879 = vpack.c.b16 %v1639, %v1635
        %v1880 = vpack.c.b16 %v1640, %v1636
        %v1881 = vpack.c.b16 %v1641, %v1637
        %v1882 = vpack.c.b16 %v1646, %v1642
        %v1883 = vpack.c.b16 %v1647, %v1643
        %v1884 = vpack.c.b16 %v1648, %v1644
        %v1885 = vpack.c.b16 %v1649, %v1645
        %v1886 = vpack.c.b16 %v1654, %v1650
        %v1887 = vpack.c.b16 %v1655, %v1651
        %v1888 = vpack.c.b16 %v1656, %v1652
        %v1889 = vpack.c.b16 %v1657, %v1653
        %v1890 = vpack.c.b16 %v1662, %v1658
        %v1891 = vpack.c.b16 %v1663, %v1659
        %v1892 = vpack.c.b16 %v1664, %v1660
        %v1893 = vpack.c.b16 %v1665, %v1661
        %v1894 = vpack.c.b16 %v1670, %v1666
        %v1895 = vpack.c.b16 %v1671, %v1667
        %v1896 = vpack.c.b16 %v1672, %v1668
        %v1897 = vpack.c.b16 %v1673, %v1669
        %v1898 = vpack.c.b16 %v1678, %v1674
        %v1899 = vpack.c.b16 %v1679, %v1675
        %v1900 = vpack.c.b16 %v1680, %v1676
        %v1901 = vpack.c.b16 %v1681, %v1677
        %v1902 = vpack.c.b16 %v1686, %v1682
        %v1903 = vpack.c.b16 %v1687, %v1683
        %v1904 = vpack.c.b16 %v1688, %v1684
        %v1905 = vpack.c.b16 %v1689, %v1685
        %v1906 = vpack.c.b16 %v1694, %v1690
        %v1907 = vpack.c.b16 %v1695, %v1691
        %v1908 = vpack.c.b16 %v1696, %v1692
        %v1909 = vpack.c.b16 %v1697, %v1693
        %v1910 = vpack.c.b16 %v1702, %v1698
        %v1911 = vpack.c.b16 %v1703, %v1699
        %v1912 = vpack.c.b16 %v1704, %v1700
        %v1913 = vpack.c.b16 %v1705, %v1701
        %v1914 = vpack.c.b16 %v1710, %v1706
        %v1915 = vpack.c.b16 %v1711, %v1707
        %v1916 = vpack.c.b16 %v1712, %v1708
        %v1917 = vpack.c.b16 %v1713, %v1709
        %v1918 = vpack.c.b16 %v1718, %v1714
        %v1919 = vpack.c.b16 %v1719, %v1715
        %v1920 = vpack.c.b16 %v1720, %v1716
        %v1921 = vpack.c.b16 %v1721, %v1717
        %v1922 = vpack.c.b16 %v1726, %v1722
        %v1923 = vpack.c.b16 %v1727, %v1723
        %v1924 = vpack.c.b16 %v1728, %v1724
        %v1925 = vpack.c.b16 %v1729, %v1725
        %v1926 = vpack.c.b16 %v1734, %v1730
        %v1927 = vpack.c.b16 %v1735, %v1731
        %v1928 = vpack.c.b16 %v1736, %v1732
        %v1929 = vpack.c.b16 %v1737, %v1733
        %v1930 = vpack.c.b16 %v1742, %v1738
        %v1931 = vpack.c.b16 %v1743, %v1739
        %v1932 = vpack.c.b16 %v1744, %v1740
        %v1933 = vpack.c.b16 %v1745, %v1741
        %v1934 = vpack.c.b16 %v1750, %v1746
        %v1935 = vpack.c.b16 %v1751, %v1747
        %v1936 = vpack.c.b16 %v1752, %v1748
        %v1937 = vpack.c.b16 %v1753, %v1749
        %v1938 = vpack.c.b16 %v1758, %v1754
        %v1939 = vpack.c.b16 %v1759, %v1755
        %v1940 = vpack.c.b16 %v1760, %v1756
        %v1941 = vpack.c.b16 %v1761, %v1757
        %v1942 = vpack.c.b16 %v1766, %v1762
        %v1943 = vpack.c.b16 %v1767, %v1763
        %v1944 = vpack.c.b16 %v1768, %v1764
        %v1945 = vpack.c.b16 %v1769, %v1765
        %v1946 = vpack.c.b16 %v1774, %v1770
        %v1947 = vpack.c.b16 %v1775, %v1771
        %v1948 = vpack.c.b16 %v1776, %v1772
        %v1949 = vpack.c.b16 %v1777, %v1773
        %v1950 = vpack.c.b16 %v1782, %v1778
        %v1951 = vpack.c.b16 %v1783, %v1779
        %v1952 = vpack.c.b16 %v1784, %v1780
        %v1953 = vpack.c.b16 %v1785, %v1781
        %v1954 = vpack.c.b16 %v1790, %v1786
        %v1955 = vpack.c.b16 %v1791, %v1787
        %v1956 = vpack.c.b16 %v1792, %v1788
        %v1957 = vpack.c.b16 %v1793, %v1789
        %v1958 = vpack.c.b16 %v1798, %v1794
        %v1959 = vpack.c.b16 %v1799, %v1795
        %v1960 = vpack.c.b16 %v1800, %v1796
        %v1961 = vpack.c.b16 %v1801, %v1797
        %v1962 = vpack.c.b16 %v1806, %v1802
        %v1963 = vpack.c.b16 %v1807, %v1803
        %v1964 = vpack.c.b16 %v1808, %v1804
        %v1965 = vpack.c.b16 %v1809, %v1805
        %v1966 = vpack.c.b16 %v1814, %v1810
        %v1967 = vpack.c.b16 %v1815, %v1811
        %v1968 = vpack.c.b16 %v1816, %v1812
        %v1969 = vpack.c.b16 %v1817, %v1813
        %v1970 = vpack.c.b16 %v1822, %v1818
        %v1971 = vpack.c.b16 %v1823, %v1819
        %v1972 = vpack.c.b16 %v1824, %v1820
        %v1973 = vpack.c.b16 %v1825, %v1821
        %v1974 = vpack.c.b16 %v1830, %v1826
        %v1975 = vpack.c.b16 %v1831, %v1827
        %v1976 = vpack.c.b16 %v1832, %v1828
        %v1977 = vpack.c.b16 %v1833, %v1829
        %v1978 = vpack.c.b16 %v1838, %v1834
        %v1979 = vpack.c.b16 %v1839, %v1835
        %v1980 = vpack.c.b16 %v1840, %v1836
        %v1981 = vpack.c.b16 %v1841, %v1837
        %v1982 = vpack.c.b16 %v1846, %v1842
        %v1983 = vpack.c.b16 %v1847, %v1843
        %v1984 = vpack.c.b16 %v1848, %v1844
        %v1985 = vpack.c.b16 %v1849, %v1845
        %v1986 = vpack.c.b16 %v1854, %v1850
        %v1987 = vpack.c.b16 %v1855, %v1851
        %v1988 = vpack.c.b16 %v1856, %v1852
        %v1989 = vpack.c.b16 %v1857, %v1853
        %v1990 = vpack.c.b16 %v1862, %v1858
        %v1991 = vpack.c.b16 %v1863, %v1859
        %v1992 = vpack.c.b16 %v1864, %v1860
        %v1993 = vpack.c.b16 %v1865, %v1861
        %2122 = vmatprep.subr.bf16.mxu0 %v1867
        %2123 = vmatpush1.bf16.msra.mxu0 %v1866
        %2124 = vmatprep.subr.bf16.mxu0 %v1871
        %2125 = vmatpush1.bf16.msra.mxu0 %v1870
        %2126 = vmatprep.subr.bf16.mxu0 %v1875
        %2127 = vmatpush1.bf16.msra.mxu0 %v1874
        %2128 = vmatprep.subr.bf16.mxu0 %v1879
        %2129 = vmatpush1.bf16.msra.mxu0 %v1878
        %2130 = vmatprep.subr.bf16.mxu0 %v1883
        %2131 = vmatpush1.bf16.msra.mxu0 %v1882
        %2132 = vmatprep.subr.bf16.mxu0 %v1887
        %2133 = vmatpush1.bf16.msra.mxu0 %v1886
        %2134 = vmatprep.subr.bf16.mxu0 %v1891
        %2135 = vmatpush1.bf16.msra.mxu0 %v1890
        %2136 = vmatprep.subr.bf16.mxu0 %v1895
        %2137 = vmatpush1.bf16.msra.mxu0 %v1894
        %2138 = vmatprep.subr.bf16.mxu0 %v1899
        %2139 = vmatpush1.bf16.msra.mxu0 %v1898
        %2140 = vmatprep.subr.bf16.mxu0 %v1903
        %2141 = vmatpush1.bf16.msra.mxu0 %v1902
        %2142 = vmatprep.subr.bf16.mxu0 %v1907
        %2143 = vmatpush1.bf16.msra.mxu0 %v1906
        %2144 = vmatprep.subr.bf16.mxu0 %v1911
        %2145 = vmatpush1.bf16.msra.mxu0 %v1910
        %2146 = vmatprep.subr.bf16.mxu0 %v1915
        %2147 = vmatpush1.bf16.msra.mxu0 %v1914
        %2148 = vmatprep.subr.bf16.mxu0 %v1919
        %2149 = vmatpush1.bf16.msra.mxu0 %v1918
        %2150 = vmatprep.subr.bf16.mxu0 %v1923
        %2151 = vmatpush1.bf16.msra.mxu0 %v1922
        %2152 = vmatprep.subr.bf16.mxu0 %v1927
        %2153 = vmatpush1.bf16.msra.mxu0 %v1926
        %2154 = vmatprep.mubr.bf16.mxu0 %v1327
        %2155 = vmatmul.mubr.bf16.gmra.mrb[0].mxu0 %v1326
        %v2156 = vpop.f32.mrb[0].mxu0
        %v2157 = vadd.f32 %v1465, %v2156
        %v2158 = vpop.f32.mrb[0].mxu0
        %v2159 = vadd.f32 %v1469, %v2158
        %v2160 = vpop.f32.mrb[0].mxu0
        %v2161 = vpop.f32.mrb[0].mxu0
        %2162 = vdwg.mxu0
        %2163 = vmatprep.subr.bf16.mxu0 %v1931
        %2164 = vmatpush1.bf16.msra.mxu0 %v1930
        %2165 = vmatprep.subr.bf16.mxu0 %v1935
        %2166 = vmatpush1.bf16.msra.mxu0 %v1934
        %2167 = vmatprep.subr.bf16.mxu0 %v1939
        %2168 = vmatpush1.bf16.msra.mxu0 %v1938
        %2169 = vmatprep.subr.bf16.mxu0 %v1943
        %2170 = vmatpush1.bf16.msra.mxu0 %v1942
        %2171 = vmatprep.subr.bf16.mxu0 %v1947
        %2172 = vmatpush1.bf16.msra.mxu0 %v1946
        %2173 = vmatprep.subr.bf16.mxu0 %v1951
        %2174 = vmatpush1.bf16.msra.mxu0 %v1950
        %2175 = vmatprep.subr.bf16.mxu0 %v1955
        %2176 = vmatpush1.bf16.msra.mxu0 %v1954
        %2177 = vmatprep.subr.bf16.mxu0 %v1959
        %2178 = vmatpush1.bf16.msra.mxu0 %v1958
        %2179 = vmatprep.subr.bf16.mxu0 %v1963
        %2180 = vmatpush1.bf16.msra.mxu0 %v1962
        %2181 = vmatprep.subr.bf16.mxu0 %v1967
        %2182 = vmatpush1.bf16.msra.mxu0 %v1966
        %2183 = vmatprep.subr.bf16.mxu0 %v1971
        %2184 = vmatpush1.bf16.msra.mxu0 %v1970
        %2185 = vmatprep.subr.bf16.mxu0 %v1975
        %2186 = vmatpush1.bf16.msra.mxu0 %v1974
        %2187 = vmatprep.subr.bf16.mxu0 %v1979
        %2188 = vmatpush1.bf16.msra.mxu0 %v1978
        %2189 = vmatprep.subr.bf16.mxu0 %v1983
        %2190 = vmatpush1.bf16.msra.mxu0 %v1982
        %2191 = vmatprep.subr.bf16.mxu0 %v1987
        %2192 = vmatpush1.bf16.msra.mxu0 %v1986
        %2193 = vmatprep.subr.bf16.mxu0 %v1991
        %2194 = vmatpush1.bf16.msra.mxu0 %v1990
        %2195 = vmatprep.mubr.bf16.mxu0 %v1329
        %2196 = vmatmul.mubr.bf16.gmra.mrb[0].mxu0 %v1328
        %v2197 = vpop.f32.mrb[0].mxu0
        %v2198 = vadd.f32 %v2157, %v2197
        %v2199 = vpop.f32.mrb[0].mxu0
        %v2200 = vadd.f32 %v2159, %v2199
        %v2201 = vpop.f32.mrb[0].mxu0
        %v2202 = vpop.f32.mrb[0].mxu0
        %2203 = vdwg.mxu0
        %2204 = vmatprep.subr.bf16.mxu0 %v1869
        %2205 = vmatpush1.bf16.msra.mxu0 %v1868
        %2206 = vmatprep.subr.bf16.mxu0 %v1873
        %2207 = vmatpush1.bf16.msra.mxu0 %v1872
        %2208 = vmatprep.subr.bf16.mxu0 %v1877
        %2209 = vmatpush1.bf16.msra.mxu0 %v1876
        %2210 = vmatprep.subr.bf16.mxu0 %v1881
        %2211 = vmatpush1.bf16.msra.mxu0 %v1880
        %2212 = vmatprep.subr.bf16.mxu0 %v1885
        %2213 = vmatpush1.bf16.msra.mxu0 %v1884
        %2214 = vmatprep.subr.bf16.mxu0 %v1889
        %2215 = vmatpush1.bf16.msra.mxu0 %v1888
        %2216 = vmatprep.subr.bf16.mxu0 %v1893
        %2217 = vmatpush1.bf16.msra.mxu0 %v1892
        %2218 = vmatprep.subr.bf16.mxu0 %v1897
        %2219 = vmatpush1.bf16.msra.mxu0 %v1896
        %2220 = vmatprep.subr.bf16.mxu0 %v1901
        %2221 = vmatpush1.bf16.msra.mxu0 %v1900
        %2222 = vmatprep.subr.bf16.mxu0 %v1905
        %2223 = vmatpush1.bf16.msra.mxu0 %v1904
        %2224 = vmatprep.subr.bf16.mxu0 %v1909
        %2225 = vmatpush1.bf16.msra.mxu0 %v1908
        %2226 = vmatprep.subr.bf16.mxu0 %v1913
        %2227 = vmatpush1.bf16.msra.mxu0 %v1912
        %2228 = vmatprep.subr.bf16.mxu0 %v1917
        %2229 = vmatpush1.bf16.msra.mxu0 %v1916
        %2230 = vmatprep.subr.bf16.mxu0 %v1921
        %2231 = vmatpush1.bf16.msra.mxu0 %v1920
        %2232 = vmatprep.subr.bf16.mxu0 %v1925
        %2233 = vmatpush1.bf16.msra.mxu0 %v1924
        %2234 = vmatprep.subr.bf16.mxu0 %v1929
        %2235 = vmatpush1.bf16.msra.mxu0 %v1928
        %2236 = vmatprep.mubr.bf16.mxu0 %v1327
        %2237 = vmatmul.mubr.bf16.gmra.mrb[0].mxu0 %v1326
        %v2238 = vpop.f32.mrb[0].mxu0
        %v2239 = vadd.f32 %v1473, %v2238
        %v2240 = vpop.f32.mrb[0].mxu0
        %v2241 = vadd.f32 %v1477, %v2240
        %v2242 = vpop.f32.mrb[0].mxu0
        %v2243 = vpop.f32.mrb[0].mxu0
        %2244 = vdwg.mxu0
        %2245 = vmatprep.subr.bf16.mxu0 %v1933
        %2246 = vmatpush1.bf16.msra.mxu0 %v1932
        %2247 = vmatprep.subr.bf16.mxu0 %v1937
        %2248 = vmatpush1.bf16.msra.mxu0 %v1936
        %2249 = vmatprep.subr.bf16.mxu0 %v1941
        %2250 = vmatpush1.bf16.msra.mxu0 %v1940
        %2251 = vmatprep.subr.bf16.mxu0 %v1945
        %2252 = vmatpush1.bf16.msra.mxu0 %v1944
        %2253 = vmatprep.subr.bf16.mxu0 %v1949
        %2254 = vmatpush1.bf16.msra.mxu0 %v1948
        %2255 = vmatprep.subr.bf16.mxu0 %v1953
        %2256 = vmatpush1.bf16.msra.mxu0 %v1952
        %2257 = vmatprep.subr.bf16.mxu0 %v1957
        %2258 = vmatpush1.bf16.msra.mxu0 %v1956
        %2259 = vmatprep.subr.bf16.mxu0 %v1961
        %2260 = vmatpush1.bf16.msra.mxu0 %v1960
        %2261 = vmatprep.subr.bf16.mxu0 %v1965
        %2262 = vmatpush1.bf16.msra.mxu0 %v1964
        %2263 = vmatprep.subr.bf16.mxu0 %v1969
        %2264 = vmatpush1.bf16.msra.mxu0 %v1968
        %2265 = vmatprep.subr.bf16.mxu0 %v1973
        %2266 = vmatpush1.bf16.msra.mxu0 %v1972
        %2267 = vmatprep.subr.bf16.mxu0 %v1977
        %2268 = vmatpush1.bf16.msra.mxu0 %v1976
        %2269 = vmatprep.subr.bf16.mxu0 %v1981
        %2270 = vmatpush1.bf16.msra.mxu0 %v1980
        %2271 = vmatprep.subr.bf16.mxu0 %v1985
        %2272 = vmatpush1.bf16.msra.mxu0 %v1984
        %2273 = vmatprep.subr.bf16.mxu0 %v1989
        %2274 = vmatpush1.bf16.msra.mxu0 %v1988
        %2275 = vmatprep.subr.bf16.mxu0 %v1993
        %2276 = vmatpush1.bf16.msra.mxu0 %v1992
        %2277 = vmatprep.mubr.bf16.mxu0 %v1329
        %2278 = vmatmul.mubr.bf16.gmra.mrb[0].mxu0 %v1328
        %v2279 = vpop.f32.mrb[0].mxu0
        %v2280 = vadd.f32 %v2239, %v2279
        %v2281 = vpop.f32.mrb[0].mxu0
        %v2282 = vadd.f32 %v2241, %v2281
        %v2283 = vpop.f32.mrb[0].mxu0
        %v2284 = vpop.f32.mrb[0].mxu0
        %2285 = vdwg.mxu0
        %vm2286 = vcmp.ge.f32.partialorder %v2198, 0.0
        %vm2287 = vcmp.ge.f32.partialorder %v2200, 0.0
        %vm2288 = vcmp.ge.f32.partialorder %v2280, 0.0
        %vm2289 = vcmp.ge.f32.partialorder %v2282, 0.0
        %v2290 = vmul.f32 %v2198, 0.2
        %v2291 = vmul.f32 %v2200, 0.2
        %v2292 = vmul.f32 %v2280, 0.2
        %v2293 = vmul.f32 %v2282, 0.2
        %v2294 = vsel %vm2286, %v2198, %v2290
        %v2295 = vsel %vm2287, %v2200, %v2291
        %v2296 = vsel %vm2288, %v2280, %v2292
        %v2297 = vsel %vm2289, %v2282, %v2293
        %v2298 = vpack.c.bf16 %v2294, %v2294
        %v2299 = vpack.c.bf16 %v2295, %v2295
        %v2300 = vpack.c.bf16 %v2296, %v2296
        %v2301 = vpack.c.bf16 %v2297, %v2297
        %s2302 = scalar_lea.vmem %s273, 2048 [#allocation5]
        %v2303 = vld [vmem:[%s2302] sm:$0xff]
        %v2304 = vld [vmem:[%s2302 + $0x8] sm:$0xff]
        %v2305 = vld [vmem:[%s2302 + $0x10] sm:$0xff]
        %v2306 = vld [vmem:[%s2302 + $0x18] sm:$0xff]
        %v2307 = vld [vmem:[%s2302 + $0x20] sm:$0xff]
        %v2308 = vld [vmem:[%s2302 + $0x28] sm:$0xff]
        %v2309 = vld [vmem:[%s2302 + $0x30] sm:$0xff]
        %v2310 = vld [vmem:[%s2302 + $0x38] sm:$0xff]
        %v2311 = vld [vmem:[%s2302 + $0x40] sm:$0xff]
        %v2312 = vld [vmem:[%s2302 + $0x48] sm:$0xff]
        %v2313 = vld [vmem:[%s2302 + $0x50] sm:$0xff]
        %v2314 = vld [vmem:[%s2302 + $0x58] sm:$0xff]
        %v2315 = vld [vmem:[%s2302 + $0x60] sm:$0xff]
        %v2316 = vld [vmem:[%s2302 + $0x68] sm:$0xff]
        %v2317 = vld [vmem:[%s2302 + $0x70] sm:$0xff]
        %v2318 = vld [vmem:[%s2302 + $0x78] sm:$0xff]
        %v2319 = vld [vmem:[%s2302 + $0x80] sm:$0xff]
        %v2320 = vld [vmem:[%s2302 + $0x88] sm:$0xff]
        %v2321 = vld [vmem:[%s2302 + $0x90] sm:$0xff]
        %v2322 = vld [vmem:[%s2302 + $0x98] sm:$0xff]
        %v2323 = vld [vmem:[%s2302 + $0xa0] sm:$0xff]
        %v2324 = vld [vmem:[%s2302 + $0xa8] sm:$0xff]
        %v2325 = vld [vmem:[%s2302 + $0xb0] sm:$0xff]
        %v2326 = vld [vmem:[%s2302 + $0xb8] sm:$0xff]
        %v2327 = vld [vmem:[%s2302 + $0xc0] sm:$0xff]
        %v2328 = vld [vmem:[%s2302 + $0xc8] sm:$0xff]
        %v2329 = vld [vmem:[%s2302 + $0xd0] sm:$0xff]
        %v2330 = vld [vmem:[%s2302 + $0xd8] sm:$0xff]
        %v2331 = vld [vmem:[%s2302 + $0xe0] sm:$0xff]
        %v2332 = vld [vmem:[%s2302 + $0xe8] sm:$0xff]
        %v2333 = vld [vmem:[%s2302 + $0xf0] sm:$0xff]
        %v2334 = vld [vmem:[%s2302 + $0xf8] sm:$0xff]
        %v2335 = vld [vmem:[%s2302 + $0x100] sm:$0xff]
        %v2336 = vld [vmem:[%s2302 + $0x108] sm:$0xff]
        %v2337 = vld [vmem:[%s2302 + $0x110] sm:$0xff]
        %v2338 = vld [vmem:[%s2302 + $0x118] sm:$0xff]
        %v2339 = vld [vmem:[%s2302 + $0x120] sm:$0xff]
        %v2340 = vld [vmem:[%s2302 + $0x128] sm:$0xff]
        %v2341 = vld [vmem:[%s2302 + $0x130] sm:$0xff]
        %v2342 = vld [vmem:[%s2302 + $0x138] sm:$0xff]
        %v2343 = vld [vmem:[%s2302 + $0x140] sm:$0xff]
        %v2344 = vld [vmem:[%s2302 + $0x148] sm:$0xff]
        %v2345 = vld [vmem:[%s2302 + $0x150] sm:$0xff]
        %v2346 = vld [vmem:[%s2302 + $0x158] sm:$0xff]
        %v2347 = vld [vmem:[%s2302 + $0x160] sm:$0xff]
        %v2348 = vld [vmem:[%s2302 + $0x168] sm:$0xff]
        %v2349 = vld [vmem:[%s2302 + $0x170] sm:$0xff]
        %v2350 = vld [vmem:[%s2302 + $0x178] sm:$0xff]
        %v2351 = vld [vmem:[%s2302 + $0x180] sm:$0xff]
        %v2352 = vld [vmem:[%s2302 + $0x188] sm:$0xff]
        %v2353 = vld [vmem:[%s2302 + $0x190] sm:$0xff]
        %v2354 = vld [vmem:[%s2302 + $0x198] sm:$0xff]
        %v2355 = vld [vmem:[%s2302 + $0x1a0] sm:$0xff]
        %v2356 = vld [vmem:[%s2302 + $0x1a8] sm:$0xff]
        %v2357 = vld [vmem:[%s2302 + $0x1b0] sm:$0xff]
        %v2358 = vld [vmem:[%s2302 + $0x1b8] sm:$0xff]
        %v2359 = vld [vmem:[%s2302 + $0x1c0] sm:$0xff]
        %v2360 = vld [vmem:[%s2302 + $0x1c8] sm:$0xff]
        %v2361 = vld [vmem:[%s2302 + $0x1d0] sm:$0xff]
        %v2362 = vld [vmem:[%s2302 + $0x1d8] sm:$0xff]
        %v2363 = vld [vmem:[%s2302 + $0x1e0] sm:$0xff]
        %v2364 = vld [vmem:[%s2302 + $0x1e8] sm:$0xff]
        %v2365 = vld [vmem:[%s2302 + $0x1f0] sm:$0xff]
        %v2366 = vld [vmem:[%s2302 + $0x1f8] sm:$0xff]
        %v2367 = vld [vmem:[%s2302 + $0x200] sm:$0xff]
        %v2368 = vld [vmem:[%s2302 + $0x208] sm:$0xff]
        %v2369 = vld [vmem:[%s2302 + $0x210] sm:$0xff]
        %v2370 = vld [vmem:[%s2302 + $0x218] sm:$0xff]
        %v2371 = vld [vmem:[%s2302 + $0x220] sm:$0xff]
        %v2372 = vld [vmem:[%s2302 + $0x228] sm:$0xff]
        %v2373 = vld [vmem:[%s2302 + $0x230] sm:$0xff]
        %v2374 = vld [vmem:[%s2302 + $0x238] sm:$0xff]
        %v2375 = vld [vmem:[%s2302 + $0x240] sm:$0xff]
        %v2376 = vld [vmem:[%s2302 + $0x248] sm:$0xff]
        %v2377 = vld [vmem:[%s2302 + $0x250] sm:$0xff]
        %v2378 = vld [vmem:[%s2302 + $0x258] sm:$0xff]
        %v2379 = vld [vmem:[%s2302 + $0x260] sm:$0xff]
        %v2380 = vld [vmem:[%s2302 + $0x268] sm:$0xff]
        %v2381 = vld [vmem:[%s2302 + $0x270] sm:$0xff]
        %v2382 = vld [vmem:[%s2302 + $0x278] sm:$0xff]
        %v2383 = vld [vmem:[%s2302 + $0x280] sm:$0xff]
        %v2384 = vld [vmem:[%s2302 + $0x288] sm:$0xff]
        %v2385 = vld [vmem:[%s2302 + $0x290] sm:$0xff]
        %v2386 = vld [vmem:[%s2302 + $0x298] sm:$0xff]
        %v2387 = vld [vmem:[%s2302 + $0x2a0] sm:$0xff]
        %v2388 = vld [vmem:[%s2302 + $0x2a8] sm:$0xff]
        %v2389 = vld [vmem:[%s2302 + $0x2b0] sm:$0xff]
        %v2390 = vld [vmem:[%s2302 + $0x2b8] sm:$0xff]
        %v2391 = vld [vmem:[%s2302 + $0x2c0] sm:$0xff]
        %v2392 = vld [vmem:[%s2302 + $0x2c8] sm:$0xff]
        %v2393 = vld [vmem:[%s2302 + $0x2d0] sm:$0xff]
        %v2394 = vld [vmem:[%s2302 + $0x2d8] sm:$0xff]
        %v2395 = vld [vmem:[%s2302 + $0x2e0] sm:$0xff]
        %v2396 = vld [vmem:[%s2302 + $0x2e8] sm:$0xff]
        %v2397 = vld [vmem:[%s2302 + $0x2f0] sm:$0xff]
        %v2398 = vld [vmem:[%s2302 + $0x2f8] sm:$0xff]
        %v2399 = vld [vmem:[%s2302 + $0x300] sm:$0xff]
        %v2400 = vld [vmem:[%s2302 + $0x308] sm:$0xff]
        %v2401 = vld [vmem:[%s2302 + $0x310] sm:$0xff]
        %v2402 = vld [vmem:[%s2302 + $0x318] sm:$0xff]
        %v2403 = vld [vmem:[%s2302 + $0x320] sm:$0xff]
        %v2404 = vld [vmem:[%s2302 + $0x328] sm:$0xff]
        %v2405 = vld [vmem:[%s2302 + $0x330] sm:$0xff]
        %v2406 = vld [vmem:[%s2302 + $0x338] sm:$0xff]
        %v2407 = vld [vmem:[%s2302 + $0x340] sm:$0xff]
        %v2408 = vld [vmem:[%s2302 + $0x348] sm:$0xff]
        %v2409 = vld [vmem:[%s2302 + $0x350] sm:$0xff]
        %v2410 = vld [vmem:[%s2302 + $0x358] sm:$0xff]
        %v2411 = vld [vmem:[%s2302 + $0x360] sm:$0xff]
        %v2412 = vld [vmem:[%s2302 + $0x368] sm:$0xff]
        %v2413 = vld [vmem:[%s2302 + $0x370] sm:$0xff]
        %v2414 = vld [vmem:[%s2302 + $0x378] sm:$0xff]
        %v2415 = vld [vmem:[%s2302 + $0x380] sm:$0xff]
        %v2416 = vld [vmem:[%s2302 + $0x388] sm:$0xff]
        %v2417 = vld [vmem:[%s2302 + $0x390] sm:$0xff]
        %v2418 = vld [vmem:[%s2302 + $0x398] sm:$0xff]
        %v2419 = vld [vmem:[%s2302 + $0x3a0] sm:$0xff]
        %v2420 = vld [vmem:[%s2302 + $0x3a8] sm:$0xff]
        %v2421 = vld [vmem:[%s2302 + $0x3b0] sm:$0xff]
        %v2422 = vld [vmem:[%s2302 + $0x3b8] sm:$0xff]
        %v2423 = vld [vmem:[%s2302 + $0x3c0] sm:$0xff]
        %v2424 = vld [vmem:[%s2302 + $0x3c8] sm:$0xff]
        %v2425 = vld [vmem:[%s2302 + $0x3d0] sm:$0xff]
        %v2426 = vld [vmem:[%s2302 + $0x3d8] sm:$0xff]
        %v2427 = vld [vmem:[%s2302 + $0x3e0] sm:$0xff]
        %v2428 = vld [vmem:[%s2302 + $0x3e8] sm:$0xff]
        %v2429 = vld [vmem:[%s2302 + $0x3f0] sm:$0xff]
        %v2430 = vld [vmem:[%s2302 + $0x3f8] sm:$0xff]
        %s2431 = scalar_lea.vmem %s282, 8 [#allocation7]
        %v2432 = vld [vmem:[%s2431] sm:$0xf]
        %v2434 = vlaneseq
        %v2435 = vshrl.u32 %v2434, 7
        %v2436 = vsub.s32 0, %v2435
        %v2437 = vrot.slane %v2432, %v2436
        %v2438 = vlaneseq
        %v2439 = vshrl.u32 %v2438, 7
        %v2440 = vsub.s32 1, %v2439
        %v2441 = vrot.slane %v2432, %v2440
        %v2442 = vlaneseq
        %v2443 = vshrl.u32 %v2442, 7
        %v2444 = vsub.s32 2, %v2443
        %v2445 = vrot.slane %v2432, %v2444
        %v2446 = vlaneseq
        %v2447 = vshrl.u32 %v2446, 7
        %v2448 = vsub.s32 3, %v2447
        %v2449 = vrot.slane %v2432, %v2448
        %v2582 = vunpack.c.l.b16 %v2303
        %v2583 = vunpack.c.h.b16 %v2303
        %v2584 = vunpack.c.l.b16 %v2304
        %v2585 = vunpack.c.h.b16 %v2304
        %v2586 = vunpack.c.l.b16 %v2305
        %v2587 = vunpack.c.h.b16 %v2305
        %v2588 = vunpack.c.l.b16 %v2306
        %v2589 = vunpack.c.h.b16 %v2306
        %v2590 = vunpack.c.l.b16 %v2307
        %v2591 = vunpack.c.h.b16 %v2307
        %v2592 = vunpack.c.l.b16 %v2308
        %v2593 = vunpack.c.h.b16 %v2308
        %v2594 = vunpack.c.l.b16 %v2309
        %v2595 = vunpack.c.h.b16 %v2309
        %v2596 = vunpack.c.l.b16 %v2310
        %v2597 = vunpack.c.h.b16 %v2310
        %v2598 = vunpack.c.l.b16 %v2311
        %v2599 = vunpack.c.h.b16 %v2311
        %v2600 = vunpack.c.l.b16 %v2312
        %v2601 = vunpack.c.h.b16 %v2312
        %v2602 = vunpack.c.l.b16 %v2313
        %v2603 = vunpack.c.h.b16 %v2313
        %v2604 = vunpack.c.l.b16 %v2314
        %v2605 = vunpack.c.h.b16 %v2314
        %v2606 = vunpack.c.l.b16 %v2315
        %v2607 = vunpack.c.h.b16 %v2315
        %v2608 = vunpack.c.l.b16 %v2316
        %v2609 = vunpack.c.h.b16 %v2316
        %v2610 = vunpack.c.l.b16 %v2317
        %v2611 = vunpack.c.h.b16 %v2317
        %v2612 = vunpack.c.l.b16 %v2318
        %v2613 = vunpack.c.h.b16 %v2318
        %v2614 = vunpack.c.l.b16 %v2319
        %v2615 = vunpack.c.h.b16 %v2319
        %v2616 = vunpack.c.l.b16 %v2320
        %v2617 = vunpack.c.h.b16 %v2320
        %v2618 = vunpack.c.l.b16 %v2321
        %v2619 = vunpack.c.h.b16 %v2321
        %v2620 = vunpack.c.l.b16 %v2322
        %v2621 = vunpack.c.h.b16 %v2322
        %v2622 = vunpack.c.l.b16 %v2323
        %v2623 = vunpack.c.h.b16 %v2323
        %v2624 = vunpack.c.l.b16 %v2324
        %v2625 = vunpack.c.h.b16 %v2324
        %v2626 = vunpack.c.l.b16 %v2325
        %v2627 = vunpack.c.h.b16 %v2325
        %v2628 = vunpack.c.l.b16 %v2326
        %v2629 = vunpack.c.h.b16 %v2326
        %v2630 = vunpack.c.l.b16 %v2327
        %v2631 = vunpack.c.h.b16 %v2327
        %v2632 = vunpack.c.l.b16 %v2328
        %v2633 = vunpack.c.h.b16 %v2328
        %v2634 = vunpack.c.l.b16 %v2329
        %v2635 = vunpack.c.h.b16 %v2329
        %v2636 = vunpack.c.l.b16 %v2330
        %v2637 = vunpack.c.h.b16 %v2330
        %v2638 = vunpack.c.l.b16 %v2331
        %v2639 = vunpack.c.h.b16 %v2331
        %v2640 = vunpack.c.l.b16 %v2332
        %v2641 = vunpack.c.h.b16 %v2332
        %v2642 = vunpack.c.l.b16 %v2333
        %v2643 = vunpack.c.h.b16 %v2333
        %v2644 = vunpack.c.l.b16 %v2334
        %v2645 = vunpack.c.h.b16 %v2334
        %v2646 = vunpack.c.l.b16 %v2335
        %v2647 = vunpack.c.h.b16 %v2335
        %v2648 = vunpack.c.l.b16 %v2336
        %v2649 = vunpack.c.h.b16 %v2336
        %v2650 = vunpack.c.l.b16 %v2337
        %v2651 = vunpack.c.h.b16 %v2337
        %v2652 = vunpack.c.l.b16 %v2338
        %v2653 = vunpack.c.h.b16 %v2338
        %v2654 = vunpack.c.l.b16 %v2339
        %v2655 = vunpack.c.h.b16 %v2339
        %v2656 = vunpack.c.l.b16 %v2340
        %v2657 = vunpack.c.h.b16 %v2340
        %v2658 = vunpack.c.l.b16 %v2341
        %v2659 = vunpack.c.h.b16 %v2341
        %v2660 = vunpack.c.l.b16 %v2342
        %v2661 = vunpack.c.h.b16 %v2342
        %v2662 = vunpack.c.l.b16 %v2343
        %v2663 = vunpack.c.h.b16 %v2343
        %v2664 = vunpack.c.l.b16 %v2344
        %v2665 = vunpack.c.h.b16 %v2344
        %v2666 = vunpack.c.l.b16 %v2345
        %v2667 = vunpack.c.h.b16 %v2345
        %v2668 = vunpack.c.l.b16 %v2346
        %v2669 = vunpack.c.h.b16 %v2346
        %v2670 = vunpack.c.l.b16 %v2347
        %v2671 = vunpack.c.h.b16 %v2347
        %v2672 = vunpack.c.l.b16 %v2348
        %v2673 = vunpack.c.h.b16 %v2348
        %v2674 = vunpack.c.l.b16 %v2349
        %v2675 = vunpack.c.h.b16 %v2349
        %v2676 = vunpack.c.l.b16 %v2350
        %v2677 = vunpack.c.h.b16 %v2350
        %v2678 = vunpack.c.l.b16 %v2351
        %v2679 = vunpack.c.h.b16 %v2351
        %v2680 = vunpack.c.l.b16 %v2352
        %v2681 = vunpack.c.h.b16 %v2352
        %v2682 = vunpack.c.l.b16 %v2353
        %v2683 = vunpack.c.h.b16 %v2353
        %v2684 = vunpack.c.l.b16 %v2354
        %v2685 = vunpack.c.h.b16 %v2354
        %v2686 = vunpack.c.l.b16 %v2355
        %v2687 = vunpack.c.h.b16 %v2355
        %v2688 = vunpack.c.l.b16 %v2356
        %v2689 = vunpack.c.h.b16 %v2356
        %v2690 = vunpack.c.l.b16 %v2357
        %v2691 = vunpack.c.h.b16 %v2357
        %v2692 = vunpack.c.l.b16 %v2358
        %v2693 = vunpack.c.h.b16 %v2358
        %v2694 = vunpack.c.l.b16 %v2359
        %v2695 = vunpack.c.h.b16 %v2359
        %v2696 = vunpack.c.l.b16 %v2360
        %v2697 = vunpack.c.h.b16 %v2360
        %v2698 = vunpack.c.l.b16 %v2361
        %v2699 = vunpack.c.h.b16 %v2361
        %v2700 = vunpack.c.l.b16 %v2362
        %v2701 = vunpack.c.h.b16 %v2362
        %v2702 = vunpack.c.l.b16 %v2363
        %v2703 = vunpack.c.h.b16 %v2363
        %v2704 = vunpack.c.l.b16 %v2364
        %v2705 = vunpack.c.h.b16 %v2364
        %v2706 = vunpack.c.l.b16 %v2365
        %v2707 = vunpack.c.h.b16 %v2365
        %v2708 = vunpack.c.l.b16 %v2366
        %v2709 = vunpack.c.h.b16 %v2366
        %v2710 = vunpack.c.l.b16 %v2367
        %v2711 = vunpack.c.h.b16 %v2367
        %v2712 = vunpack.c.l.b16 %v2368
        %v2713 = vunpack.c.h.b16 %v2368
        %v2714 = vunpack.c.l.b16 %v2369
        %v2715 = vunpack.c.h.b16 %v2369
        %v2716 = vunpack.c.l.b16 %v2370
        %v2717 = vunpack.c.h.b16 %v2370
        %v2718 = vunpack.c.l.b16 %v2371
        %v2719 = vunpack.c.h.b16 %v2371
        %v2720 = vunpack.c.l.b16 %v2372
        %v2721 = vunpack.c.h.b16 %v2372
        %v2722 = vunpack.c.l.b16 %v2373
        %v2723 = vunpack.c.h.b16 %v2373
        %v2724 = vunpack.c.l.b16 %v2374
        %v2725 = vunpack.c.h.b16 %v2374
        %v2726 = vunpack.c.l.b16 %v2375
        %v2727 = vunpack.c.h.b16 %v2375
        %v2728 = vunpack.c.l.b16 %v2376
        %v2729 = vunpack.c.h.b16 %v2376
        %v2730 = vunpack.c.l.b16 %v2377
        %v2731 = vunpack.c.h.b16 %v2377
        %v2732 = vunpack.c.l.b16 %v2378
        %v2733 = vunpack.c.h.b16 %v2378
        %v2734 = vunpack.c.l.b16 %v2379
        %v2735 = vunpack.c.h.b16 %v2379
        %v2736 = vunpack.c.l.b16 %v2380
        %v2737 = vunpack.c.h.b16 %v2380
        %v2738 = vunpack.c.l.b16 %v2381
        %v2739 = vunpack.c.h.b16 %v2381
        %v2740 = vunpack.c.l.b16 %v2382
        %v2741 = vunpack.c.h.b16 %v2382
        %v2742 = vunpack.c.l.b16 %v2383
        %v2743 = vunpack.c.h.b16 %v2383
        %v2744 = vunpack.c.l.b16 %v2384
        %v2745 = vunpack.c.h.b16 %v2384
        %v2746 = vunpack.c.l.b16 %v2385
        %v2747 = vunpack.c.h.b16 %v2385
        %v2748 = vunpack.c.l.b16 %v2386
        %v2749 = vunpack.c.h.b16 %v2386
        %v2750 = vunpack.c.l.b16 %v2387
        %v2751 = vunpack.c.h.b16 %v2387
        %v2752 = vunpack.c.l.b16 %v2388
        %v2753 = vunpack.c.h.b16 %v2388
        %v2754 = vunpack.c.l.b16 %v2389
        %v2755 = vunpack.c.h.b16 %v2389
        %v2756 = vunpack.c.l.b16 %v2390
        %v2757 = vunpack.c.h.b16 %v2390
        %v2758 = vunpack.c.l.b16 %v2391
        %v2759 = vunpack.c.h.b16 %v2391
        %v2760 = vunpack.c.l.b16 %v2392
        %v2761 = vunpack.c.h.b16 %v2392
        %v2762 = vunpack.c.l.b16 %v2393
        %v2763 = vunpack.c.h.b16 %v2393
        %v2764 = vunpack.c.l.b16 %v2394
        %v2765 = vunpack.c.h.b16 %v2394
        %v2766 = vunpack.c.l.b16 %v2395
        %v2767 = vunpack.c.h.b16 %v2395
        %v2768 = vunpack.c.l.b16 %v2396
        %v2769 = vunpack.c.h.b16 %v2396
        %v2770 = vunpack.c.l.b16 %v2397
        %v2771 = vunpack.c.h.b16 %v2397
        %v2772 = vunpack.c.l.b16 %v2398
        %v2773 = vunpack.c.h.b16 %v2398
        %v2774 = vunpack.c.l.b16 %v2399
        %v2775 = vunpack.c.h.b16 %v2399
        %v2776 = vunpack.c.l.b16 %v2400
        %v2777 = vunpack.c.h.b16 %v2400
        %v2778 = vunpack.c.l.b16 %v2401
        %v2779 = vunpack.c.h.b16 %v2401
        %v2780 = vunpack.c.l.b16 %v2402
        %v2781 = vunpack.c.h.b16 %v2402
        %v2782 = vunpack.c.l.b16 %v2403
        %v2783 = vunpack.c.h.b16 %v2403
        %v2784 = vunpack.c.l.b16 %v2404
        %v2785 = vunpack.c.h.b16 %v2404
        %v2786 = vunpack.c.l.b16 %v2405
        %v2787 = vunpack.c.h.b16 %v2405
        %v2788 = vunpack.c.l.b16 %v2406
        %v2789 = vunpack.c.h.b16 %v2406
        %v2790 = vunpack.c.l.b16 %v2407
        %v2791 = vunpack.c.h.b16 %v2407
        %v2792 = vunpack.c.l.b16 %v2408
        %v2793 = vunpack.c.h.b16 %v2408
        %v2794 = vunpack.c.l.b16 %v2409
        %v2795 = vunpack.c.h.b16 %v2409
        %v2796 = vunpack.c.l.b16 %v2410
        %v2797 = vunpack.c.h.b16 %v2410
        %v2798 = vunpack.c.l.b16 %v2411
        %v2799 = vunpack.c.h.b16 %v2411
        %v2800 = vunpack.c.l.b16 %v2412
        %v2801 = vunpack.c.h.b16 %v2412
        %v2802 = vunpack.c.l.b16 %v2413
        %v2803 = vunpack.c.h.b16 %v2413
        %v2804 = vunpack.c.l.b16 %v2414
        %v2805 = vunpack.c.h.b16 %v2414
        %v2806 = vunpack.c.l.b16 %v2415
        %v2807 = vunpack.c.h.b16 %v2415
        %v2808 = vunpack.c.l.b16 %v2416
        %v2809 = vunpack.c.h.b16 %v2416
        %v2810 = vunpack.c.l.b16 %v2417
        %v2811 = vunpack.c.h.b16 %v2417
        %v2812 = vunpack.c.l.b16 %v2418
        %v2813 = vunpack.c.h.b16 %v2418
        %v2814 = vunpack.c.l.b16 %v2419
        %v2815 = vunpack.c.h.b16 %v2419
        %v2816 = vunpack.c.l.b16 %v2420
        %v2817 = vunpack.c.h.b16 %v2420
        %v2818 = vunpack.c.l.b16 %v2421
        %v2819 = vunpack.c.h.b16 %v2421
        %v2820 = vunpack.c.l.b16 %v2422
        %v2821 = vunpack.c.h.b16 %v2422
        %v2822 = vunpack.c.l.b16 %v2423
        %v2823 = vunpack.c.h.b16 %v2423
        %v2824 = vunpack.c.l.b16 %v2424
        %v2825 = vunpack.c.h.b16 %v2424
        %v2826 = vunpack.c.l.b16 %v2425
        %v2827 = vunpack.c.h.b16 %v2425
        %v2828 = vunpack.c.l.b16 %v2426
        %v2829 = vunpack.c.h.b16 %v2426
        %v2830 = vunpack.c.l.b16 %v2427
        %v2831 = vunpack.c.h.b16 %v2427
        %v2832 = vunpack.c.l.b16 %v2428
        %v2833 = vunpack.c.h.b16 %v2428
        %v2834 = vunpack.c.l.b16 %v2429
        %v2835 = vunpack.c.h.b16 %v2429
        %v2836 = vunpack.c.l.b16 %v2430
        %v2837 = vunpack.c.h.b16 %v2430
        %v2838 = vpack.c.b16 %v2586, %v2582
        %v2839 = vpack.c.b16 %v2587, %v2583
        %v2840 = vpack.c.b16 %v2588, %v2584
        %v2841 = vpack.c.b16 %v2589, %v2585
        %v2842 = vpack.c.b16 %v2594, %v2590
        %v2843 = vpack.c.b16 %v2595, %v2591
        %v2844 = vpack.c.b16 %v2596, %v2592
        %v2845 = vpack.c.b16 %v2597, %v2593
        %v2846 = vpack.c.b16 %v2602, %v2598
        %v2847 = vpack.c.b16 %v2603, %v2599
        %v2848 = vpack.c.b16 %v2604, %v2600
        %v2849 = vpack.c.b16 %v2605, %v2601
        %v2850 = vpack.c.b16 %v2610, %v2606
        %v2851 = vpack.c.b16 %v2611, %v2607
        %v2852 = vpack.c.b16 %v2612, %v2608
        %v2853 = vpack.c.b16 %v2613, %v2609
        %v2854 = vpack.c.b16 %v2618, %v2614
        %v2855 = vpack.c.b16 %v2619, %v2615
        %v2856 = vpack.c.b16 %v2620, %v2616
        %v2857 = vpack.c.b16 %v2621, %v2617
        %v2858 = vpack.c.b16 %v2626, %v2622
        %v2859 = vpack.c.b16 %v2627, %v2623
        %v2860 = vpack.c.b16 %v2628, %v2624
        %v2861 = vpack.c.b16 %v2629, %v2625
        %v2862 = vpack.c.b16 %v2634, %v2630
        %v2863 = vpack.c.b16 %v2635, %v2631
        %v2864 = vpack.c.b16 %v2636, %v2632
        %v2865 = vpack.c.b16 %v2637, %v2633
        %v2866 = vpack.c.b16 %v2642, %v2638
        %v2867 = vpack.c.b16 %v2643, %v2639
        %v2868 = vpack.c.b16 %v2644, %v2640
        %v2869 = vpack.c.b16 %v2645, %v2641
        %v2870 = vpack.c.b16 %v2650, %v2646
        %v2871 = vpack.c.b16 %v2651, %v2647
        %v2872 = vpack.c.b16 %v2652, %v2648
        %v2873 = vpack.c.b16 %v2653, %v2649
        %v2874 = vpack.c.b16 %v2658, %v2654
        %v2875 = vpack.c.b16 %v2659, %v2655
        %v2876 = vpack.c.b16 %v2660, %v2656
        %v2877 = vpack.c.b16 %v2661, %v2657
        %v2878 = vpack.c.b16 %v2666, %v2662
        %v2879 = vpack.c.b16 %v2667, %v2663
        %v2880 = vpack.c.b16 %v2668, %v2664
        %v2881 = vpack.c.b16 %v2669, %v2665
        %v2882 = vpack.c.b16 %v2674, %v2670
        %v2883 = vpack.c.b16 %v2675, %v2671
        %v2884 = vpack.c.b16 %v2676, %v2672
        %v2885 = vpack.c.b16 %v2677, %v2673
        %v2886 = vpack.c.b16 %v2682, %v2678
        %v2887 = vpack.c.b16 %v2683, %v2679
        %v2888 = vpack.c.b16 %v2684, %v2680
        %v2889 = vpack.c.b16 %v2685, %v2681
        %v2890 = vpack.c.b16 %v2690, %v2686
        %v2891 = vpack.c.b16 %v2691, %v2687
        %v2892 = vpack.c.b16 %v2692, %v2688
        %v2893 = vpack.c.b16 %v2693, %v2689
        %v2894 = vpack.c.b16 %v2698, %v2694
        %v2895 = vpack.c.b16 %v2699, %v2695
        %v2896 = vpack.c.b16 %v2700, %v2696
        %v2897 = vpack.c.b16 %v2701, %v2697
        %v2898 = vpack.c.b16 %v2706, %v2702
        %v2899 = vpack.c.b16 %v2707, %v2703
        %v2900 = vpack.c.b16 %v2708, %v2704
        %v2901 = vpack.c.b16 %v2709, %v2705
        %v2902 = vpack.c.b16 %v2714, %v2710
        %v2903 = vpack.c.b16 %v2715, %v2711
        %v2904 = vpack.c.b16 %v2716, %v2712
        %v2905 = vpack.c.b16 %v2717, %v2713
        %v2906 = vpack.c.b16 %v2722, %v2718
        %v2907 = vpack.c.b16 %v2723, %v2719
        %v2908 = vpack.c.b16 %v2724, %v2720
        %v2909 = vpack.c.b16 %v2725, %v2721
        %v2910 = vpack.c.b16 %v2730, %v2726
        %v2911 = vpack.c.b16 %v2731, %v2727
        %v2912 = vpack.c.b16 %v2732, %v2728
        %v2913 = vpack.c.b16 %v2733, %v2729
        %v2914 = vpack.c.b16 %v2738, %v2734
        %v2915 = vpack.c.b16 %v2739, %v2735
        %v2916 = vpack.c.b16 %v2740, %v2736
        %v2917 = vpack.c.b16 %v2741, %v2737
        %v2918 = vpack.c.b16 %v2746, %v2742
        %v2919 = vpack.c.b16 %v2747, %v2743
        %v2920 = vpack.c.b16 %v2748, %v2744
        %v2921 = vpack.c.b16 %v2749, %v2745
        %v2922 = vpack.c.b16 %v2754, %v2750
        %v2923 = vpack.c.b16 %v2755, %v2751
        %v2924 = vpack.c.b16 %v2756, %v2752
        %v2925 = vpack.c.b16 %v2757, %v2753
        %v2926 = vpack.c.b16 %v2762, %v2758
        %v2927 = vpack.c.b16 %v2763, %v2759
        %v2928 = vpack.c.b16 %v2764, %v2760
        %v2929 = vpack.c.b16 %v2765, %v2761
        %v2930 = vpack.c.b16 %v2770, %v2766
        %v2931 = vpack.c.b16 %v2771, %v2767
        %v2932 = vpack.c.b16 %v2772, %v2768
        %v2933 = vpack.c.b16 %v2773, %v2769
        %v2934 = vpack.c.b16 %v2778, %v2774
        %v2935 = vpack.c.b16 %v2779, %v2775
        %v2936 = vpack.c.b16 %v2780, %v2776
        %v2937 = vpack.c.b16 %v2781, %v2777
        %v2938 = vpack.c.b16 %v2786, %v2782
        %v2939 = vpack.c.b16 %v2787, %v2783
        %v2940 = vpack.c.b16 %v2788, %v2784
        %v2941 = vpack.c.b16 %v2789, %v2785
        %v2942 = vpack.c.b16 %v2794, %v2790
        %v2943 = vpack.c.b16 %v2795, %v2791
        %v2944 = vpack.c.b16 %v2796, %v2792
        %v2945 = vpack.c.b16 %v2797, %v2793
        %v2946 = vpack.c.b16 %v2802, %v2798
        %v2947 = vpack.c.b16 %v2803, %v2799
        %v2948 = vpack.c.b16 %v2804, %v2800
        %v2949 = vpack.c.b16 %v2805, %v2801
        %v2950 = vpack.c.b16 %v2810, %v2806
        %v2951 = vpack.c.b16 %v2811, %v2807
        %v2952 = vpack.c.b16 %v2812, %v2808
        %v2953 = vpack.c.b16 %v2813, %v2809
        %v2954 = vpack.c.b16 %v2818, %v2814
        %v2955 = vpack.c.b16 %v2819, %v2815
        %v2956 = vpack.c.b16 %v2820, %v2816
        %v2957 = vpack.c.b16 %v2821, %v2817
        %v2958 = vpack.c.b16 %v2826, %v2822
        %v2959 = vpack.c.b16 %v2827, %v2823
        %v2960 = vpack.c.b16 %v2828, %v2824
        %v2961 = vpack.c.b16 %v2829, %v2825
        %v2962 = vpack.c.b16 %v2834, %v2830
        %v2963 = vpack.c.b16 %v2835, %v2831
        %v2964 = vpack.c.b16 %v2836, %v2832
        %v2965 = vpack.c.b16 %v2837, %v2833
        %3094 = vmatprep.subr.bf16.mxu0 %v2839
        %3095 = vmatpush1.bf16.msra.mxu0 %v2838
        %3096 = vmatprep.subr.bf16.mxu0 %v2843
        %3097 = vmatpush1.bf16.msra.mxu0 %v2842
        %3098 = vmatprep.subr.bf16.mxu0 %v2847
        %3099 = vmatpush1.bf16.msra.mxu0 %v2846
        %3100 = vmatprep.subr.bf16.mxu0 %v2851
        %3101 = vmatpush1.bf16.msra.mxu0 %v2850
        %3102 = vmatprep.subr.bf16.mxu0 %v2855
        %3103 = vmatpush1.bf16.msra.mxu0 %v2854
        %3104 = vmatprep.subr.bf16.mxu0 %v2859
        %3105 = vmatpush1.bf16.msra.mxu0 %v2858
        %3106 = vmatprep.subr.bf16.mxu0 %v2863
        %3107 = vmatpush1.bf16.msra.mxu0 %v2862
        %3108 = vmatprep.subr.bf16.mxu0 %v2867
        %3109 = vmatpush1.bf16.msra.mxu0 %v2866
        %3110 = vmatprep.subr.bf16.mxu0 %v2871
        %3111 = vmatpush1.bf16.msra.mxu0 %v2870
        %3112 = vmatprep.subr.bf16.mxu0 %v2875
        %3113 = vmatpush1.bf16.msra.mxu0 %v2874
        %3114 = vmatprep.subr.bf16.mxu0 %v2879
        %3115 = vmatpush1.bf16.msra.mxu0 %v2878
        %3116 = vmatprep.subr.bf16.mxu0 %v2883
        %3117 = vmatpush1.bf16.msra.mxu0 %v2882
        %3118 = vmatprep.subr.bf16.mxu0 %v2887
        %3119 = vmatpush1.bf16.msra.mxu0 %v2886
        %3120 = vmatprep.subr.bf16.mxu0 %v2891
        %3121 = vmatpush1.bf16.msra.mxu0 %v2890
        %3122 = vmatprep.subr.bf16.mxu0 %v2895
        %3123 = vmatpush1.bf16.msra.mxu0 %v2894
        %3124 = vmatprep.subr.bf16.mxu0 %v2899
        %3125 = vmatpush1.bf16.msra.mxu0 %v2898
        %3126 = vmatprep.mubr.bf16.mxu0 %v2299
        %3127 = vmatmul.mubr.bf16.gmra.mrb[0].mxu0 %v2298
        %v3128 = vpop.f32.mrb[0].mxu0
        %v3129 = vadd.f32 %v2437, %v3128
        %v3130 = vpop.f32.mrb[0].mxu0
        %v3131 = vadd.f32 %v2441, %v3130
        %v3132 = vpop.f32.mrb[0].mxu0
        %v3133 = vpop.f32.mrb[0].mxu0
        %3134 = vdwg.mxu0
        %3135 = vmatprep.subr.bf16.mxu0 %v2903
        %3136 = vmatpush1.bf16.msra.mxu0 %v2902
        %3137 = vmatprep.subr.bf16.mxu0 %v2907
        %3138 = vmatpush1.bf16.msra.mxu0 %v2906
        %3139 = vmatprep.subr.bf16.mxu0 %v2911
        %3140 = vmatpush1.bf16.msra.mxu0 %v2910
        %3141 = vmatprep.subr.bf16.mxu0 %v2915
        %3142 = vmatpush1.bf16.msra.mxu0 %v2914
        %3143 = vmatprep.subr.bf16.mxu0 %v2919
        %3144 = vmatpush1.bf16.msra.mxu0 %v2918
        %3145 = vmatprep.subr.bf16.mxu0 %v2923
        %3146 = vmatpush1.bf16.msra.mxu0 %v2922
        %3147 = vmatprep.subr.bf16.mxu0 %v2927
        %3148 = vmatpush1.bf16.msra.mxu0 %v2926
        %3149 = vmatprep.subr.bf16.mxu0 %v2931
        %3150 = vmatpush1.bf16.msra.mxu0 %v2930
        %3151 = vmatprep.subr.bf16.mxu0 %v2935
        %3152 = vmatpush1.bf16.msra.mxu0 %v2934
        %3153 = vmatprep.subr.bf16.mxu0 %v2939
        %3154 = vmatpush1.bf16.msra.mxu0 %v2938
        %3155 = vmatprep.subr.bf16.mxu0 %v2943
        %3156 = vmatpush1.bf16.msra.mxu0 %v2942
        %3157 = vmatprep.subr.bf16.mxu0 %v2947
        %3158 = vmatpush1.bf16.msra.mxu0 %v2946
        %3159 = vmatprep.subr.bf16.mxu0 %v2951
        %3160 = vmatpush1.bf16.msra.mxu0 %v2950
        %3161 = vmatprep.subr.bf16.mxu0 %v2955
        %3162 = vmatpush1.bf16.msra.mxu0 %v2954
        %3163 = vmatprep.subr.bf16.mxu0 %v2959
        %3164 = vmatpush1.bf16.msra.mxu0 %v2958
        %3165 = vmatprep.subr.bf16.mxu0 %v2963
        %3166 = vmatpush1.bf16.msra.mxu0 %v2962
        %3167 = vmatprep.mubr.bf16.mxu0 %v2301
        %3168 = vmatmul.mubr.bf16.gmra.mrb[0].mxu0 %v2300
        %v3169 = vpop.f32.mrb[0].mxu0
        %v3170 = vadd.f32 %v3129, %v3169
        %v3171 = vpop.f32.mrb[0].mxu0
        %v3172 = vadd.f32 %v3131, %v3171
        %v3173 = vpop.f32.mrb[0].mxu0
        %v3174 = vpop.f32.mrb[0].mxu0
        %3175 = vdwg.mxu0
        %3176 = vmatprep.subr.bf16.mxu0 %v2841
        %3177 = vmatpush1.bf16.msra.mxu0 %v2840
        %3178 = vmatprep.subr.bf16.mxu0 %v2845
        %3179 = vmatpush1.bf16.msra.mxu0 %v2844
        %3180 = vmatprep.subr.bf16.mxu0 %v2849
        %3181 = vmatpush1.bf16.msra.mxu0 %v2848
        %3182 = vmatprep.subr.bf16.mxu0 %v2853
        %3183 = vmatpush1.bf16.msra.mxu0 %v2852
        %3184 = vmatprep.subr.bf16.mxu0 %v2857
        %3185 = vmatpush1.bf16.msra.mxu0 %v2856
        %3186 = vmatprep.subr.bf16.mxu0 %v2861
        %3187 = vmatpush1.bf16.msra.mxu0 %v2860
        %3188 = vmatprep.subr.bf16.mxu0 %v2865
        %3189 = vmatpush1.bf16.msra.mxu0 %v2864
        %3190 = vmatprep.subr.bf16.mxu0 %v2869
        %3191 = vmatpush1.bf16.msra.mxu0 %v2868
        %3192 = vmatprep.subr.bf16.mxu0 %v2873
        %3193 = vmatpush1.bf16.msra.mxu0 %v2872
        %3194 = vmatprep.subr.bf16.mxu0 %v2877
        %3195 = vmatpush1.bf16.msra.mxu0 %v2876
        %3196 = vmatprep.subr.bf16.mxu0 %v2881
        %3197 = vmatpush1.bf16.msra.mxu0 %v2880
        %3198 = vmatprep.subr.bf16.mxu0 %v2885
        %3199 = vmatpush1.bf16.msra.mxu0 %v2884
        %3200 = vmatprep.subr.bf16.mxu0 %v2889
        %3201 = vmatpush1.bf16.msra.mxu0 %v2888
        %3202 = vmatprep.subr.bf16.mxu0 %v2893
        %3203 = vmatpush1.bf16.msra.mxu0 %v2892
        %3204 = vmatprep.subr.bf16.mxu0 %v2897
        %3205 = vmatpush1.bf16.msra.mxu0 %v2896
        %3206 = vmatprep.subr.bf16.mxu0 %v2901
        %3207 = vmatpush1.bf16.msra.mxu0 %v2900
        %3208 = vmatprep.mubr.bf16.mxu0 %v2299
        %3209 = vmatmul.mubr.bf16.gmra.mrb[0].mxu0 %v2298
        %v3210 = vpop.f32.mrb[0].mxu0
        %v3211 = vadd.f32 %v2445, %v3210
        %v3212 = vpop.f32.mrb[0].mxu0
        %v3213 = vadd.f32 %v2449, %v3212
        %v3214 = vpop.f32.mrb[0].mxu0
        %v3215 = vpop.f32.mrb[0].mxu0
        %3216 = vdwg.mxu0
        %3217 = vmatprep.subr.bf16.mxu0 %v2905
        %3218 = vmatpush1.bf16.msra.mxu0 %v2904
        %3219 = vmatprep.subr.bf16.mxu0 %v2909
        %3220 = vmatpush1.bf16.msra.mxu0 %v2908
        %3221 = vmatprep.subr.bf16.mxu0 %v2913
        %3222 = vmatpush1.bf16.msra.mxu0 %v2912
        %3223 = vmatprep.subr.bf16.mxu0 %v2917
        %3224 = vmatpush1.bf16.msra.mxu0 %v2916
        %3225 = vmatprep.subr.bf16.mxu0 %v2921
        %3226 = vmatpush1.bf16.msra.mxu0 %v2920
        %3227 = vmatprep.subr.bf16.mxu0 %v2925
        %3228 = vmatpush1.bf16.msra.mxu0 %v2924
        %3229 = vmatprep.subr.bf16.mxu0 %v2929
        %3230 = vmatpush1.bf16.msra.mxu0 %v2928
        %3231 = vmatprep.subr.bf16.mxu0 %v2933
        %3232 = vmatpush1.bf16.msra.mxu0 %v2932
        %3233 = vmatprep.subr.bf16.mxu0 %v2937
        %3234 = vmatpush1.bf16.msra.mxu0 %v2936
        %3235 = vmatprep.subr.bf16.mxu0 %v2941
        %3236 = vmatpush1.bf16.msra.mxu0 %v2940
        %3237 = vmatprep.subr.bf16.mxu0 %v2945
        %3238 = vmatpush1.bf16.msra.mxu0 %v2944
        %3239 = vmatprep.subr.bf16.mxu0 %v2949
        %3240 = vmatpush1.bf16.msra.mxu0 %v2948
        %3241 = vmatprep.subr.bf16.mxu0 %v2953
        %3242 = vmatpush1.bf16.msra.mxu0 %v2952
        %3243 = vmatprep.subr.bf16.mxu0 %v2957
        %3244 = vmatpush1.bf16.msra.mxu0 %v2956
        %3245 = vmatprep.subr.bf16.mxu0 %v2961
        %3246 = vmatpush1.bf16.msra.mxu0 %v2960
        %3247 = vmatprep.subr.bf16.mxu0 %v2965
        %3248 = vmatpush1.bf16.msra.mxu0 %v2964
        %3249 = vmatprep.mubr.bf16.mxu0 %v2301
        %3250 = vmatmul.mubr.bf16.gmra.mrb[0].mxu0 %v2300
        %v3251 = vpop.f32.mrb[0].mxu0
        %v3252 = vadd.f32 %v3211, %v3251
        %v3253 = vpop.f32.mrb[0].mxu0
        %v3254 = vadd.f32 %v3213, %v3253
        %v3255 = vpop.f32.mrb[0].mxu0
        %v3256 = vpop.f32.mrb[0].mxu0
        %3257 = vdwg.mxu0
        %vm3258 = vcmp.ge.f32.partialorder %v3170, 0.0
        %vm3259 = vcmp.ge.f32.partialorder %v3172, 0.0
        %vm3260 = vcmp.ge.f32.partialorder %v3252, 0.0
        %vm3261 = vcmp.ge.f32.partialorder %v3254, 0.0
        %v3262 = vmul.f32 %v3170, 0.2
        %v3263 = vmul.f32 %v3172, 0.2
        %v3264 = vmul.f32 %v3252, 0.2
        %v3265 = vmul.f32 %v3254, 0.2
        %v3266 = vsel %vm3258, %v3170, %v3262
        %v3267 = vsel %vm3259, %v3172, %v3263
        %v3268 = vsel %vm3260, %v3252, %v3264
        %v3269 = vsel %vm3261, %v3254, %v3265
        %v3270 = vpack.c.bf16 %v3266, %v3266
        %v3271 = vpack.c.bf16 %v3267, %v3267
        %v3272 = vpack.c.bf16 %v3268, %v3268
        %v3273 = vpack.c.bf16 %v3269, %v3269
        %s3274 = scalar_lea.vmem %s273, 3072 [#allocation5]
        %v3275 = vld [vmem:[%s3274] sm:$0xff]
        %v3276 = vld [vmem:[%s3274 + $0x8] sm:$0xff]
        %v3277 = vld [vmem:[%s3274 + $0x10] sm:$0xff]
        %v3278 = vld [vmem:[%s3274 + $0x18] sm:$0xff]
        %v3279 = vld [vmem:[%s3274 + $0x20] sm:$0xff]
        %v3280 = vld [vmem:[%s3274 + $0x28] sm:$0xff]
        %v3281 = vld [vmem:[%s3274 + $0x30] sm:$0xff]
        %v3282 = vld [vmem:[%s3274 + $0x38] sm:$0xff]
        %v3283 = vld [vmem:[%s3274 + $0x40] sm:$0xff]
        %v3284 = vld [vmem:[%s3274 + $0x48] sm:$0xff]
        %v3285 = vld [vmem:[%s3274 + $0x50] sm:$0xff]
        %v3286 = vld [vmem:[%s3274 + $0x58] sm:$0xff]
        %v3287 = vld [vmem:[%s3274 + $0x60] sm:$0xff]
        %v3288 = vld [vmem:[%s3274 + $0x68] sm:$0xff]
        %v3289 = vld [vmem:[%s3274 + $0x70] sm:$0xff]
        %v3290 = vld [vmem:[%s3274 + $0x78] sm:$0xff]
        %v3291 = vld [vmem:[%s3274 + $0x80] sm:$0xff]
        %v3292 = vld [vmem:[%s3274 + $0x88] sm:$0xff]
        %v3293 = vld [vmem:[%s3274 + $0x90] sm:$0xff]
        %v3294 = vld [vmem:[%s3274 + $0x98] sm:$0xff]
        %v3295 = vld [vmem:[%s3274 + $0xa0] sm:$0xff]
        %v3296 = vld [vmem:[%s3274 + $0xa8] sm:$0xff]
        %v3297 = vld [vmem:[%s3274 + $0xb0] sm:$0xff]
        %v3298 = vld [vmem:[%s3274 + $0xb8] sm:$0xff]
        %v3299 = vld [vmem:[%s3274 + $0xc0] sm:$0xff]
        %v3300 = vld [vmem:[%s3274 + $0xc8] sm:$0xff]
        %v3301 = vld [vmem:[%s3274 + $0xd0] sm:$0xff]
        %v3302 = vld [vmem:[%s3274 + $0xd8] sm:$0xff]
        %v3303 = vld [vmem:[%s3274 + $0xe0] sm:$0xff]
        %v3304 = vld [vmem:[%s3274 + $0xe8] sm:$0xff]
        %v3305 = vld [vmem:[%s3274 + $0xf0] sm:$0xff]
        %v3306 = vld [vmem:[%s3274 + $0xf8] sm:$0xff]
        %v3307 = vld [vmem:[%s3274 + $0x100] sm:$0xff]
        %v3308 = vld [vmem:[%s3274 + $0x108] sm:$0xff]
        %v3309 = vld [vmem:[%s3274 + $0x110] sm:$0xff]
        %v3310 = vld [vmem:[%s3274 + $0x118] sm:$0xff]
        %v3311 = vld [vmem:[%s3274 + $0x120] sm:$0xff]
        %v3312 = vld [vmem:[%s3274 + $0x128] sm:$0xff]
        %v3313 = vld [vmem:[%s3274 + $0x130] sm:$0xff]
        %v3314 = vld [vmem:[%s3274 + $0x138] sm:$0xff]
        %v3315 = vld [vmem:[%s3274 + $0x140] sm:$0xff]
        %v3316 = vld [vmem:[%s3274 + $0x148] sm:$0xff]
        %v3317 = vld [vmem:[%s3274 + $0x150] sm:$0xff]
        %v3318 = vld [vmem:[%s3274 + $0x158] sm:$0xff]
        %v3319 = vld [vmem:[%s3274 + $0x160] sm:$0xff]
        %v3320 = vld [vmem:[%s3274 + $0x168] sm:$0xff]
        %v3321 = vld [vmem:[%s3274 + $0x170] sm:$0xff]
        %v3322 = vld [vmem:[%s3274 + $0x178] sm:$0xff]
        %v3323 = vld [vmem:[%s3274 + $0x180] sm:$0xff]
        %v3324 = vld [vmem:[%s3274 + $0x188] sm:$0xff]
        %v3325 = vld [vmem:[%s3274 + $0x190] sm:$0xff]
        %v3326 = vld [vmem:[%s3274 + $0x198] sm:$0xff]
        %v3327 = vld [vmem:[%s3274 + $0x1a0] sm:$0xff]
        %v3328 = vld [vmem:[%s3274 + $0x1a8] sm:$0xff]
        %v3329 = vld [vmem:[%s3274 + $0x1b0] sm:$0xff]
        %v3330 = vld [vmem:[%s3274 + $0x1b8] sm:$0xff]
        %v3331 = vld [vmem:[%s3274 + $0x1c0] sm:$0xff]
        %v3332 = vld [vmem:[%s3274 + $0x1c8] sm:$0xff]
        %v3333 = vld [vmem:[%s3274 + $0x1d0] sm:$0xff]
        %v3334 = vld [vmem:[%s3274 + $0x1d8] sm:$0xff]
        %v3335 = vld [vmem:[%s3274 + $0x1e0] sm:$0xff]
        %v3336 = vld [vmem:[%s3274 + $0x1e8] sm:$0xff]
        %v3337 = vld [vmem:[%s3274 + $0x1f0] sm:$0xff]
        %v3338 = vld [vmem:[%s3274 + $0x1f8] sm:$0xff]
        %v3339 = vld [vmem:[%s3274 + $0x200] sm:$0xff]
        %v3340 = vld [vmem:[%s3274 + $0x208] sm:$0xff]
        %v3341 = vld [vmem:[%s3274 + $0x210] sm:$0xff]
        %v3342 = vld [vmem:[%s3274 + $0x218] sm:$0xff]
        %v3343 = vld [vmem:[%s3274 + $0x220] sm:$0xff]
        %v3344 = vld [vmem:[%s3274 + $0x228] sm:$0xff]
        %v3345 = vld [vmem:[%s3274 + $0x230] sm:$0xff]
        %v3346 = vld [vmem:[%s3274 + $0x238] sm:$0xff]
        %v3347 = vld [vmem:[%s3274 + $0x240] sm:$0xff]
        %v3348 = vld [vmem:[%s3274 + $0x248] sm:$0xff]
        %v3349 = vld [vmem:[%s3274 + $0x250] sm:$0xff]
        %v3350 = vld [vmem:[%s3274 + $0x258] sm:$0xff]
        %v3351 = vld [vmem:[%s3274 + $0x260] sm:$0xff]
        %v3352 = vld [vmem:[%s3274 + $0x268] sm:$0xff]
        %v3353 = vld [vmem:[%s3274 + $0x270] sm:$0xff]
        %v3354 = vld [vmem:[%s3274 + $0x278] sm:$0xff]
        %v3355 = vld [vmem:[%s3274 + $0x280] sm:$0xff]
        %v3356 = vld [vmem:[%s3274 + $0x288] sm:$0xff]
        %v3357 = vld [vmem:[%s3274 + $0x290] sm:$0xff]
        %v3358 = vld [vmem:[%s3274 + $0x298] sm:$0xff]
        %v3359 = vld [vmem:[%s3274 + $0x2a0] sm:$0xff]
        %v3360 = vld [vmem:[%s3274 + $0x2a8] sm:$0xff]
        %v3361 = vld [vmem:[%s3274 + $0x2b0] sm:$0xff]
        %v3362 = vld [vmem:[%s3274 + $0x2b8] sm:$0xff]
        %v3363 = vld [vmem:[%s3274 + $0x2c0] sm:$0xff]
        %v3364 = vld [vmem:[%s3274 + $0x2c8] sm:$0xff]
        %v3365 = vld [vmem:[%s3274 + $0x2d0] sm:$0xff]
        %v3366 = vld [vmem:[%s3274 + $0x2d8] sm:$0xff]
        %v3367 = vld [vmem:[%s3274 + $0x2e0] sm:$0xff]
        %v3368 = vld [vmem:[%s3274 + $0x2e8] sm:$0xff]
        %v3369 = vld [vmem:[%s3274 + $0x2f0] sm:$0xff]
        %v3370 = vld [vmem:[%s3274 + $0x2f8] sm:$0xff]
        %v3371 = vld [vmem:[%s3274 + $0x300] sm:$0xff]
        %v3372 = vld [vmem:[%s3274 + $0x308] sm:$0xff]
        %v3373 = vld [vmem:[%s3274 + $0x310] sm:$0xff]
        %v3374 = vld [vmem:[%s3274 + $0x318] sm:$0xff]
        %v3375 = vld [vmem:[%s3274 + $0x320] sm:$0xff]
        %v3376 = vld [vmem:[%s3274 + $0x328] sm:$0xff]
        %v3377 = vld [vmem:[%s3274 + $0x330] sm:$0xff]
        %v3378 = vld [vmem:[%s3274 + $0x338] sm:$0xff]
        %v3379 = vld [vmem:[%s3274 + $0x340] sm:$0xff]
        %v3380 = vld [vmem:[%s3274 + $0x348] sm:$0xff]
        %v3381 = vld [vmem:[%s3274 + $0x350] sm:$0xff]
        %v3382 = vld [vmem:[%s3274 + $0x358] sm:$0xff]
        %v3383 = vld [vmem:[%s3274 + $0x360] sm:$0xff]
        %v3384 = vld [vmem:[%s3274 + $0x368] sm:$0xff]
        %v3385 = vld [vmem:[%s3274 + $0x370] sm:$0xff]
        %v3386 = vld [vmem:[%s3274 + $0x378] sm:$0xff]
        %v3387 = vld [vmem:[%s3274 + $0x380] sm:$0xff]
        %v3388 = vld [vmem:[%s3274 + $0x388] sm:$0xff]
        %v3389 = vld [vmem:[%s3274 + $0x390] sm:$0xff]
        %v3390 = vld [vmem:[%s3274 + $0x398] sm:$0xff]
        %v3391 = vld [vmem:[%s3274 + $0x3a0] sm:$0xff]
        %v3392 = vld [vmem:[%s3274 + $0x3a8] sm:$0xff]
        %v3393 = vld [vmem:[%s3274 + $0x3b0] sm:$0xff]
        %v3394 = vld [vmem:[%s3274 + $0x3b8] sm:$0xff]
        %v3395 = vld [vmem:[%s3274 + $0x3c0] sm:$0xff]
        %v3396 = vld [vmem:[%s3274 + $0x3c8] sm:$0xff]
        %v3397 = vld [vmem:[%s3274 + $0x3d0] sm:$0xff]
        %v3398 = vld [vmem:[%s3274 + $0x3d8] sm:$0xff]
        %v3399 = vld [vmem:[%s3274 + $0x3e0] sm:$0xff]
        %v3400 = vld [vmem:[%s3274 + $0x3e8] sm:$0xff]
        %v3401 = vld [vmem:[%s3274 + $0x3f0] sm:$0xff]
        %v3402 = vld [vmem:[%s3274 + $0x3f8] sm:$0xff]
        %s3403 = scalar_lea.vmem %s282, 12 [#allocation7]
        %v3404 = vld [vmem:[%s3403] sm:$0xf]
        %v3406 = vlaneseq
        %v3407 = vshrl.u32 %v3406, 7
        %v3408 = vsub.s32 0, %v3407
        %v3409 = vrot.slane %v3404, %v3408
        %v3410 = vlaneseq
        %v3411 = vshrl.u32 %v3410, 7
        %v3412 = vsub.s32 1, %v3411
        %v3413 = vrot.slane %v3404, %v3412
        %v3414 = vlaneseq
        %v3415 = vshrl.u32 %v3414, 7
        %v3416 = vsub.s32 2, %v3415
        %v3417 = vrot.slane %v3404, %v3416
        %v3418 = vlaneseq
        %v3419 = vshrl.u32 %v3418, 7
        %v3420 = vsub.s32 3, %v3419
        %v3421 = vrot.slane %v3404, %v3420
        %v3554 = vunpack.c.l.b16 %v3275
        %v3555 = vunpack.c.h.b16 %v3275
        %v3556 = vunpack.c.l.b16 %v3276
        %v3557 = vunpack.c.h.b16 %v3276
        %v3558 = vunpack.c.l.b16 %v3277
        %v3559 = vunpack.c.h.b16 %v3277
        %v3560 = vunpack.c.l.b16 %v3278
        %v3561 = vunpack.c.h.b16 %v3278
        %v3562 = vunpack.c.l.b16 %v3279
        %v3563 = vunpack.c.h.b16 %v3279
        %v3564 = vunpack.c.l.b16 %v3280
        %v3565 = vunpack.c.h.b16 %v3280
        %v3566 = vunpack.c.l.b16 %v3281
        %v3567 = vunpack.c.h.b16 %v3281
        %v3568 = vunpack.c.l.b16 %v3282
        %v3569 = vunpack.c.h.b16 %v3282
        %v3570 = vunpack.c.l.b16 %v3283
        %v3571 = vunpack.c.h.b16 %v3283
        %v3572 = vunpack.c.l.b16 %v3284
        %v3573 = vunpack.c.h.b16 %v3284
        %v3574 = vunpack.c.l.b16 %v3285
        %v3575 = vunpack.c.h.b16 %v3285
        %v3576 = vunpack.c.l.b16 %v3286
        %v3577 = vunpack.c.h.b16 %v3286
        %v3578 = vunpack.c.l.b16 %v3287
        %v3579 = vunpack.c.h.b16 %v3287
        %v3580 = vunpack.c.l.b16 %v3288
        %v3581 = vunpack.c.h.b16 %v3288
        %v3582 = vunpack.c.l.b16 %v3289
        %v3583 = vunpack.c.h.b16 %v3289
        %v3584 = vunpack.c.l.b16 %v3290
        %v3585 = vunpack.c.h.b16 %v3290
        %v3586 = vunpack.c.l.b16 %v3291
        %v3587 = vunpack.c.h.b16 %v3291
        %v3588 = vunpack.c.l.b16 %v3292
        %v3589 = vunpack.c.h.b16 %v3292
        %v3590 = vunpack.c.l.b16 %v3293
        %v3591 = vunpack.c.h.b16 %v3293
        %v3592 = vunpack.c.l.b16 %v3294
        %v3593 = vunpack.c.h.b16 %v3294
        %v3594 = vunpack.c.l.b16 %v3295
        %v3595 = vunpack.c.h.b16 %v3295
        %v3596 = vunpack.c.l.b16 %v3296
        %v3597 = vunpack.c.h.b16 %v3296
        %v3598 = vunpack.c.l.b16 %v3297
        %v3599 = vunpack.c.h.b16 %v3297
        %v3600 = vunpack.c.l.b16 %v3298
        %v3601 = vunpack.c.h.b16 %v3298
        %v3602 = vunpack.c.l.b16 %v3299
        %v3603 = vunpack.c.h.b16 %v3299
        %v3604 = vunpack.c.l.b16 %v3300
        %v3605 = vunpack.c.h.b16 %v3300
        %v3606 = vunpack.c.l.b16 %v3301
        %v3607 = vunpack.c.h.b16 %v3301
        %v3608 = vunpack.c.l.b16 %v3302
        %v3609 = vunpack.c.h.b16 %v3302
        %v3610 = vunpack.c.l.b16 %v3303
        %v3611 = vunpack.c.h.b16 %v3303
        %v3612 = vunpack.c.l.b16 %v3304
        %v3613 = vunpack.c.h.b16 %v3304
        %v3614 = vunpack.c.l.b16 %v3305
        %v3615 = vunpack.c.h.b16 %v3305
        %v3616 = vunpack.c.l.b16 %v3306
        %v3617 = vunpack.c.h.b16 %v3306
        %v3618 = vunpack.c.l.b16 %v3307
        %v3619 = vunpack.c.h.b16 %v3307
        %v3620 = vunpack.c.l.b16 %v3308
        %v3621 = vunpack.c.h.b16 %v3308
        %v3622 = vunpack.c.l.b16 %v3309
        %v3623 = vunpack.c.h.b16 %v3309
        %v3624 = vunpack.c.l.b16 %v3310
        %v3625 = vunpack.c.h.b16 %v3310
        %v3626 = vunpack.c.l.b16 %v3311
        %v3627 = vunpack.c.h.b16 %v3311
        %v3628 = vunpack.c.l.b16 %v3312
        %v3629 = vunpack.c.h.b16 %v3312
        %v3630 = vunpack.c.l.b16 %v3313
        %v3631 = vunpack.c.h.b16 %v3313
        %v3632 = vunpack.c.l.b16 %v3314
        %v3633 = vunpack.c.h.b16 %v3314
        %v3634 = vunpack.c.l.b16 %v3315
        %v3635 = vunpack.c.h.b16 %v3315
        %v3636 = vunpack.c.l.b16 %v3316
        %v3637 = vunpack.c.h.b16 %v3316
        %v3638 = vunpack.c.l.b16 %v3317
        %v3639 = vunpack.c.h.b16 %v3317
        %v3640 = vunpack.c.l.b16 %v3318
        %v3641 = vunpack.c.h.b16 %v3318
        %v3642 = vunpack.c.l.b16 %v3319
        %v3643 = vunpack.c.h.b16 %v3319
        %v3644 = vunpack.c.l.b16 %v3320
        %v3645 = vunpack.c.h.b16 %v3320
        %v3646 = vunpack.c.l.b16 %v3321
        %v3647 = vunpack.c.h.b16 %v3321
        %v3648 = vunpack.c.l.b16 %v3322
        %v3649 = vunpack.c.h.b16 %v3322
        %v3650 = vunpack.c.l.b16 %v3323
        %v3651 = vunpack.c.h.b16 %v3323
        %v3652 = vunpack.c.l.b16 %v3324
        %v3653 = vunpack.c.h.b16 %v3324
        %v3654 = vunpack.c.l.b16 %v3325
        %v3655 = vunpack.c.h.b16 %v3325
        %v3656 = vunpack.c.l.b16 %v3326
        %v3657 = vunpack.c.h.b16 %v3326
        %v3658 = vunpack.c.l.b16 %v3327
        %v3659 = vunpack.c.h.b16 %v3327
        %v3660 = vunpack.c.l.b16 %v3328
        %v3661 = vunpack.c.h.b16 %v3328
        %v3662 = vunpack.c.l.b16 %v3329
        %v3663 = vunpack.c.h.b16 %v3329
        %v3664 = vunpack.c.l.b16 %v3330
        %v3665 = vunpack.c.h.b16 %v3330
        %v3666 = vunpack.c.l.b16 %v3331
        %v3667 = vunpack.c.h.b16 %v3331
        %v3668 = vunpack.c.l.b16 %v3332
        %v3669 = vunpack.c.h.b16 %v3332
        %v3670 = vunpack.c.l.b16 %v3333
        %v3671 = vunpack.c.h.b16 %v3333
        %v3672 = vunpack.c.l.b16 %v3334
        %v3673 = vunpack.c.h.b16 %v3334
        %v3674 = vunpack.c.l.b16 %v3335
        %v3675 = vunpack.c.h.b16 %v3335
        %v3676 = vunpack.c.l.b16 %v3336
        %v3677 = vunpack.c.h.b16 %v3336
        %v3678 = vunpack.c.l.b16 %v3337
        %v3679 = vunpack.c.h.b16 %v3337
        %v3680 = vunpack.c.l.b16 %v3338
        %v3681 = vunpack.c.h.b16 %v3338
        %v3682 = vunpack.c.l.b16 %v3339
        %v3683 = vunpack.c.h.b16 %v3339
        %v3684 = vunpack.c.l.b16 %v3340
        %v3685 = vunpack.c.h.b16 %v3340
        %v3686 = vunpack.c.l.b16 %v3341
        %v3687 = vunpack.c.h.b16 %v3341
        %v3688 = vunpack.c.l.b16 %v3342
        %v3689 = vunpack.c.h.b16 %v3342
        %v3690 = vunpack.c.l.b16 %v3343
        %v3691 = vunpack.c.h.b16 %v3343
        %v3692 = vunpack.c.l.b16 %v3344
        %v3693 = vunpack.c.h.b16 %v3344
        %v3694 = vunpack.c.l.b16 %v3345
        %v3695 = vunpack.c.h.b16 %v3345
        %v3696 = vunpack.c.l.b16 %v3346
        %v3697 = vunpack.c.h.b16 %v3346
        %v3698 = vunpack.c.l.b16 %v3347
        %v3699 = vunpack.c.h.b16 %v3347
        %v3700 = vunpack.c.l.b16 %v3348
        %v3701 = vunpack.c.h.b16 %v3348
        %v3702 = vunpack.c.l.b16 %v3349
        %v3703 = vunpack.c.h.b16 %v3349
        %v3704 = vunpack.c.l.b16 %v3350
        %v3705 = vunpack.c.h.b16 %v3350
        %v3706 = vunpack.c.l.b16 %v3351
        %v3707 = vunpack.c.h.b16 %v3351
        %v3708 = vunpack.c.l.b16 %v3352
        %v3709 = vunpack.c.h.b16 %v3352
        %v3710 = vunpack.c.l.b16 %v3353
        %v3711 = vunpack.c.h.b16 %v3353
        %v3712 = vunpack.c.l.b16 %v3354
        %v3713 = vunpack.c.h.b16 %v3354
        %v3714 = vunpack.c.l.b16 %v3355
        %v3715 = vunpack.c.h.b16 %v3355
        %v3716 = vunpack.c.l.b16 %v3356
        %v3717 = vunpack.c.h.b16 %v3356
        %v3718 = vunpack.c.l.b16 %v3357
        %v3719 = vunpack.c.h.b16 %v3357
        %v3720 = vunpack.c.l.b16 %v3358
        %v3721 = vunpack.c.h.b16 %v3358
        %v3722 = vunpack.c.l.b16 %v3359
        %v3723 = vunpack.c.h.b16 %v3359
        %v3724 = vunpack.c.l.b16 %v3360
        %v3725 = vunpack.c.h.b16 %v3360
        %v3726 = vunpack.c.l.b16 %v3361
        %v3727 = vunpack.c.h.b16 %v3361
        %v3728 = vunpack.c.l.b16 %v3362
        %v3729 = vunpack.c.h.b16 %v3362
        %v3730 = vunpack.c.l.b16 %v3363
        %v3731 = vunpack.c.h.b16 %v3363
        %v3732 = vunpack.c.l.b16 %v3364
        %v3733 = vunpack.c.h.b16 %v3364
        %v3734 = vunpack.c.l.b16 %v3365
        %v3735 = vunpack.c.h.b16 %v3365
        %v3736 = vunpack.c.l.b16 %v3366
        %v3737 = vunpack.c.h.b16 %v3366
        %v3738 = vunpack.c.l.b16 %v3367
        %v3739 = vunpack.c.h.b16 %v3367
        %v3740 = vunpack.c.l.b16 %v3368
        %v3741 = vunpack.c.h.b16 %v3368
        %v3742 = vunpack.c.l.b16 %v3369
        %v3743 = vunpack.c.h.b16 %v3369
        %v3744 = vunpack.c.l.b16 %v3370
        %v3745 = vunpack.c.h.b16 %v3370
        %v3746 = vunpack.c.l.b16 %v3371
        %v3747 = vunpack.c.h.b16 %v3371
        %v3748 = vunpack.c.l.b16 %v3372
        %v3749 = vunpack.c.h.b16 %v3372
        %v3750 = vunpack.c.l.b16 %v3373
        %v3751 = vunpack.c.h.b16 %v3373
        %v3752 = vunpack.c.l.b16 %v3374
        %v3753 = vunpack.c.h.b16 %v3374
        %v3754 = vunpack.c.l.b16 %v3375
        %v3755 = vunpack.c.h.b16 %v3375
        %v3756 = vunpack.c.l.b16 %v3376
        %v3757 = vunpack.c.h.b16 %v3376
        %v3758 = vunpack.c.l.b16 %v3377
        %v3759 = vunpack.c.h.b16 %v3377
        %v3760 = vunpack.c.l.b16 %v3378
        %v3761 = vunpack.c.h.b16 %v3378
        %v3762 = vunpack.c.l.b16 %v3379
        %v3763 = vunpack.c.h.b16 %v3379
        %v3764 = vunpack.c.l.b16 %v3380
        %v3765 = vunpack.c.h.b16 %v3380
        %v3766 = vunpack.c.l.b16 %v3381
        %v3767 = vunpack.c.h.b16 %v3381
        %v3768 = vunpack.c.l.b16 %v3382
        %v3769 = vunpack.c.h.b16 %v3382
        %v3770 = vunpack.c.l.b16 %v3383
        %v3771 = vunpack.c.h.b16 %v3383
        %v3772 = vunpack.c.l.b16 %v3384
        %v3773 = vunpack.c.h.b16 %v3384
        %v3774 = vunpack.c.l.b16 %v3385
        %v3775 = vunpack.c.h.b16 %v3385
        %v3776 = vunpack.c.l.b16 %v3386
        %v3777 = vunpack.c.h.b16 %v3386
        %v3778 = vunpack.c.l.b16 %v3387
        %v3779 = vunpack.c.h.b16 %v3387
        %v3780 = vunpack.c.l.b16 %v3388
        %v3781 = vunpack.c.h.b16 %v3388
        %v3782 = vunpack.c.l.b16 %v3389
        %v3783 = vunpack.c.h.b16 %v3389
        %v3784 = vunpack.c.l.b16 %v3390
        %v3785 = vunpack.c.h.b16 %v3390
        %v3786 = vunpack.c.l.b16 %v3391
        %v3787 = vunpack.c.h.b16 %v3391
        %v3788 = vunpack.c.l.b16 %v3392
        %v3789 = vunpack.c.h.b16 %v3392
        %v3790 = vunpack.c.l.b16 %v3393
        %v3791 = vunpack.c.h.b16 %v3393
        %v3792 = vunpack.c.l.b16 %v3394
        %v3793 = vunpack.c.h.b16 %v3394
        %v3794 = vunpack.c.l.b16 %v3395
        %v3795 = vunpack.c.h.b16 %v3395
        %v3796 = vunpack.c.l.b16 %v3396
        %v3797 = vunpack.c.h.b16 %v3396
        %v3798 = vunpack.c.l.b16 %v3397
        %v3799 = vunpack.c.h.b16 %v3397
        %v3800 = vunpack.c.l.b16 %v3398
        %v3801 = vunpack.c.h.b16 %v3398
        %v3802 = vunpack.c.l.b16 %v3399
        %v3803 = vunpack.c.h.b16 %v3399
        %v3804 = vunpack.c.l.b16 %v3400
        %v3805 = vunpack.c.h.b16 %v3400
        %v3806 = vunpack.c.l.b16 %v3401
        %v3807 = vunpack.c.h.b16 %v3401
        %v3808 = vunpack.c.l.b16 %v3402
        %v3809 = vunpack.c.h.b16 %v3402
        %v3810 = vpack.c.b16 %v3558, %v3554
        %v3811 = vpack.c.b16 %v3559, %v3555
        %v3812 = vpack.c.b16 %v3560, %v3556
        %v3813 = vpack.c.b16 %v3561, %v3557
        %v3814 = vpack.c.b16 %v3566, %v3562
        %v3815 = vpack.c.b16 %v3567, %v3563
        %v3816 = vpack.c.b16 %v3568, %v3564
        %v3817 = vpack.c.b16 %v3569, %v3565
        %v3818 = vpack.c.b16 %v3574, %v3570
        %v3819 = vpack.c.b16 %v3575, %v3571
        %v3820 = vpack.c.b16 %v3576, %v3572
        %v3821 = vpack.c.b16 %v3577, %v3573
        %v3822 = vpack.c.b16 %v3582, %v3578
        %v3823 = vpack.c.b16 %v3583, %v3579
        %v3824 = vpack.c.b16 %v3584, %v3580
        %v3825 = vpack.c.b16 %v3585, %v3581
        %v3826 = vpack.c.b16 %v3590, %v3586
        %v3827 = vpack.c.b16 %v3591, %v3587
        %v3828 = vpack.c.b16 %v3592, %v3588
        %v3829 = vpack.c.b16 %v3593, %v3589
        %v3830 = vpack.c.b16 %v3598, %v3594
        %v3831 = vpack.c.b16 %v3599, %v3595
        %v3832 = vpack.c.b16 %v3600, %v3596
        %v3833 = vpack.c.b16 %v3601, %v3597
        %v3834 = vpack.c.b16 %v3606, %v3602
        %v3835 = vpack.c.b16 %v3607, %v3603
        %v3836 = vpack.c.b16 %v3608, %v3604
        %v3837 = vpack.c.b16 %v3609, %v3605
        %v3838 = vpack.c.b16 %v3614, %v3610
        %v3839 = vpack.c.b16 %v3615, %v3611
        %v3840 = vpack.c.b16 %v3616, %v3612
        %v3841 = vpack.c.b16 %v3617, %v3613
        %v3842 = vpack.c.b16 %v3622, %v3618
        %v3843 = vpack.c.b16 %v3623, %v3619
        %v3844 = vpack.c.b16 %v3624, %v3620
        %v3845 = vpack.c.b16 %v3625, %v3621
        %v3846 = vpack.c.b16 %v3630, %v3626
        %v3847 = vpack.c.b16 %v3631, %v3627
        %v3848 = vpack.c.b16 %v3632, %v3628
        %v3849 = vpack.c.b16 %v3633, %v3629
        %v3850 = vpack.c.b16 %v3638, %v3634
        %v3851 = vpack.c.b16 %v3639, %v3635
        %v3852 = vpack.c.b16 %v3640, %v3636
        %v3853 = vpack.c.b16 %v3641, %v3637
        %v3854 = vpack.c.b16 %v3646, %v3642
        %v3855 = vpack.c.b16 %v3647, %v3643
        %v3856 = vpack.c.b16 %v3648, %v3644
        %v3857 = vpack.c.b16 %v3649, %v3645
        %v3858 = vpack.c.b16 %v3654, %v3650
        %v3859 = vpack.c.b16 %v3655, %v3651
        %v3860 = vpack.c.b16 %v3656, %v3652
        %v3861 = vpack.c.b16 %v3657, %v3653
        %v3862 = vpack.c.b16 %v3662, %v3658
        %v3863 = vpack.c.b16 %v3663, %v3659
        %v3864 = vpack.c.b16 %v3664, %v3660
        %v3865 = vpack.c.b16 %v3665, %v3661
        %v3866 = vpack.c.b16 %v3670, %v3666
        %v3867 = vpack.c.b16 %v3671, %v3667
        %v3868 = vpack.c.b16 %v3672, %v3668
        %v3869 = vpack.c.b16 %v3673, %v3669
        %v3870 = vpack.c.b16 %v3678, %v3674
        %v3871 = vpack.c.b16 %v3679, %v3675
        %v3872 = vpack.c.b16 %v3680, %v3676
        %v3873 = vpack.c.b16 %v3681, %v3677
        %v3874 = vpack.c.b16 %v3686, %v3682
        %v3875 = vpack.c.b16 %v3687, %v3683
        %v3876 = vpack.c.b16 %v3688, %v3684
        %v3877 = vpack.c.b16 %v3689, %v3685
        %v3878 = vpack.c.b16 %v3694, %v3690
        %v3879 = vpack.c.b16 %v3695, %v3691
        %v3880 = vpack.c.b16 %v3696, %v3692
        %v3881 = vpack.c.b16 %v3697, %v3693
        %v3882 = vpack.c.b16 %v3702, %v3698
        %v3883 = vpack.c.b16 %v3703, %v3699
        %v3884 = vpack.c.b16 %v3704, %v3700
        %v3885 = vpack.c.b16 %v3705, %v3701
        %v3886 = vpack.c.b16 %v3710, %v3706
        %v3887 = vpack.c.b16 %v3711, %v3707
        %v3888 = vpack.c.b16 %v3712, %v3708
        %v3889 = vpack.c.b16 %v3713, %v3709
        %v3890 = vpack.c.b16 %v3718, %v3714
        %v3891 = vpack.c.b16 %v3719, %v3715
        %v3892 = vpack.c.b16 %v3720, %v3716
        %v3893 = vpack.c.b16 %v3721, %v3717
        %v3894 = vpack.c.b16 %v3726, %v3722
        %v3895 = vpack.c.b16 %v3727, %v3723
        %v3896 = vpack.c.b16 %v3728, %v3724
        %v3897 = vpack.c.b16 %v3729, %v3725
        %v3898 = vpack.c.b16 %v3734, %v3730
        %v3899 = vpack.c.b16 %v3735, %v3731
        %v3900 = vpack.c.b16 %v3736, %v3732
        %v3901 = vpack.c.b16 %v3737, %v3733
        %v3902 = vpack.c.b16 %v3742, %v3738
        %v3903 = vpack.c.b16 %v3743, %v3739
        %v3904 = vpack.c.b16 %v3744, %v3740
        %v3905 = vpack.c.b16 %v3745, %v3741
        %v3906 = vpack.c.b16 %v3750, %v3746
        %v3907 = vpack.c.b16 %v3751, %v3747
        %v3908 = vpack.c.b16 %v3752, %v3748
        %v3909 = vpack.c.b16 %v3753, %v3749
        %v3910 = vpack.c.b16 %v3758, %v3754
        %v3911 = vpack.c.b16 %v3759, %v3755
        %v3912 = vpack.c.b16 %v3760, %v3756
        %v3913 = vpack.c.b16 %v3761, %v3757
        %v3914 = vpack.c.b16 %v3766, %v3762
        %v3915 = vpack.c.b16 %v3767, %v3763
        %v3916 = vpack.c.b16 %v3768, %v3764
        %v3917 = vpack.c.b16 %v3769, %v3765
        %v3918 = vpack.c.b16 %v3774, %v3770
        %v3919 = vpack.c.b16 %v3775, %v3771
        %v3920 = vpack.c.b16 %v3776, %v3772
        %v3921 = vpack.c.b16 %v3777, %v3773
        %v3922 = vpack.c.b16 %v3782, %v3778
        %v3923 = vpack.c.b16 %v3783, %v3779
        %v3924 = vpack.c.b16 %v3784, %v3780
        %v3925 = vpack.c.b16 %v3785, %v3781
        %v3926 = vpack.c.b16 %v3790, %v3786
        %v3927 = vpack.c.b16 %v3791, %v3787
        %v3928 = vpack.c.b16 %v3792, %v3788
        %v3929 = vpack.c.b16 %v3793, %v3789
        %v3930 = vpack.c.b16 %v3798, %v3794
        %v3931 = vpack.c.b16 %v3799, %v3795
        %v3932 = vpack.c.b16 %v3800, %v3796
        %v3933 = vpack.c.b16 %v3801, %v3797
        %v3934 = vpack.c.b16 %v3806, %v3802
        %v3935 = vpack.c.b16 %v3807, %v3803
        %v3936 = vpack.c.b16 %v3808, %v3804
        %v3937 = vpack.c.b16 %v3809, %v3805
        %4066 = vmatprep.subr.bf16.mxu0 %v3811
        %4067 = vmatpush1.bf16.msra.mxu0 %v3810
        %4068 = vmatprep.subr.bf16.mxu0 %v3815
        %4069 = vmatpush1.bf16.msra.mxu0 %v3814
        %4070 = vmatprep.subr.bf16.mxu0 %v3819
        %4071 = vmatpush1.bf16.msra.mxu0 %v3818
        %4072 = vmatprep.subr.bf16.mxu0 %v3823
        %4073 = vmatpush1.bf16.msra.mxu0 %v3822
        %4074 = vmatprep.subr.bf16.mxu0 %v3827
        %4075 = vmatpush1.bf16.msra.mxu0 %v3826
        %4076 = vmatprep.subr.bf16.mxu0 %v3831
        %4077 = vmatpush1.bf16.msra.mxu0 %v3830
        %4078 = vmatprep.subr.bf16.mxu0 %v3835
        %4079 = vmatpush1.bf16.msra.mxu0 %v3834
        %4080 = vmatprep.subr.bf16.mxu0 %v3839
        %4081 = vmatpush1.bf16.msra.mxu0 %v3838
        %4082 = vmatprep.subr.bf16.mxu0 %v3843
        %4083 = vmatpush1.bf16.msra.mxu0 %v3842
        %4084 = vmatprep.subr.bf16.mxu0 %v3847
        %4085 = vmatpush1.bf16.msra.mxu0 %v3846
        %4086 = vmatprep.subr.bf16.mxu0 %v3851
        %4087 = vmatpush1.bf16.msra.mxu0 %v3850
        %4088 = vmatprep.subr.bf16.mxu0 %v3855
        %4089 = vmatpush1.bf16.msra.mxu0 %v3854
        %4090 = vmatprep.subr.bf16.mxu0 %v3859
        %4091 = vmatpush1.bf16.msra.mxu0 %v3858
        %4092 = vmatprep.subr.bf16.mxu0 %v3863
        %4093 = vmatpush1.bf16.msra.mxu0 %v3862
        %4094 = vmatprep.subr.bf16.mxu0 %v3867
        %4095 = vmatpush1.bf16.msra.mxu0 %v3866
        %4096 = vmatprep.subr.bf16.mxu0 %v3871
        %4097 = vmatpush1.bf16.msra.mxu0 %v3870
        %4098 = vmatprep.mubr.bf16.mxu0 %v3271
        %4099 = vmatmul.mubr.bf16.gmra.mrb[0].mxu0 %v3270
        %v4100 = vpop.f32.mrb[0].mxu0
        %v4101 = vadd.f32 %v3409, %v4100
        %v4102 = vpop.f32.mrb[0].mxu0
        %v4103 = vadd.f32 %v3413, %v4102
        %v4104 = vpop.f32.mrb[0].mxu0
        %v4105 = vpop.f32.mrb[0].mxu0
        %4106 = vdwg.mxu0
        %4107 = vmatprep.subr.bf16.mxu0 %v3875
        %4108 = vmatpush1.bf16.msra.mxu0 %v3874
        %4109 = vmatprep.subr.bf16.mxu0 %v3879
        %4110 = vmatpush1.bf16.msra.mxu0 %v3878
        %4111 = vmatprep.subr.bf16.mxu0 %v3883
        %4112 = vmatpush1.bf16.msra.mxu0 %v3882
        %4113 = vmatprep.subr.bf16.mxu0 %v3887
        %4114 = vmatpush1.bf16.msra.mxu0 %v3886
        %4115 = vmatprep.subr.bf16.mxu0 %v3891
        %4116 = vmatpush1.bf16.msra.mxu0 %v3890
        %4117 = vmatprep.subr.bf16.mxu0 %v3895
        %4118 = vmatpush1.bf16.msra.mxu0 %v3894
        %4119 = vmatprep.subr.bf16.mxu0 %v3899
        %4120 = vmatpush1.bf16.msra.mxu0 %v3898
        %4121 = vmatprep.subr.bf16.mxu0 %v3903
        %4122 = vmatpush1.bf16.msra.mxu0 %v3902
        %4123 = vmatprep.subr.bf16.mxu0 %v3907
        %4124 = vmatpush1.bf16.msra.mxu0 %v3906
        %4125 = vmatprep.subr.bf16.mxu0 %v3911
        %4126 = vmatpush1.bf16.msra.mxu0 %v3910
        %4127 = vmatprep.subr.bf16.mxu0 %v3915
        %4128 = vmatpush1.bf16.msra.mxu0 %v3914
        %4129 = vmatprep.subr.bf16.mxu0 %v3919
        %4130 = vmatpush1.bf16.msra.mxu0 %v3918
        %4131 = vmatprep.subr.bf16.mxu0 %v3923
        %4132 = vmatpush1.bf16.msra.mxu0 %v3922
        %4133 = vmatprep.subr.bf16.mxu0 %v3927
        %4134 = vmatpush1.bf16.msra.mxu0 %v3926
        %4135 = vmatprep.subr.bf16.mxu0 %v3931
        %4136 = vmatpush1.bf16.msra.mxu0 %v3930
        %4137 = vmatprep.subr.bf16.mxu0 %v3935
        %4138 = vmatpush1.bf16.msra.mxu0 %v3934
        %4139 = vmatprep.mubr.bf16.mxu0 %v3273
        %4140 = vmatmul.mubr.bf16.gmra.mrb[0].mxu0 %v3272
        %v4141 = vpop.f32.mrb[0].mxu0
        %v4142 = vadd.f32 %v4101, %v4141
        %v4143 = vpop.f32.mrb[0].mxu0
        %v4144 = vadd.f32 %v4103, %v4143
        %v4145 = vpop.f32.mrb[0].mxu0
        %v4146 = vpop.f32.mrb[0].mxu0
        %4147 = vdwg.mxu0
        %4148 = vmatprep.subr.bf16.mxu0 %v3813
        %4149 = vmatpush1.bf16.msra.mxu0 %v3812
        %4150 = vmatprep.subr.bf16.mxu0 %v3817
        %4151 = vmatpush1.bf16.msra.mxu0 %v3816
        %4152 = vmatprep.subr.bf16.mxu0 %v3821
        %4153 = vmatpush1.bf16.msra.mxu0 %v3820
        %4154 = vmatprep.subr.bf16.mxu0 %v3825
        %4155 = vmatpush1.bf16.msra.mxu0 %v3824
        %4156 = vmatprep.subr.bf16.mxu0 %v3829
        %4157 = vmatpush1.bf16.msra.mxu0 %v3828
        %4158 = vmatprep.subr.bf16.mxu0 %v3833
        %4159 = vmatpush1.bf16.msra.mxu0 %v3832
        %4160 = vmatprep.subr.bf16.mxu0 %v3837
        %4161 = vmatpush1.bf16.msra.mxu0 %v3836
        %4162 = vmatprep.subr.bf16.mxu0 %v3841
        %4163 = vmatpush1.bf16.msra.mxu0 %v3840
        %4164 = vmatprep.subr.bf16.mxu0 %v3845
        %4165 = vmatpush1.bf16.msra.mxu0 %v3844
        %4166 = vmatprep.subr.bf16.mxu0 %v3849
        %4167 = vmatpush1.bf16.msra.mxu0 %v3848
        %4168 = vmatprep.subr.bf16.mxu0 %v3853
        %4169 = vmatpush1.bf16.msra.mxu0 %v3852
        %4170 = vmatprep.subr.bf16.mxu0 %v3857
        %4171 = vmatpush1.bf16.msra.mxu0 %v3856
        %4172 = vmatprep.subr.bf16.mxu0 %v3861
        %4173 = vmatpush1.bf16.msra.mxu0 %v3860
        %4174 = vmatprep.subr.bf16.mxu0 %v3865
        %4175 = vmatpush1.bf16.msra.mxu0 %v3864
        %4176 = vmatprep.subr.bf16.mxu0 %v3869
        %4177 = vmatpush1.bf16.msra.mxu0 %v3868
        %4178 = vmatprep.subr.bf16.mxu0 %v3873
        %4179 = vmatpush1.bf16.msra.mxu0 %v3872
        %4180 = vmatprep.mubr.bf16.mxu0 %v3271
        %4181 = vmatmul.mubr.bf16.gmra.mrb[0].mxu0 %v3270
        %v4182 = vpop.f32.mrb[0].mxu0
        %v4183 = vadd.f32 %v3417, %v4182
        %v4184 = vpop.f32.mrb[0].mxu0
        %v4185 = vadd.f32 %v3421, %v4184
        %v4186 = vpop.f32.mrb[0].mxu0
        %v4187 = vpop.f32.mrb[0].mxu0
        %4188 = vdwg.mxu0
        %4189 = vmatprep.subr.bf16.mxu0 %v3877
        %4190 = vmatpush1.bf16.msra.mxu0 %v3876
        %4191 = vmatprep.subr.bf16.mxu0 %v3881
        %4192 = vmatpush1.bf16.msra.mxu0 %v3880
        %4193 = vmatprep.subr.bf16.mxu0 %v3885
        %4194 = vmatpush1.bf16.msra.mxu0 %v3884
        %4195 = vmatprep.subr.bf16.mxu0 %v3889
        %4196 = vmatpush1.bf16.msra.mxu0 %v3888
        %4197 = vmatprep.subr.bf16.mxu0 %v3893
        %4198 = vmatpush1.bf16.msra.mxu0 %v3892
        %4199 = vmatprep.subr.bf16.mxu0 %v3897
        %4200 = vmatpush1.bf16.msra.mxu0 %v3896
        %4201 = vmatprep.subr.bf16.mxu0 %v3901
        %4202 = vmatpush1.bf16.msra.mxu0 %v3900
        %4203 = vmatprep.subr.bf16.mxu0 %v3905
        %4204 = vmatpush1.bf16.msra.mxu0 %v3904
        %4205 = vmatprep.subr.bf16.mxu0 %v3909
        %4206 = vmatpush1.bf16.msra.mxu0 %v3908
        %4207 = vmatprep.subr.bf16.mxu0 %v3913
        %4208 = vmatpush1.bf16.msra.mxu0 %v3912
        %4209 = vmatprep.subr.bf16.mxu0 %v3917
        %4210 = vmatpush1.bf16.msra.mxu0 %v3916
        %4211 = vmatprep.subr.bf16.mxu0 %v3921
        %4212 = vmatpush1.bf16.msra.mxu0 %v3920
        %4213 = vmatprep.subr.bf16.mxu0 %v3925
        %4214 = vmatpush1.bf16.msra.mxu0 %v3924
        %4215 = vmatprep.subr.bf16.mxu0 %v3929
        %4216 = vmatpush1.bf16.msra.mxu0 %v3928
        %4217 = vmatprep.subr.bf16.mxu0 %v3933
        %4218 = vmatpush1.bf16.msra.mxu0 %v3932
        %4219 = vmatprep.subr.bf16.mxu0 %v3937
        %4220 = vmatpush1.bf16.msra.mxu0 %v3936
        %4221 = vmatprep.mubr.bf16.mxu0 %v3273
        %4222 = vmatmul.mubr.bf16.gmra.mrb[0].mxu0 %v3272
        %v4223 = vpop.f32.mrb[0].mxu0
        %v4224 = vadd.f32 %v4183, %v4223
        %v4225 = vpop.f32.mrb[0].mxu0
        %v4226 = vadd.f32 %v4185, %v4225
        %v4227 = vpop.f32.mrb[0].mxu0
        %v4228 = vpop.f32.mrb[0].mxu0
        %4229 = vdwg.mxu0
        %vm4230 = vcmp.ge.f32.partialorder %v4142, 0.0
        %vm4231 = vcmp.ge.f32.partialorder %v4144, 0.0
        %vm4232 = vcmp.ge.f32.partialorder %v4224, 0.0
        %vm4233 = vcmp.ge.f32.partialorder %v4226, 0.0
        %v4234 = vmul.f32 %v4142, 0.2
        %v4235 = vmul.f32 %v4144, 0.2
        %v4236 = vmul.f32 %v4224, 0.2
        %v4237 = vmul.f32 %v4226, 0.2
        %v4238 = vsel %vm4230, %v4142, %v4234
        %v4239 = vsel %vm4231, %v4144, %v4235
        %v4240 = vsel %vm4232, %v4224, %v4236
        %v4241 = vsel %vm4233, %v4226, %v4237
        %v4242 = vpack.c.bf16 %v4238, %v4238
        %v4243 = vpack.c.bf16 %v4239, %v4239
        %v4244 = vpack.c.bf16 %v4240, %v4240
        %v4245 = vpack.c.bf16 %v4241, %v4241
        %v4246 = vld [vmem:[%s291] sm:$0xff]
        %v4247 = vld [vmem:[%s291 + $0x8] sm:$0xff]
        %v4248 = vld [vmem:[%s291 + $0x10] sm:$0xff]
        %v4249 = vld [vmem:[%s291 + $0x18] sm:$0xff]
        %v4250 = vld [vmem:[%s291 + $0x20] sm:$0xff]
        %v4251 = vld [vmem:[%s291 + $0x28] sm:$0xff]
        %v4252 = vld [vmem:[%s291 + $0x30] sm:$0xff]
        %v4253 = vld [vmem:[%s291 + $0x38] sm:$0xff]
        %v4254 = vld [vmem:[%s291 + $0x40] sm:$0xff]
        %v4255 = vld [vmem:[%s291 + $0x48] sm:$0xff]
        %v4256 = vld [vmem:[%s291 + $0x50] sm:$0xff]
        %v4257 = vld [vmem:[%s291 + $0x58] sm:$0xff]
        %v4258 = vld [vmem:[%s291 + $0x60] sm:$0xff]
        %v4259 = vld [vmem:[%s291 + $0x68] sm:$0xff]
        %v4260 = vld [vmem:[%s291 + $0x70] sm:$0xff]
        %v4261 = vld [vmem:[%s291 + $0x78] sm:$0xff]
        %v4262 = vld [vmem:[%s291 + $0x80] sm:$0xff]
        %v4263 = vld [vmem:[%s291 + $0x88] sm:$0xff]
        %v4264 = vld [vmem:[%s291 + $0x90] sm:$0xff]
        %v4265 = vld [vmem:[%s291 + $0x98] sm:$0xff]
        %v4266 = vld [vmem:[%s291 + $0xa0] sm:$0xff]
        %v4267 = vld [vmem:[%s291 + $0xa8] sm:$0xff]
        %v4268 = vld [vmem:[%s291 + $0xb0] sm:$0xff]
        %v4269 = vld [vmem:[%s291 + $0xb8] sm:$0xff]
        %v4270 = vld [vmem:[%s291 + $0xc0] sm:$0xff]
        %v4271 = vld [vmem:[%s291 + $0xc8] sm:$0xff]
        %v4272 = vld [vmem:[%s291 + $0xd0] sm:$0xff]
        %v4273 = vld [vmem:[%s291 + $0xd8] sm:$0xff]
        %v4274 = vld [vmem:[%s291 + $0xe0] sm:$0xff]
        %v4275 = vld [vmem:[%s291 + $0xe8] sm:$0xff]
        %v4276 = vld [vmem:[%s291 + $0xf0] sm:$0xff]
        %v4277 = vld [vmem:[%s291 + $0xf8] sm:$0xff]
        %v4278 = vld [vmem:[%s291 + $0x100] sm:$0xff]
        %v4279 = vld [vmem:[%s291 + $0x108] sm:$0xff]
        %v4280 = vld [vmem:[%s291 + $0x110] sm:$0xff]
        %v4281 = vld [vmem:[%s291 + $0x118] sm:$0xff]
        %v4282 = vld [vmem:[%s291 + $0x120] sm:$0xff]
        %v4283 = vld [vmem:[%s291 + $0x128] sm:$0xff]
        %v4284 = vld [vmem:[%s291 + $0x130] sm:$0xff]
        %v4285 = vld [vmem:[%s291 + $0x138] sm:$0xff]
        %v4286 = vld [vmem:[%s291 + $0x140] sm:$0xff]
        %v4287 = vld [vmem:[%s291 + $0x148] sm:$0xff]
        %v4288 = vld [vmem:[%s291 + $0x150] sm:$0xff]
        %v4289 = vld [vmem:[%s291 + $0x158] sm:$0xff]
        %v4290 = vld [vmem:[%s291 + $0x160] sm:$0xff]
        %v4291 = vld [vmem:[%s291 + $0x168] sm:$0xff]
        %v4292 = vld [vmem:[%s291 + $0x170] sm:$0xff]
        %v4293 = vld [vmem:[%s291 + $0x178] sm:$0xff]
        %v4294 = vld [vmem:[%s291 + $0x180] sm:$0xff]
        %v4295 = vld [vmem:[%s291 + $0x188] sm:$0xff]
        %v4296 = vld [vmem:[%s291 + $0x190] sm:$0xff]
        %v4297 = vld [vmem:[%s291 + $0x198] sm:$0xff]
        %v4298 = vld [vmem:[%s291 + $0x1a0] sm:$0xff]
        %v4299 = vld [vmem:[%s291 + $0x1a8] sm:$0xff]
        %v4300 = vld [vmem:[%s291 + $0x1b0] sm:$0xff]
        %v4301 = vld [vmem:[%s291 + $0x1b8] sm:$0xff]
        %v4302 = vld [vmem:[%s291 + $0x1c0] sm:$0xff]
        %v4303 = vld [vmem:[%s291 + $0x1c8] sm:$0xff]
        %v4304 = vld [vmem:[%s291 + $0x1d0] sm:$0xff]
        %v4305 = vld [vmem:[%s291 + $0x1d8] sm:$0xff]
        %v4306 = vld [vmem:[%s291 + $0x1e0] sm:$0xff]
        %v4307 = vld [vmem:[%s291 + $0x1e8] sm:$0xff]
        %v4308 = vld [vmem:[%s291 + $0x1f0] sm:$0xff]
        %v4309 = vld [vmem:[%s291 + $0x1f8] sm:$0xff]
        %v4310 = vld [vmem:[%s291 + $0x200] sm:$0xff]
        %v4311 = vld [vmem:[%s291 + $0x208] sm:$0xff]
        %v4312 = vld [vmem:[%s291 + $0x210] sm:$0xff]
        %v4313 = vld [vmem:[%s291 + $0x218] sm:$0xff]
        %v4314 = vld [vmem:[%s291 + $0x220] sm:$0xff]
        %v4315 = vld [vmem:[%s291 + $0x228] sm:$0xff]
        %v4316 = vld [vmem:[%s291 + $0x230] sm:$0xff]
        %v4317 = vld [vmem:[%s291 + $0x238] sm:$0xff]
        %v4318 = vld [vmem:[%s291 + $0x240] sm:$0xff]
        %v4319 = vld [vmem:[%s291 + $0x248] sm:$0xff]
        %v4320 = vld [vmem:[%s291 + $0x250] sm:$0xff]
        %v4321 = vld [vmem:[%s291 + $0x258] sm:$0xff]
        %v4322 = vld [vmem:[%s291 + $0x260] sm:$0xff]
        %v4323 = vld [vmem:[%s291 + $0x268] sm:$0xff]
        %v4324 = vld [vmem:[%s291 + $0x270] sm:$0xff]
        %v4325 = vld [vmem:[%s291 + $0x278] sm:$0xff]
        %v4326 = vld [vmem:[%s291 + $0x280] sm:$0xff]
        %v4327 = vld [vmem:[%s291 + $0x288] sm:$0xff]
        %v4328 = vld [vmem:[%s291 + $0x290] sm:$0xff]
        %v4329 = vld [vmem:[%s291 + $0x298] sm:$0xff]
        %v4330 = vld [vmem:[%s291 + $0x2a0] sm:$0xff]
        %v4331 = vld [vmem:[%s291 + $0x2a8] sm:$0xff]
        %v4332 = vld [vmem:[%s291 + $0x2b0] sm:$0xff]
        %v4333 = vld [vmem:[%s291 + $0x2b8] sm:$0xff]
        %v4334 = vld [vmem:[%s291 + $0x2c0] sm:$0xff]
        %v4335 = vld [vmem:[%s291 + $0x2c8] sm:$0xff]
        %v4336 = vld [vmem:[%s291 + $0x2d0] sm:$0xff]
        %v4337 = vld [vmem:[%s291 + $0x2d8] sm:$0xff]
        %v4338 = vld [vmem:[%s291 + $0x2e0] sm:$0xff]
        %v4339 = vld [vmem:[%s291 + $0x2e8] sm:$0xff]
        %v4340 = vld [vmem:[%s291 + $0x2f0] sm:$0xff]
        %v4341 = vld [vmem:[%s291 + $0x2f8] sm:$0xff]
        %v4342 = vld [vmem:[%s291 + $0x300] sm:$0xff]
        %v4343 = vld [vmem:[%s291 + $0x308] sm:$0xff]
        %v4344 = vld [vmem:[%s291 + $0x310] sm:$0xff]
        %v4345 = vld [vmem:[%s291 + $0x318] sm:$0xff]
        %v4346 = vld [vmem:[%s291 + $0x320] sm:$0xff]
        %v4347 = vld [vmem:[%s291 + $0x328] sm:$0xff]
        %v4348 = vld [vmem:[%s291 + $0x330] sm:$0xff]
        %v4349 = vld [vmem:[%s291 + $0x338] sm:$0xff]
        %v4350 = vld [vmem:[%s291 + $0x340] sm:$0xff]
        %v4351 = vld [vmem:[%s291 + $0x348] sm:$0xff]
        %v4352 = vld [vmem:[%s291 + $0x350] sm:$0xff]
        %v4353 = vld [vmem:[%s291 + $0x358] sm:$0xff]
        %v4354 = vld [vmem:[%s291 + $0x360] sm:$0xff]
        %v4355 = vld [vmem:[%s291 + $0x368] sm:$0xff]
        %v4356 = vld [vmem:[%s291 + $0x370] sm:$0xff]
        %v4357 = vld [vmem:[%s291 + $0x378] sm:$0xff]
        %v4358 = vld [vmem:[%s291 + $0x380] sm:$0xff]
        %v4359 = vld [vmem:[%s291 + $0x388] sm:$0xff]
        %v4360 = vld [vmem:[%s291 + $0x390] sm:$0xff]
        %v4361 = vld [vmem:[%s291 + $0x398] sm:$0xff]
        %v4362 = vld [vmem:[%s291 + $0x3a0] sm:$0xff]
        %v4363 = vld [vmem:[%s291 + $0x3a8] sm:$0xff]
        %v4364 = vld [vmem:[%s291 + $0x3b0] sm:$0xff]
        %v4365 = vld [vmem:[%s291 + $0x3b8] sm:$0xff]
        %v4366 = vld [vmem:[%s291 + $0x3c0] sm:$0xff]
        %v4367 = vld [vmem:[%s291 + $0x3c8] sm:$0xff]
        %v4368 = vld [vmem:[%s291 + $0x3d0] sm:$0xff]
        %v4369 = vld [vmem:[%s291 + $0x3d8] sm:$0xff]
        %v4370 = vld [vmem:[%s291 + $0x3e0] sm:$0xff]
        %v4371 = vld [vmem:[%s291 + $0x3e8] sm:$0xff]
        %v4372 = vld [vmem:[%s291 + $0x3f0] sm:$0xff]
        %v4373 = vld [vmem:[%s291 + $0x3f8] sm:$0xff]
        %v4502 = vunpack.c.l.b16 %v4246
        %v4503 = vunpack.c.h.b16 %v4246
        %v4504 = vunpack.c.l.b16 %v4247
        %v4505 = vunpack.c.h.b16 %v4247
        %v4506 = vunpack.c.l.b16 %v4248
        %v4507 = vunpack.c.h.b16 %v4248
        %v4508 = vunpack.c.l.b16 %v4249
        %v4509 = vunpack.c.h.b16 %v4249
        %v4510 = vunpack.c.l.b16 %v4250
        %v4511 = vunpack.c.h.b16 %v4250
        %v4512 = vunpack.c.l.b16 %v4251
        %v4513 = vunpack.c.h.b16 %v4251
        %v4514 = vunpack.c.l.b16 %v4252
        %v4515 = vunpack.c.h.b16 %v4252
        %v4516 = vunpack.c.l.b16 %v4253
        %v4517 = vunpack.c.h.b16 %v4253
        %v4518 = vunpack.c.l.b16 %v4254
        %v4519 = vunpack.c.h.b16 %v4254
        %v4520 = vunpack.c.l.b16 %v4255
        %v4521 = vunpack.c.h.b16 %v4255
        %v4522 = vunpack.c.l.b16 %v4256
        %v4523 = vunpack.c.h.b16 %v4256
        %v4524 = vunpack.c.l.b16 %v4257
        %v4525 = vunpack.c.h.b16 %v4257
        %v4526 = vunpack.c.l.b16 %v4258
        %v4527 = vunpack.c.h.b16 %v4258
        %v4528 = vunpack.c.l.b16 %v4259
        %v4529 = vunpack.c.h.b16 %v4259
        %v4530 = vunpack.c.l.b16 %v4260
        %v4531 = vunpack.c.h.b16 %v4260
        %v4532 = vunpack.c.l.b16 %v4261
        %v4533 = vunpack.c.h.b16 %v4261
        %v4534 = vunpack.c.l.b16 %v4262
        %v4535 = vunpack.c.h.b16 %v4262
        %v4536 = vunpack.c.l.b16 %v4263
        %v4537 = vunpack.c.h.b16 %v4263
        %v4538 = vunpack.c.l.b16 %v4264
        %v4539 = vunpack.c.h.b16 %v4264
        %v4540 = vunpack.c.l.b16 %v4265
        %v4541 = vunpack.c.h.b16 %v4265
        %v4542 = vunpack.c.l.b16 %v4266
        %v4543 = vunpack.c.h.b16 %v4266
        %v4544 = vunpack.c.l.b16 %v4267
        %v4545 = vunpack.c.h.b16 %v4267
        %v4546 = vunpack.c.l.b16 %v4268
        %v4547 = vunpack.c.h.b16 %v4268
        %v4548 = vunpack.c.l.b16 %v4269
        %v4549 = vunpack.c.h.b16 %v4269
        %v4550 = vunpack.c.l.b16 %v4270
        %v4551 = vunpack.c.h.b16 %v4270
        %v4552 = vunpack.c.l.b16 %v4271
        %v4553 = vunpack.c.h.b16 %v4271
        %v4554 = vunpack.c.l.b16 %v4272
        %v4555 = vunpack.c.h.b16 %v4272
        %v4556 = vunpack.c.l.b16 %v4273
        %v4557 = vunpack.c.h.b16 %v4273
        %v4558 = vunpack.c.l.b16 %v4274
        %v4559 = vunpack.c.h.b16 %v4274
        %v4560 = vunpack.c.l.b16 %v4275
        %v4561 = vunpack.c.h.b16 %v4275
        %v4562 = vunpack.c.l.b16 %v4276
        %v4563 = vunpack.c.h.b16 %v4276
        %v4564 = vunpack.c.l.b16 %v4277
        %v4565 = vunpack.c.h.b16 %v4277
        %v4566 = vunpack.c.l.b16 %v4278
        %v4567 = vunpack.c.h.b16 %v4278
        %v4568 = vunpack.c.l.b16 %v4279
        %v4569 = vunpack.c.h.b16 %v4279
        %v4570 = vunpack.c.l.b16 %v4280
        %v4571 = vunpack.c.h.b16 %v4280
        %v4572 = vunpack.c.l.b16 %v4281
        %v4573 = vunpack.c.h.b16 %v4281
        %v4574 = vunpack.c.l.b16 %v4282
        %v4575 = vunpack.c.h.b16 %v4282
        %v4576 = vunpack.c.l.b16 %v4283
        %v4577 = vunpack.c.h.b16 %v4283
        %v4578 = vunpack.c.l.b16 %v4284
        %v4579 = vunpack.c.h.b16 %v4284
        %v4580 = vunpack.c.l.b16 %v4285
        %v4581 = vunpack.c.h.b16 %v4285
        %v4582 = vunpack.c.l.b16 %v4286
        %v4583 = vunpack.c.h.b16 %v4286
        %v4584 = vunpack.c.l.b16 %v4287
        %v4585 = vunpack.c.h.b16 %v4287
        %v4586 = vunpack.c.l.b16 %v4288
        %v4587 = vunpack.c.h.b16 %v4288
        %v4588 = vunpack.c.l.b16 %v4289
        %v4589 = vunpack.c.h.b16 %v4289
        %v4590 = vunpack.c.l.b16 %v4290
        %v4591 = vunpack.c.h.b16 %v4290
        %v4592 = vunpack.c.l.b16 %v4291
        %v4593 = vunpack.c.h.b16 %v4291
        %v4594 = vunpack.c.l.b16 %v4292
        %v4595 = vunpack.c.h.b16 %v4292
        %v4596 = vunpack.c.l.b16 %v4293
        %v4597 = vunpack.c.h.b16 %v4293
        %v4598 = vunpack.c.l.b16 %v4294
        %v4599 = vunpack.c.h.b16 %v4294
        %v4600 = vunpack.c.l.b16 %v4295
        %v4601 = vunpack.c.h.b16 %v4295
        %v4602 = vunpack.c.l.b16 %v4296
        %v4603 = vunpack.c.h.b16 %v4296
        %v4604 = vunpack.c.l.b16 %v4297
        %v4605 = vunpack.c.h.b16 %v4297
        %v4606 = vunpack.c.l.b16 %v4298
        %v4607 = vunpack.c.h.b16 %v4298
        %v4608 = vunpack.c.l.b16 %v4299
        %v4609 = vunpack.c.h.b16 %v4299
        %v4610 = vunpack.c.l.b16 %v4300
        %v4611 = vunpack.c.h.b16 %v4300
        %v4612 = vunpack.c.l.b16 %v4301
        %v4613 = vunpack.c.h.b16 %v4301
        %v4614 = vunpack.c.l.b16 %v4302
        %v4615 = vunpack.c.h.b16 %v4302
        %v4616 = vunpack.c.l.b16 %v4303
        %v4617 = vunpack.c.h.b16 %v4303
        %v4618 = vunpack.c.l.b16 %v4304
        %v4619 = vunpack.c.h.b16 %v4304
        %v4620 = vunpack.c.l.b16 %v4305
        %v4621 = vunpack.c.h.b16 %v4305
        %v4622 = vunpack.c.l.b16 %v4306
        %v4623 = vunpack.c.h.b16 %v4306
        %v4624 = vunpack.c.l.b16 %v4307
        %v4625 = vunpack.c.h.b16 %v4307
        %v4626 = vunpack.c.l.b16 %v4308
        %v4627 = vunpack.c.h.b16 %v4308
        %v4628 = vunpack.c.l.b16 %v4309
        %v4629 = vunpack.c.h.b16 %v4309
        %v4630 = vunpack.c.l.b16 %v4310
        %v4631 = vunpack.c.h.b16 %v4310
        %v4632 = vunpack.c.l.b16 %v4311
        %v4633 = vunpack.c.h.b16 %v4311
        %v4634 = vunpack.c.l.b16 %v4312
        %v4635 = vunpack.c.h.b16 %v4312
        %v4636 = vunpack.c.l.b16 %v4313
        %v4637 = vunpack.c.h.b16 %v4313
        %v4638 = vunpack.c.l.b16 %v4314
        %v4639 = vunpack.c.h.b16 %v4314
        %v4640 = vunpack.c.l.b16 %v4315
        %v4641 = vunpack.c.h.b16 %v4315
        %v4642 = vunpack.c.l.b16 %v4316
        %v4643 = vunpack.c.h.b16 %v4316
        %v4644 = vunpack.c.l.b16 %v4317
        %v4645 = vunpack.c.h.b16 %v4317
        %v4646 = vunpack.c.l.b16 %v4318
        %v4647 = vunpack.c.h.b16 %v4318
        %v4648 = vunpack.c.l.b16 %v4319
        %v4649 = vunpack.c.h.b16 %v4319
        %v4650 = vunpack.c.l.b16 %v4320
        %v4651 = vunpack.c.h.b16 %v4320
        %v4652 = vunpack.c.l.b16 %v4321
        %v4653 = vunpack.c.h.b16 %v4321
        %v4654 = vunpack.c.l.b16 %v4322
        %v4655 = vunpack.c.h.b16 %v4322
        %v4656 = vunpack.c.l.b16 %v4323
        %v4657 = vunpack.c.h.b16 %v4323
        %v4658 = vunpack.c.l.b16 %v4324
        %v4659 = vunpack.c.h.b16 %v4324
        %v4660 = vunpack.c.l.b16 %v4325
        %v4661 = vunpack.c.h.b16 %v4325
        %v4662 = vunpack.c.l.b16 %v4326
        %v4663 = vunpack.c.h.b16 %v4326
        %v4664 = vunpack.c.l.b16 %v4327
        %v4665 = vunpack.c.h.b16 %v4327
        %v4666 = vunpack.c.l.b16 %v4328
        %v4667 = vunpack.c.h.b16 %v4328
        %v4668 = vunpack.c.l.b16 %v4329
        %v4669 = vunpack.c.h.b16 %v4329
        %v4670 = vunpack.c.l.b16 %v4330
        %v4671 = vunpack.c.h.b16 %v4330
        %v4672 = vunpack.c.l.b16 %v4331
        %v4673 = vunpack.c.h.b16 %v4331
        %v4674 = vunpack.c.l.b16 %v4332
        %v4675 = vunpack.c.h.b16 %v4332
        %v4676 = vunpack.c.l.b16 %v4333
        %v4677 = vunpack.c.h.b16 %v4333
        %v4678 = vunpack.c.l.b16 %v4334
        %v4679 = vunpack.c.h.b16 %v4334
        %v4680 = vunpack.c.l.b16 %v4335
        %v4681 = vunpack.c.h.b16 %v4335
        %v4682 = vunpack.c.l.b16 %v4336
        %v4683 = vunpack.c.h.b16 %v4336
        %v4684 = vunpack.c.l.b16 %v4337
        %v4685 = vunpack.c.h.b16 %v4337
        %v4686 = vunpack.c.l.b16 %v4338
        %v4687 = vunpack.c.h.b16 %v4338
        %v4688 = vunpack.c.l.b16 %v4339
        %v4689 = vunpack.c.h.b16 %v4339
        %v4690 = vunpack.c.l.b16 %v4340
        %v4691 = vunpack.c.h.b16 %v4340
        %v4692 = vunpack.c.l.b16 %v4341
        %v4693 = vunpack.c.h.b16 %v4341
        %v4694 = vunpack.c.l.b16 %v4342
        %v4695 = vunpack.c.h.b16 %v4342
        %v4696 = vunpack.c.l.b16 %v4343
        %v4697 = vunpack.c.h.b16 %v4343
        %v4698 = vunpack.c.l.b16 %v4344
        %v4699 = vunpack.c.h.b16 %v4344
        %v4700 = vunpack.c.l.b16 %v4345
        %v4701 = vunpack.c.h.b16 %v4345
        %v4702 = vunpack.c.l.b16 %v4346
        %v4703 = vunpack.c.h.b16 %v4346
        %v4704 = vunpack.c.l.b16 %v4347
        %v4705 = vunpack.c.h.b16 %v4347
        %v4706 = vunpack.c.l.b16 %v4348
        %v4707 = vunpack.c.h.b16 %v4348
        %v4708 = vunpack.c.l.b16 %v4349
        %v4709 = vunpack.c.h.b16 %v4349
        %v4710 = vunpack.c.l.b16 %v4350
        %v4711 = vunpack.c.h.b16 %v4350
        %v4712 = vunpack.c.l.b16 %v4351
        %v4713 = vunpack.c.h.b16 %v4351
        %v4714 = vunpack.c.l.b16 %v4352
        %v4715 = vunpack.c.h.b16 %v4352
        %v4716 = vunpack.c.l.b16 %v4353
        %v4717 = vunpack.c.h.b16 %v4353
        %v4718 = vunpack.c.l.b16 %v4354
        %v4719 = vunpack.c.h.b16 %v4354
        %v4720 = vunpack.c.l.b16 %v4355
        %v4721 = vunpack.c.h.b16 %v4355
        %v4722 = vunpack.c.l.b16 %v4356
        %v4723 = vunpack.c.h.b16 %v4356
        %v4724 = vunpack.c.l.b16 %v4357
        %v4725 = vunpack.c.h.b16 %v4357
        %v4726 = vunpack.c.l.b16 %v4358
        %v4727 = vunpack.c.h.b16 %v4358
        %v4728 = vunpack.c.l.b16 %v4359
        %v4729 = vunpack.c.h.b16 %v4359
        %v4730 = vunpack.c.l.b16 %v4360
        %v4731 = vunpack.c.h.b16 %v4360
        %v4732 = vunpack.c.l.b16 %v4361
        %v4733 = vunpack.c.h.b16 %v4361
        %v4734 = vunpack.c.l.b16 %v4362
        %v4735 = vunpack.c.h.b16 %v4362
        %v4736 = vunpack.c.l.b16 %v4363
        %v4737 = vunpack.c.h.b16 %v4363
        %v4738 = vunpack.c.l.b16 %v4364
        %v4739 = vunpack.c.h.b16 %v4364
        %v4740 = vunpack.c.l.b16 %v4365
        %v4741 = vunpack.c.h.b16 %v4365
        %v4742 = vunpack.c.l.b16 %v4366
        %v4743 = vunpack.c.h.b16 %v4366
        %v4744 = vunpack.c.l.b16 %v4367
        %v4745 = vunpack.c.h.b16 %v4367
        %v4746 = vunpack.c.l.b16 %v4368
        %v4747 = vunpack.c.h.b16 %v4368
        %v4748 = vunpack.c.l.b16 %v4369
        %v4749 = vunpack.c.h.b16 %v4369
        %v4750 = vunpack.c.l.b16 %v4370
        %v4751 = vunpack.c.h.b16 %v4370
        %v4752 = vunpack.c.l.b16 %v4371
        %v4753 = vunpack.c.h.b16 %v4371
        %v4754 = vunpack.c.l.b16 %v4372
        %v4755 = vunpack.c.h.b16 %v4372
        %v4756 = vunpack.c.l.b16 %v4373
        %v4757 = vunpack.c.h.b16 %v4373
        %v4758 = vpack.c.b16 %v4506, %v4502
        %v4759 = vpack.c.b16 %v4507, %v4503
        %v4760 = vpack.c.b16 %v4508, %v4504
        %v4761 = vpack.c.b16 %v4509, %v4505
        %v4762 = vpack.c.b16 %v4514, %v4510
        %v4763 = vpack.c.b16 %v4515, %v4511
        %v4764 = vpack.c.b16 %v4516, %v4512
        %v4765 = vpack.c.b16 %v4517, %v4513
        %v4766 = vpack.c.b16 %v4522, %v4518
        %v4767 = vpack.c.b16 %v4523, %v4519
        %v4768 = vpack.c.b16 %v4524, %v4520
        %v4769 = vpack.c.b16 %v4525, %v4521
        %v4770 = vpack.c.b16 %v4530, %v4526
        %v4771 = vpack.c.b16 %v4531, %v4527
        %v4772 = vpack.c.b16 %v4532, %v4528
        %v4773 = vpack.c.b16 %v4533, %v4529
        %v4774 = vpack.c.b16 %v4538, %v4534
        %v4775 = vpack.c.b16 %v4539, %v4535
        %v4776 = vpack.c.b16 %v4540, %v4536
        %v4777 = vpack.c.b16 %v4541, %v4537
        %v4778 = vpack.c.b16 %v4546, %v4542
        %v4779 = vpack.c.b16 %v4547, %v4543
        %v4780 = vpack.c.b16 %v4548, %v4544
        %v4781 = vpack.c.b16 %v4549, %v4545
        %v4782 = vpack.c.b16 %v4554, %v4550
        %v4783 = vpack.c.b16 %v4555, %v4551
        %v4784 = vpack.c.b16 %v4556, %v4552
        %v4785 = vpack.c.b16 %v4557, %v4553
        %v4786 = vpack.c.b16 %v4562, %v4558
        %v4787 = vpack.c.b16 %v4563, %v4559
        %v4788 = vpack.c.b16 %v4564, %v4560
        %v4789 = vpack.c.b16 %v4565, %v4561
        %v4790 = vpack.c.b16 %v4570, %v4566
        %v4791 = vpack.c.b16 %v4571, %v4567
        %v4792 = vpack.c.b16 %v4572, %v4568
        %v4793 = vpack.c.b16 %v4573, %v4569
        %v4794 = vpack.c.b16 %v4578, %v4574
        %v4795 = vpack.c.b16 %v4579, %v4575
        %v4796 = vpack.c.b16 %v4580, %v4576
        %v4797 = vpack.c.b16 %v4581, %v4577
        %v4798 = vpack.c.b16 %v4586, %v4582
        %v4799 = vpack.c.b16 %v4587, %v4583
        %v4800 = vpack.c.b16 %v4588, %v4584
        %v4801 = vpack.c.b16 %v4589, %v4585
        %v4802 = vpack.c.b16 %v4594, %v4590
        %v4803 = vpack.c.b16 %v4595, %v4591
        %v4804 = vpack.c.b16 %v4596, %v4592
        %v4805 = vpack.c.b16 %v4597, %v4593
        %v4806 = vpack.c.b16 %v4602, %v4598
        %v4807 = vpack.c.b16 %v4603, %v4599
        %v4808 = vpack.c.b16 %v4604, %v4600
        %v4809 = vpack.c.b16 %v4605, %v4601
        %v4810 = vpack.c.b16 %v4610, %v4606
        %v4811 = vpack.c.b16 %v4611, %v4607
        %v4812 = vpack.c.b16 %v4612, %v4608
        %v4813 = vpack.c.b16 %v4613, %v4609
        %v4814 = vpack.c.b16 %v4618, %v4614
        %v4815 = vpack.c.b16 %v4619, %v4615
        %v4816 = vpack.c.b16 %v4620, %v4616
        %v4817 = vpack.c.b16 %v4621, %v4617
        %v4818 = vpack.c.b16 %v4626, %v4622
        %v4819 = vpack.c.b16 %v4627, %v4623
        %v4820 = vpack.c.b16 %v4628, %v4624
        %v4821 = vpack.c.b16 %v4629, %v4625
        %v4822 = vpack.c.b16 %v4634, %v4630
        %v4823 = vpack.c.b16 %v4635, %v4631
        %v4824 = vpack.c.b16 %v4636, %v4632
        %v4825 = vpack.c.b16 %v4637, %v4633
        %v4826 = vpack.c.b16 %v4642, %v4638
        %v4827 = vpack.c.b16 %v4643, %v4639
        %v4828 = vpack.c.b16 %v4644, %v4640
        %v4829 = vpack.c.b16 %v4645, %v4641
        %v4830 = vpack.c.b16 %v4650, %v4646
        %v4831 = vpack.c.b16 %v4651, %v4647
        %v4832 = vpack.c.b16 %v4652, %v4648
        %v4833 = vpack.c.b16 %v4653, %v4649
        %v4834 = vpack.c.b16 %v4658, %v4654
        %v4835 = vpack.c.b16 %v4659, %v4655
        %v4836 = vpack.c.b16 %v4660, %v4656
        %v4837 = vpack.c.b16 %v4661, %v4657
        %v4838 = vpack.c.b16 %v4666, %v4662
        %v4839 = vpack.c.b16 %v4667, %v4663
        %v4840 = vpack.c.b16 %v4668, %v4664
        %v4841 = vpack.c.b16 %v4669, %v4665
        %v4842 = vpack.c.b16 %v4674, %v4670
        %v4843 = vpack.c.b16 %v4675, %v4671
        %v4844 = vpack.c.b16 %v4676, %v4672
        %v4845 = vpack.c.b16 %v4677, %v4673
        %v4846 = vpack.c.b16 %v4682, %v4678
        %v4847 = vpack.c.b16 %v4683, %v4679
        %v4848 = vpack.c.b16 %v4684, %v4680
        %v4849 = vpack.c.b16 %v4685, %v4681
        %v4850 = vpack.c.b16 %v4690, %v4686
        %v4851 = vpack.c.b16 %v4691, %v4687
        %v4852 = vpack.c.b16 %v4692, %v4688
        %v4853 = vpack.c.b16 %v4693, %v4689
        %v4854 = vpack.c.b16 %v4698, %v4694
        %v4855 = vpack.c.b16 %v4699, %v4695
        %v4856 = vpack.c.b16 %v4700, %v4696
        %v4857 = vpack.c.b16 %v4701, %v4697
        %v4858 = vpack.c.b16 %v4706, %v4702
        %v4859 = vpack.c.b16 %v4707, %v4703
        %v4860 = vpack.c.b16 %v4708, %v4704
        %v4861 = vpack.c.b16 %v4709, %v4705
        %v4862 = vpack.c.b16 %v4714, %v4710
        %v4863 = vpack.c.b16 %v4715, %v4711
        %v4864 = vpack.c.b16 %v4716, %v4712
        %v4865 = vpack.c.b16 %v4717, %v4713
        %v4866 = vpack.c.b16 %v4722, %v4718
        %v4867 = vpack.c.b16 %v4723, %v4719
        %v4868 = vpack.c.b16 %v4724, %v4720
        %v4869 = vpack.c.b16 %v4725, %v4721
        %v4870 = vpack.c.b16 %v4730, %v4726
        %v4871 = vpack.c.b16 %v4731, %v4727
        %v4872 = vpack.c.b16 %v4732, %v4728
        %v4873 = vpack.c.b16 %v4733, %v4729
        %v4874 = vpack.c.b16 %v4738, %v4734
        %v4875 = vpack.c.b16 %v4739, %v4735
        %v4876 = vpack.c.b16 %v4740, %v4736
        %v4877 = vpack.c.b16 %v4741, %v4737
        %v4878 = vpack.c.b16 %v4746, %v4742
        %v4879 = vpack.c.b16 %v4747, %v4743
        %v4880 = vpack.c.b16 %v4748, %v4744
        %v4881 = vpack.c.b16 %v4749, %v4745
        %v4882 = vpack.c.b16 %v4754, %v4750
        %v4883 = vpack.c.b16 %v4755, %v4751
        %v4884 = vpack.c.b16 %v4756, %v4752
        %v4885 = vpack.c.b16 %v4757, %v4753
        %5014 = vmatprep.subr.bf16.mxu0 %v4759
        %5015 = vmatpush1.bf16.msra.mxu0 %v4758
        %5016 = vmatprep.subr.bf16.mxu0 %v4763
        %5017 = vmatpush1.bf16.msra.mxu0 %v4762
        %5018 = vmatprep.subr.bf16.mxu0 %v4767
        %5019 = vmatpush1.bf16.msra.mxu0 %v4766
        %5020 = vmatprep.subr.bf16.mxu0 %v4771
        %5021 = vmatpush1.bf16.msra.mxu0 %v4770
        %5022 = vmatprep.subr.bf16.mxu0 %v4775
        %5023 = vmatpush1.bf16.msra.mxu0 %v4774
        %5024 = vmatprep.subr.bf16.mxu0 %v4779
        %5025 = vmatpush1.bf16.msra.mxu0 %v4778
        %5026 = vmatprep.subr.bf16.mxu0 %v4783
        %5027 = vmatpush1.bf16.msra.mxu0 %v4782
        %5028 = vmatprep.subr.bf16.mxu0 %v4787
        %5029 = vmatpush1.bf16.msra.mxu0 %v4786
        %5030 = vmatprep.subr.bf16.mxu0 %v4791
        %5031 = vmatpush1.bf16.msra.mxu0 %v4790
        %5032 = vmatprep.subr.bf16.mxu0 %v4795
        %5033 = vmatpush1.bf16.msra.mxu0 %v4794
        %5034 = vmatprep.subr.bf16.mxu0 %v4799
        %5035 = vmatpush1.bf16.msra.mxu0 %v4798
        %5036 = vmatprep.subr.bf16.mxu0 %v4803
        %5037 = vmatpush1.bf16.msra.mxu0 %v4802
        %5038 = vmatprep.subr.bf16.mxu0 %v4807
        %5039 = vmatpush1.bf16.msra.mxu0 %v4806
        %5040 = vmatprep.subr.bf16.mxu0 %v4811
        %5041 = vmatpush1.bf16.msra.mxu0 %v4810
        %5042 = vmatprep.subr.bf16.mxu0 %v4815
        %5043 = vmatpush1.bf16.msra.mxu0 %v4814
        %5044 = vmatprep.subr.bf16.mxu0 %v4819
        %5045 = vmatpush1.bf16.msra.mxu0 %v4818
        %5046 = vmatprep.mubr.bf16.mxu0 %v4243
        %5047 = vmatmul.mubr.bf16.gmra.mrb[0].mxu0 %v4242
        %v5048 = vpop.f32.mrb[0].mxu0
        %v5049 = vadd.f32 0.0, %v5048
        %v5050 = vpop.f32.mrb[0].mxu0
        %v5051 = vadd.f32 0.0, %v5050
        %v5052 = vpop.f32.mrb[0].mxu0
        %v5053 = vpop.f32.mrb[0].mxu0
        %5054 = vdwg.mxu0
        %5055 = vmatprep.subr.bf16.mxu0 %v4823
        %5056 = vmatpush1.bf16.msra.mxu0 %v4822
        %5057 = vmatprep.subr.bf16.mxu0 %v4827
        %5058 = vmatpush1.bf16.msra.mxu0 %v4826
        %5059 = vmatprep.subr.bf16.mxu0 %v4831
        %5060 = vmatpush1.bf16.msra.mxu0 %v4830
        %5061 = vmatprep.subr.bf16.mxu0 %v4835
        %5062 = vmatpush1.bf16.msra.mxu0 %v4834
        %5063 = vmatprep.subr.bf16.mxu0 %v4839
        %5064 = vmatpush1.bf16.msra.mxu0 %v4838
        %5065 = vmatprep.subr.bf16.mxu0 %v4843
        %5066 = vmatpush1.bf16.msra.mxu0 %v4842
        %5067 = vmatprep.subr.bf16.mxu0 %v4847
        %5068 = vmatpush1.bf16.msra.mxu0 %v4846
        %5069 = vmatprep.subr.bf16.mxu0 %v4851
        %5070 = vmatpush1.bf16.msra.mxu0 %v4850
        %5071 = vmatprep.subr.bf16.mxu0 %v4855
        %5072 = vmatpush1.bf16.msra.mxu0 %v4854
        %5073 = vmatprep.subr.bf16.mxu0 %v4859
        %5074 = vmatpush1.bf16.msra.mxu0 %v4858
        %5075 = vmatprep.subr.bf16.mxu0 %v4863
        %5076 = vmatpush1.bf16.msra.mxu0 %v4862
        %5077 = vmatprep.subr.bf16.mxu0 %v4867
        %5078 = vmatpush1.bf16.msra.mxu0 %v4866
        %5079 = vmatprep.subr.bf16.mxu0 %v4871
        %5080 = vmatpush1.bf16.msra.mxu0 %v4870
        %5081 = vmatprep.subr.bf16.mxu0 %v4875
        %5082 = vmatpush1.bf16.msra.mxu0 %v4874
        %5083 = vmatprep.subr.bf16.mxu0 %v4879
        %5084 = vmatpush1.bf16.msra.mxu0 %v4878
        %5085 = vmatprep.subr.bf16.mxu0 %v4883
        %5086 = vmatpush1.bf16.msra.mxu0 %v4882
        %5087 = vmatprep.mubr.bf16.mxu0 %v4245
        %5088 = vmatmul.mubr.bf16.gmra.mrb[0].mxu0 %v4244
        %v5089 = vpop.f32.mrb[0].mxu0
        %v5090 = vadd.f32 %v5049, %v5089
        %v5091 = vpop.f32.mrb[0].mxu0
        %v5092 = vadd.f32 %v5051, %v5091
        %v5093 = vpop.f32.mrb[0].mxu0
        %v5094 = vpop.f32.mrb[0].mxu0
        %5095 = vdwg.mxu0
        %5096 = vmatprep.subr.bf16.mxu0 %v4761
        %5097 = vmatpush1.bf16.msra.mxu0 %v4760
        %5098 = vmatprep.subr.bf16.mxu0 %v4765
        %5099 = vmatpush1.bf16.msra.mxu0 %v4764
        %5100 = vmatprep.subr.bf16.mxu0 %v4769
        %5101 = vmatpush1.bf16.msra.mxu0 %v4768
        %5102 = vmatprep.subr.bf16.mxu0 %v4773
        %5103 = vmatpush1.bf16.msra.mxu0 %v4772
        %5104 = vmatprep.subr.bf16.mxu0 %v4777
        %5105 = vmatpush1.bf16.msra.mxu0 %v4776
        %5106 = vmatprep.subr.bf16.mxu0 %v4781
        %5107 = vmatpush1.bf16.msra.mxu0 %v4780
        %5108 = vmatprep.subr.bf16.mxu0 %v4785
        %5109 = vmatpush1.bf16.msra.mxu0 %v4784
        %5110 = vmatprep.subr.bf16.mxu0 %v4789
        %5111 = vmatpush1.bf16.msra.mxu0 %v4788
        %5112 = vmatprep.subr.bf16.mxu0 %v4793
        %5113 = vmatpush1.bf16.msra.mxu0 %v4792
        %5114 = vmatprep.subr.bf16.mxu0 %v4797
        %5115 = vmatpush1.bf16.msra.mxu0 %v4796
        %5116 = vmatprep.subr.bf16.mxu0 %v4801
        %5117 = vmatpush1.bf16.msra.mxu0 %v4800
        %5118 = vmatprep.subr.bf16.mxu0 %v4805
        %5119 = vmatpush1.bf16.msra.mxu0 %v4804
        %5120 = vmatprep.subr.bf16.mxu0 %v4809
        %5121 = vmatpush1.bf16.msra.mxu0 %v4808
        %5122 = vmatprep.subr.bf16.mxu0 %v4813
        %5123 = vmatpush1.bf16.msra.mxu0 %v4812
        %5124 = vmatprep.subr.bf16.mxu0 %v4817
        %5125 = vmatpush1.bf16.msra.mxu0 %v4816
        %5126 = vmatprep.subr.bf16.mxu0 %v4821
        %5127 = vmatpush1.bf16.msra.mxu0 %v4820
        %5128 = vmatprep.mubr.bf16.mxu0 %v4243
        %5129 = vmatmul.mubr.bf16.gmra.mrb[0].mxu0 %v4242
        %v5130 = vpop.f32.mrb[0].mxu0
        %v5131 = vadd.f32 0.0, %v5130
        %v5132 = vpop.f32.mrb[0].mxu0
        %v5133 = vadd.f32 0.0, %v5132
        %v5134 = vpop.f32.mrb[0].mxu0
        %v5135 = vpop.f32.mrb[0].mxu0
        %5136 = vdwg.mxu0
        %5137 = vmatprep.subr.bf16.mxu0 %v4825
        %5138 = vmatpush1.bf16.msra.mxu0 %v4824
        %5139 = vmatprep.subr.bf16.mxu0 %v4829
        %5140 = vmatpush1.bf16.msra.mxu0 %v4828
        %5141 = vmatprep.subr.bf16.mxu0 %v4833
        %5142 = vmatpush1.bf16.msra.mxu0 %v4832
        %5143 = vmatprep.subr.bf16.mxu0 %v4837
        %5144 = vmatpush1.bf16.msra.mxu0 %v4836
        %5145 = vmatprep.subr.bf16.mxu0 %v4841
        %5146 = vmatpush1.bf16.msra.mxu0 %v4840
        %5147 = vmatprep.subr.bf16.mxu0 %v4845
        %5148 = vmatpush1.bf16.msra.mxu0 %v4844
        %5149 = vmatprep.subr.bf16.mxu0 %v4849
        %5150 = vmatpush1.bf16.msra.mxu0 %v4848
        %5151 = vmatprep.subr.bf16.mxu0 %v4853
        %5152 = vmatpush1.bf16.msra.mxu0 %v4852
        %5153 = vmatprep.subr.bf16.mxu0 %v4857
        %5154 = vmatpush1.bf16.msra.mxu0 %v4856
        %5155 = vmatprep.subr.bf16.mxu0 %v4861
        %5156 = vmatpush1.bf16.msra.mxu0 %v4860
        %5157 = vmatprep.subr.bf16.mxu0 %v4865
        %5158 = vmatpush1.bf16.msra.mxu0 %v4864
        %5159 = vmatprep.subr.bf16.mxu0 %v4869
        %5160 = vmatpush1.bf16.msra.mxu0 %v4868
        %5161 = vmatprep.subr.bf16.mxu0 %v4873
        %5162 = vmatpush1.bf16.msra.mxu0 %v4872
        %5163 = vmatprep.subr.bf16.mxu0 %v4877
        %5164 = vmatpush1.bf16.msra.mxu0 %v4876
        %5165 = vmatprep.subr.bf16.mxu0 %v4881
        %5166 = vmatpush1.bf16.msra.mxu0 %v4880
        %5167 = vmatprep.subr.bf16.mxu0 %v4885
        %5168 = vmatpush1.bf16.msra.mxu0 %v4884
        %5169 = vmatprep.mubr.bf16.mxu0 %v4245
        %5170 = vmatmul.mubr.bf16.gmra.mrb[0].mxu0 %v4244
        %v5171 = vpop.f32.mrb[0].mxu0
        %v5172 = vadd.f32 %v5131, %v5171
        %v5173 = vpop.f32.mrb[0].mxu0
        %v5174 = vadd.f32 %v5133, %v5173
        %v5175 = vpop.f32.mrb[0].mxu0
        %v5176 = vpop.f32.mrb[0].mxu0
        %5177 = vdwg.mxu0
        %v5182 = vcombine.low %v5090, %v5092
        %v5183 = vcombine.low %v5172, %v5174
        %v5185 = vunpack.c.l.s4 1983009808
        %v5186 = vunpack.c.0.s8 %v5185
        %v5187 = vlaneseq
        %v5188 = vshrl.u32 %v5187, 7
        %v5189 = vsub.s32 %v5186, %v5188
        %v5190 = vrot.slane %v5182, %v5189
        %v5192 = vunpack.c.l.s4 1983009808
        %v5193 = vunpack.c.0.s8 %v5192
        %v5194 = vlaneseq
        %v5195 = vshrl.u32 %v5194, 7
        %v5196 = vsub.s32 %v5193, %v5195
        %v5197 = vrot.slane %v5183, %v5196
        %v5198 = vcombine.low %v5190, %v5197
        %5200 = vst [vmem:[%s330] sm:$0xff] %v5198
        %s5201 = sand.u32 %s139, 1
        %s5202 = scalar_lea.sflag [#allocation4], %s5201
        %s5203 = sand.u32 %s139, 1
        %s5204 = smul.addr %s5203, 8
        %s5205 = scalar_lea.vmem [#allocation10], %s5204
        // Predicated region
        $region53: #{tpu_custom_call.1} parent=35 // pred_check
          %p5206 = pneg %p149
        $region54: #{tpu_custom_call.1} parent=35 // pred_check_branch
          %5208 = sbr.rel (%p5206) target = $region56
        $region55: #{tpu_custom_call.1} parent=35 // pred_region
          %s5209 = smul.u32 4, %s27
          %s5211 = ssub.s32 128, 128
          %5212 = vsyncadd %s5202, %s5211
          %s5213 = smul.addr %s5209, 32
          %s5214 = scalar_lea.hbm %s4, %s5213
          %s5216 = sshll.u32 %s5205, 4
          %s5217 = int_to_ptr.vmem [resolvable:$true] %s5216
          %5219 = dma.vmem_to_hbm [thread:$0]  %s5217, 128, %s5214, %s5202
        $region56: #{tpu_custom_call.1} parent=35 // pred_fallthru
          _
      $region36: #{tpu_custom_call.1} parent=5 // pred_fallthru
        _
      %p5220 = scmp.le.s32.totalorder 2, %s22
      // Predicated region
      $region57: #{tpu_custom_call.1} parent=5 // pred_check
        %p5221 = pneg %p5220
      $region58: #{tpu_custom_call.1} parent=5 // pred_check_branch
        %5223 = sbr.rel (%p5221) target = $region60
      $region59: #{tpu_custom_call.1} parent=5 // pred_region
        %s5224 = ssub.s32 %s22, 2
        // Predicated region
        $region61: #{tpu_custom_call.1} parent=59 // pred_check
          %p5225 = pneg %p155
        $region62: #{tpu_custom_call.1} parent=59 // pred_check_branch
          %5227 = sbr.rel (%p5225) target = $region64
        $region63: #{tpu_custom_call.1} parent=59 // pred_region
          %s5228 = sand.u32 %s140, 1
          %s5229 = scalar_lea.sflag [#allocation4], %s5228
          %s5230 = sand.u32 %s140, 1
          %s5231 = smul.addr %s5230, 8
          %s5232 = scalar_lea.vmem [#allocation10], %s5231
          %5233 = dma.done %s5229, 128
        $region64: #{tpu_custom_call.1} parent=59 // pred_fallthru
          _
      $region60: #{tpu_custom_call.1} parent=5 // pred_fallthru
        _
    $region6: #{tpu_custom_call.1} parent=1 // loop_footer
      %s26 = sadd.s32 1, %s22
    $region7: #{tpu_custom_call.1} parent=1 // loop_footer_branch
      %21 = sbr.rel target = $region3
    $region8: #{tpu_custom_call.1} parent=1 // loop_exit
      _
    %5234 = vsyncpa [#allocation3], 1
    %s5235 = scalar_lea.sflag [#allocation3], 1
    %5236 = vsyncpa %s5235, 1
    %5237 = vsyncpa [#allocation6], 1
    %s5238 = scalar_lea.sflag [#allocation6], 1
    %5239 = vsyncpa %s5238, 1
    %5240 = vsyncpa [#allocation9], 1
    %s5241 = scalar_lea.sflag [#allocation9], 1
    %5242 = vsyncpa %s5241, 1
    %5243 = vsyncpa [#allocation4], 1
    %s5244 = scalar_lea.sflag [#allocation4], 1
    %5245 = vsyncpa %s5244, 1

</llo_original>
